<compile_context>
chip_gen: v5e
topology: v5e:2x2
jax: 0.10.0
libtpu: 0.0.40
codegen_flags: <defaults>
</compile_context>

<pallas_src>
import jax
import jax.numpy as jnp
from jax.experimental import pallas as pl
from jax.experimental.pallas import tpu as pltpu

NEG_SLOPE = 0.01   # nn.LeakyReLU() default negative_slope
LANE = 128
SUBLANE = 8
MIN_TB = 512       # per-grid-step overhead amortizes well above this (measured on v6e)


def _round_up(n, m):
    return ((n + m - 1) // m) * m


def _leaky_relu(x):
    # max(x, a*x) == LeakyReLU(x) for 0 <= a < 1 (one vmul + one vmax).
    return jnp.maximum(x, NEG_SLOPE * x)


def _vmem_cap_bytes():
    """Generation-aware VMEM cap: ~75% of physical per-core VMEM (leaves room for
    Mosaic's internal scratch / result staging); falls back to a v7x-safe 48 MiB."""
    try:
        return int(pltpu.get_tpu_info().vmem_capacity_bytes) * 3 // 4
    except Exception:
        return 48 * 1024 * 1024


def _choose_tb(B, block_b):
    """Pick the batch tile: multiple of 8, >= MIN_TB when possible, and split into
    >= 2 grid steps when the batch is large enough (v7x megacore)."""
    b8 = _round_up(B, SUBLANE)
    tb = min(_round_up(block_b, SUBLANE), b8)
    tb = max(tb, min(MIN_TB, b8))                       # enforce TB >= 512 where B allows
    if B >= 2 * MIN_TB:
        half = _round_up(-(-B // 2), SUBLANE)
        tb = min(tb, max(half, MIN_TB))                 # ensure >= 2 grid steps
    return tb


def heightmap_encoder_kernel(x_ref, w1_ref, b1_ref, w2_ref, b2_ref, o_ref):
    # Layer 1: Linear(C -> F1) + LeakyReLU.  Matmul operands in weight dtype
    # (bf16 by default), f32 accumulate + f32 epilogue.
    x = x_ref[...].astype(w1_ref.dtype)
    h = jnp.dot(x, w1_ref[...], preferred_element_type=jnp.float32)
    h = _leaky_relu(h + b1_ref[...])                     # (TB, F1p) + (1, F1p)

    # Layer 2: Linear(F1 -> F2) + LeakyReLU.
    h = h.astype(w2_ref.dtype)
    o = jnp.dot(h, w2_ref[...], preferred_element_type=jnp.float32)
    o = _leaky_relu(o + b2_ref[...])                     # (TB, F2) + (1, F2)

    o_ref[...] = o.astype(o_ref.dtype)                   # direct (TB, F2) store


def prepare_params(w1, b1, w2, b2, *, compute_dtype=jnp.bfloat16):
    """One-time parameter prep (call at init, NOT per forward step).

    w1: (C_in, F1); b1: (F1,); w2: (F1, F2); b2: (F2,)  [weights are (in, out)].
    Pads only the hidden width F1 to 128 lanes (exact through Linear+LeakyReLU)
    and casts the matmul operands to `compute_dtype`.  Biases stay f32.
    """
    C_in, F1 = w1.shape
    F1_b, F2 = w2.shape
    assert F1_b == F1
    F1_pad = _round_up(F1, LANE)

    w1p = jnp.zeros((C_in, F1_pad), compute_dtype).at[:, :F1].set(w1.astype(compute_dtype))
    b1p = jnp.zeros((1, F1_pad), jnp.float32).at[0, :F1].set(b1.astype(jnp.float32))
    w2p = jnp.zeros((F1_pad, F2), compute_dtype).at[:F1, :].set(w2.astype(compute_dtype))
    b2p = b2.astype(jnp.float32).reshape(1, F2)
    return w1p, b1p, w2p, b2p


def heightmap_encoder(x, params, *, block_b=2048, out_dtype=None):
    """x: (B, C_in) (pass bf16 x to also halve the input HBM stream);
    params: output of prepare_params(); returns (B, F2) in `out_dtype` (default x.dtype)."""
    w1p, b1p, w2p, b2p = params
    B, C_in = x.shape
    assert w1p.shape[0] == C_in, (w1p.shape, C_in)
    F1_pad = w1p.shape[1]
    F2 = w2p.shape[1]
    out_dtype = x.dtype if out_dtype is None else out_dtype

    TB = _choose_tb(B, block_b)
    num_tiles = pl.cdiv(B, TB)

    # Per-step VMEM footprint: double-buffered x/out streams, single-buffered
    # resident params, f32 hidden.  2x headroom, generation-aware cap.
    x_sz = jnp.dtype(x.dtype).itemsize
    o_sz = jnp.dtype(out_dtype).itemsize
    w_sz = jnp.dtype(w1p.dtype).itemsize
    vmem_need = (2 * TB * C_in * x_sz
                 + 2 * TB * F2 * o_sz
                 + (C_in * F1_pad + F1_pad * F2) * w_sz
                 + (F1_pad + F2) * 4
                 + TB * F1_pad * 4)
    vmem_limit = int(min(_vmem_cap_bytes(), max(2 * vmem_need, 16 * 1024 * 1024)))

    def call(param_kwargs):
        return pl.pallas_call(
            heightmap_encoder_kernel,
            out_shape=jax.ShapeDtypeStruct((B, F2), out_dtype),
            grid=(num_tiles,),
            in_specs=[
                # Streamed batch tile; last dim == full array dim (legal even if
                # C_in % 128 != 0), ragged last tile masked by Pallas.
                pl.BlockSpec((TB, C_in), lambda i: (i, 0)),
                # VMEM-resident parameters (constant index_map => fetched once).
                pl.BlockSpec((C_in, F1_pad), lambda i: (0, 0), **param_kwargs),
                pl.BlockSpec((1, F1_pad), lambda i: (0, 0), **param_kwargs),
                pl.BlockSpec((F1_pad, F2), lambda i: (0, 0), **param_kwargs),
                pl.BlockSpec((1, F2), lambda i: (0, 0), **param_kwargs),
            ],
            out_specs=pl.BlockSpec((TB, F2), lambda i: (i, 0)),   # direct (B, F2) output
            compiler_params=pltpu.CompilerParams(
                dimension_semantics=("parallel",),   # shard batch tiles across TCs on v7x
                vmem_limit_bytes=vmem_limit,
            ),
        )(x, w1p, b1p, w2p, b2p)

    try:
        # Single-buffer the never-refetched params (VMEM/DMA hygiene).
        return call({"pipeline_mode": pl.Buffered(1)})
    except Exception:
        # Fallback for Pallas versions without per-BlockSpec pipeline_mode support.
        return call({})


def init_params(key, in_channels, encoder_features=(80, 60), dtype=jnp.float32):
    """Deterministic synthetic init (PyTorch-Linear-style uniform bounds)."""
    params = []
    fan_in = in_channels
    for feat in encoder_features:
        key, kw, kb = jax.random.split(key, 3)
        bound = 1.0 / jnp.sqrt(jnp.float32(fan_in))
        # Stored as (in, out) == transpose of PyTorch's (out, in).
        w = jax.random.uniform(kw, (fan_in, feat), dtype, -bound, bound)
        b = jax.random.uniform(kb, (feat,), dtype, -bound, bound)
        params.append((w, b))
        fan_in = feat
    return params


def reference_forward(x, params):
    h = x
    for w, b in params:
        h = h @ w + b
        h = jnp.where(h >= 0, h, NEG_SLOPE * h)
    return h


if __name__ == "__main__":
    key = jax.random.PRNGKey(0)
    # Flattened heightmap features; B and C_in deliberately NOT multiples of the
    # tile sizes to exercise the ragged last batch tile and ragged lane dim.
    B, C_IN = 1100, 270
    FEATURES = (80, 60)

    key, kx = jax.random.split(key)
    x = jax.random.normal(kx, (B, C_IN), jnp.float32)
    (w1, b1), (w2, b2) = init_params(key, C_IN, FEATURES)
    ref = reference_forward(x, [(w1, b1), (w2, b2)])

    # Default path: bf16 matmul operands, f32 epilogue, f32 output.
    params_bf16 = prepare_params(w1, b1, w2, b2)
    out = jax.block_until_ready(heightmap_encoder(x, params_bf16))
    assert out.shape == (B, FEATURES[-1]), out.shape
    assert jnp.allclose(out, ref, atol=1e-1, rtol=1e-1), "bf16 path mismatch vs reference"

    # Full-f32 path for tight numerical validation of the kernel itself.
    params_f32 = prepare_params(w1, b1, w2, b2, compute_dtype=jnp.float32)
    out32 = jax.block_until_ready(heightmap_encoder(x, params_f32))
    assert jnp.allclose(out32, ref, atol=1e-4, rtol=1e-5), "f32 path mismatch vs reference"

    print("KERNEL_OK")
</pallas_src>

<mosaic_0001>
module attributes {stable_mosaic.version = 11 : i64} {
  func.func @heightmap_encoder_kernel(%arg0: i32, %arg1: memref<552x270xf32, #tpu.memory_space<vmem>>, %arg2: memref<270x128xbf16, #tpu.memory_space<vmem>>, %arg3: memref<1x128xf32, #tpu.memory_space<vmem>>, %arg4: memref<128x60xbf16, #tpu.memory_space<vmem>>, %arg5: memref<1x60xf32, #tpu.memory_space<vmem>>, %arg6: memref<552x60xf32, #tpu.memory_space<vmem>>) attributes {dimension_semantics = [#tpu.dimension_semantics<parallel>], iteration_bounds = array<i64: 2>, scalar_prefetch = 0 : i64, scratch_operands = 0 : i64, tpu.core_type = #tpu.core_type<tc>, window_params = [{transform_indices = @transform_0, window_bounds = array<i64: 552, 270>}, {pipeline_mode = #tpu.pipeline_mode<synchronous>, transform_indices = @transform_1, window_bounds = array<i64: 270, 128>}, {pipeline_mode = #tpu.pipeline_mode<synchronous>, transform_indices = @transform_2, window_bounds = array<i64: 1, 128>}, {pipeline_mode = #tpu.pipeline_mode<synchronous>, transform_indices = @transform_3, window_bounds = array<i64: 128, 60>}, {pipeline_mode = #tpu.pipeline_mode<synchronous>, transform_indices = @transform_4, window_bounds = array<i64: 1, 60>}, {transform_indices = @transform_5, window_bounds = array<i64: 552, 60>}]} {
    %c0 = arith.constant 0 : index
    %c0_0 = arith.constant 0 : index
    %0 = vector.load %arg1[%c0, %c0_0] : memref<552x270xf32, #tpu.memory_space<vmem>>, vector<552x270xf32>
    %1 = arith.truncf %0 : vector<552x270xf32> to vector<552x270xbf16>
    %c0_1 = arith.constant 0 : index
    %c0_2 = arith.constant 0 : index
    %2 = vector.load %arg2[%c0_1, %c0_2] : memref<270x128xbf16, #tpu.memory_space<vmem>>, vector<270x128xbf16>
    %cst = arith.constant dense<0.000000e+00> : vector<552x128xf32>
    %3 = tpu.matmul %1, %2, %cst {dimension_numbers = #tpu.dot_dimension_numbers<[1], [0], [0], [1], [0, 0, 1, 1], [], []>} : vector<552x270xbf16>, vector<270x128xbf16>, vector<552x128xf32> -> vector<552x128xf32>
    %c0_3 = arith.constant 0 : index
    %c0_4 = arith.constant 0 : index
    %4 = vector.load %arg3[%c0_3, %c0_4] : memref<1x128xf32, #tpu.memory_space<vmem>>, vector<1x128xf32>
    %5 = vector.broadcast %4 : vector<1x128xf32> to vector<552x128xf32>
    %6 = arith.addf %3, %5 : vector<552x128xf32>
    %cst_5 = arith.constant 0.00999999977 : f32
    %7 = vector.broadcast %cst_5 : f32 to vector<552x128xf32>
    %8 = arith.mulf %7, %6 : vector<552x128xf32>
    %9 = arith.maximumf %6, %8 : vector<552x128xf32>
    %10 = arith.truncf %9 : vector<552x128xf32> to vector<552x128xbf16>
    %c0_6 = arith.constant 0 : index
    %c0_7 = arith.constant 0 : index
    %11 = vector.load %arg4[%c0_6, %c0_7] : memref<128x60xbf16, #tpu.memory_space<vmem>>, vector<128x60xbf16>
    %cst_8 = arith.constant dense<0.000000e+00> : vector<552x60xf32>
    %12 = tpu.matmul %10, %11, %cst_8 {dimension_numbers = #tpu.dot_dimension_numbers<[1], [0], [0], [1], [0, 0, 1, 1], [], []>} : vector<552x128xbf16>, vector<128x60xbf16>, vector<552x60xf32> -> vector<552x60xf32>
    %c0_9 = arith.constant 0 : index
    %c0_10 = arith.constant 0 : index
    %13 = vector.load %arg5[%c0_9, %c0_10] : memref<1x60xf32, #tpu.memory_space<vmem>>, vector<1x60xf32>
    %14 = vector.broadcast %13 : vector<1x60xf32> to vector<552x60xf32>
    %15 = arith.addf %12, %14 : vector<552x60xf32>
    %cst_11 = arith.constant 0.00999999977 : f32
    %16 = vector.broadcast %cst_11 : f32 to vector<552x60xf32>
    %17 = arith.mulf %16, %15 : vector<552x60xf32>
    %18 = arith.maximumf %15, %17 : vector<552x60xf32>
    %c0_12 = arith.constant 0 : index
    %c0_13 = arith.constant 0 : index
    %19 = vector.load %arg6[%c0_12, %c0_13] : memref<552x60xf32, #tpu.memory_space<vmem>>, vector<552x60xf32>
    tpu.vector_store %arg6[%c0_12, %c0_13], %18 {strides = array<i32>} : memref<552x60xf32, #tpu.memory_space<vmem>>, vector<552x60xf32>,
    return
  }
  func.func @transform_0(%arg0: i32) -> (i32, i32) {
    %c0_i32 = arith.constant 0 : i32
    %c0_i32_0 = arith.constant 0 : i32
    return %arg0, %c0_i32 : i32, i32
  }
  func.func @transform_1(%arg0: i32) -> (i32, i32) {
    %c0_i32 = arith.constant 0 : i32
    %c0_i32_0 = arith.constant 0 : i32
    %c0_i32_1 = arith.constant 0 : i32
    return %c0_i32, %c0_i32_0 : i32, i32
  }
  func.func @transform_2(%arg0: i32) -> (i32, i32) {
    %c0_i32 = arith.constant 0 : i32
    %c0_i32_0 = arith.constant 0 : i32
    %c0_i32_1 = arith.constant 0 : i32
    return %c0_i32, %c0_i32_0 : i32, i32
  }
  func.func @transform_3(%arg0: i32) -> (i32, i32) {
    %c0_i32 = arith.constant 0 : i32
    %c0_i32_0 = arith.constant 0 : i32
    %c0_i32_1 = arith.constant 0 : i32
    return %c0_i32, %c0_i32_0 : i32, i32
  }
  func.func @transform_4(%arg0: i32) -> (i32, i32) {
    %c0_i32 = arith.constant 0 : i32
    %c0_i32_0 = arith.constant 0 : i32
    %c0_i32_1 = arith.constant 0 : i32
    return %c0_i32, %c0_i32_0 : i32, i32
  }
  func.func @transform_5(%arg0: i32) -> (i32, i32) {
    %c0_i32 = arith.constant 0 : i32
    %c0_i32_0 = arith.constant 0 : i32
    return %arg0, %c0_i32 : i32, i32
  }
}

module attributes {stable_mosaic.version = 11 : i64} {
  func.func @heightmap_encoder_kernel(%arg0: i32, %arg1: memref<552x270xf32, #tpu.memory_space<vmem>>, %arg2: memref<270x128xbf16, #tpu.memory_space<vmem>>, %arg3: memref<1x128xf32, #tpu.memory_space<vmem>>, %arg4: memref<128x60xbf16, #tpu.memory_space<vmem>>, %arg5: memref<1x60xf32, #tpu.memory_space<vmem>>, %arg6: memref<552x60xf32, #tpu.memory_space<vmem>>) attributes {dimension_semantics = [#tpu.dimension_semantics<parallel>], iteration_bounds = array<i64: 2>, scalar_prefetch = 0 : i64, scratch_operands = 0 : i64, tpu.core_type = #tpu.core_type<tc>, window_params = [{transform_indices = @transform_0, window_bounds = array<i64: 552, 270>}, {pipeline_mode = #tpu.pipeline_mode<synchronous>, transform_indices = @transform_1, window_bounds = array<i64: 270, 128>}, {pipeline_mode = #tpu.pipeline_mode<synchronous>, transform_indices = @transform_2, window_bounds = array<i64: 1, 128>}, {pipeline_mode = #tpu.pipeline_mode<synchronous>, transform_indices = @transform_3, window_bounds = array<i64: 128, 60>}, {pipeline_mode = #tpu.pipeline_mode<synchronous>, transform_indices = @transform_4, window_bounds = array<i64: 1, 60>}, {transform_indices = @transform_5, window_bounds = array<i64: 552, 60>}]} {
    %c0 = arith.constant 0 : index
    %c0_0 = arith.constant 0 : index
    %0 = vector.load %arg1[%c0, %c0_0] : memref<552x270xf32, #tpu.memory_space<vmem>>, vector<552x270xf32>
    %1 = arith.truncf %0 : vector<552x270xf32> to vector<552x270xbf16>
    %c0_1 = arith.constant 0 : index
    %c0_2 = arith.constant 0 : index
    %2 = vector.load %arg2[%c0_1, %c0_2] : memref<270x128xbf16, #tpu.memory_space<vmem>>, vector<270x128xbf16>
    %cst = arith.constant dense<0.000000e+00> : vector<552x128xf32>
    %3 = tpu.matmul %1, %2, %cst {dimension_numbers = #tpu.dot_dimension_numbers<[1], [0], [0], [1], [0, 0, 1, 1], [], []>} : vector<552x270xbf16>, vector<270x128xbf16>, vector<552x128xf32> -> vector<552x128xf32>
    %c0_3 = arith.constant 0 : index
    %c0_4 = arith.constant 0 : index
    %4 = vector.load %arg3[%c0_3, %c0_4] : memref<1x128xf32, #tpu.memory_space<vmem>>, vector<1x128xf32>
    %5 = vector.broadcast %4 : vector<1x128xf32> to vector<552x128xf32>
    %6 = arith.addf %3, %5 : vector<552x128xf32>
    %cst_5 = arith.constant 0.00999999977 : f32
    %7 = vector.broadcast %cst_5 : f32 to vector<552x128xf32>
    %8 = arith.mulf %7, %6 : vector<552x128xf32>
    %9 = arith.maximumf %6, %8 : vector<552x128xf32>
    %10 = arith.truncf %9 : vector<552x128xf32> to vector<552x128xbf16>
    %c0_6 = arith.constant 0 : index
    %c0_7 = arith.constant 0 : index
    %11 = vector.load %arg4[%c0_6, %c0_7] : memref<128x60xbf16, #tpu.memory_space<vmem>>, vector<128x60xbf16>
    %cst_8 = arith.constant dense<0.000000e+00> : vector<552x60xf32>
    %12 = tpu.matmul %10, %11, %cst_8 {dimension_numbers = #tpu.dot_dimension_numbers<[1], [0], [0], [1], [0, 0, 1, 1], [], []>} : vector<552x128xbf16>, vector<128x60xbf16>, vector<552x60xf32> -> vector<552x60xf32>
    %c0_9 = arith.constant 0 : index
    %c0_10 = arith.constant 0 : index
    %13 = vector.load %arg5[%c0_9, %c0_10] : memref<1x60xf32, #tpu.memory_space<vmem>>, vector<1x60xf32>
    %14 = vector.broadcast %13 : vector<1x60xf32> to vector<552x60xf32>
    %15 = arith.addf %12, %14 : vector<552x60xf32>
    %cst_11 = arith.constant 0.00999999977 : f32
    %16 = vector.broadcast %cst_11 : f32 to vector<552x60xf32>
    %17 = arith.mulf %16, %15 : vector<552x60xf32>
    %18 = arith.maximumf %15, %17 : vector<552x60xf32>
    %c0_12 = arith.constant 0 : index
    %c0_13 = arith.constant 0 : index
    %19 = vector.load %arg6[%c0_12, %c0_13] : memref<552x60xf32, #tpu.memory_space<vmem>>, vector<552x60xf32>
    tpu.vector_store %arg6[%c0_12, %c0_13], %18 {strides = array<i32>} : memref<552x60xf32, #tpu.memory_space<vmem>>, vector<552x60xf32>,
    return
  }
  func.func @transform_0(%arg0: i32) -> (i32, i32) {
    %c0_i32 = arith.constant 0 : i32
    %c0_i32_0 = arith.constant 0 : i32
    return %arg0, %c0_i32 : i32, i32
  }
  func.func @transform_1(%arg0: i32) -> (i32, i32) {
    %c0_i32 = arith.constant 0 : i32
    %c0_i32_0 = arith.constant 0 : i32
    %c0_i32_1 = arith.constant 0 : i32
    return %c0_i32, %c0_i32_0 : i32, i32
  }
  func.func @transform_2(%arg0: i32) -> (i32, i32) {
    %c0_i32 = arith.constant 0 : i32
    %c0_i32_0 = arith.constant 0 : i32
    %c0_i32_1 = arith.constant 0 : i32
    return %c0_i32, %c0_i32_0 : i32, i32
  }
  func.func @transform_3(%arg0: i32) -> (i32, i32) {
    %c0_i32 = arith.constant 0 : i32
    %c0_i32_0 = arith.constant 0 : i32
    %c0_i32_1 = arith.constant 0 : i32
    return %c0_i32, %c0_i32_0 : i32, i32
  }
  func.func @transform_4(%arg0: i32) -> (i32, i32) {
    %c0_i32 = arith.constant 0 : i32
    %c0_i32_0 = arith.constant 0 : i32
    %c0_i32_1 = arith.constant 0 : i32
    return %c0_i32, %c0_i32_0 : i32, i32
  }
  func.func @transform_5(%arg0: i32) -> (i32, i32) {
    %c0_i32 = arith.constant 0 : i32
    %c0_i32_0 = arith.constant 0 : i32
    return %arg0, %c0_i32 : i32, i32
  }
}

</mosaic_0001>

<llo_original>
// kernel: tpu_custom_call.1
$region0: #{tpu_custom_call.1}
  #allocation0 [shape = 'u32[]', space=smem, size = 0x4, offset = 0x4, fixed_abs, tag = 'smem constant byte address 0x4 - core index']
  #allocation1 [shape = 'u32[72,128]{1,0:T(1,128)}', space=vmem, size = 0x9000, scoped, tag = 'internal scratch']
  %s0 = inlined_call_operand.vmem [shape: f32[1100,270], index: 0, kind: input, shape index: {}]
  %s1 = inlined_call_operand.vmem [shape: bf16[270,128], index: 1, kind: input, shape index: {}]
  %s2 = inlined_call_operand.vmem [shape: f32[1,128], index: 2, kind: input, shape index: {}]
  %s3 = inlined_call_operand.vmem [shape: bf16[128,60], index: 3, kind: input, shape index: {}]
  %s4 = inlined_call_operand.vmem [shape: f32[1,60], index: 4, kind: input, shape index: {}]
  %s5 = inlined_call_operand.vmem [shape: f32[1100,60], index: 5, kind: output, shape index: {}]
  %s6 = sld [smem:[#allocation0]]
  $region53: #{tpu_custom_call.1} parent=0
    _
  %s8 = ssub.s32 1, %s6
  %s9 = scalar_select 0, %s8, %s6
  loop: start=0, step=1, limit=4
  $region2: #{tpu_custom_call.1} parent=0 // loop_pre_header
    _
  $region3: #{tpu_custom_call.1} parent=0 // loop_header
    %s11 = sphi 0, %s15
    %p12 = scmp.ge.s32.totalorder %s11, 4
    %s21 = sphi 0, %s23
    %s24 = sphi 0, %s21
    %s25 = sphi 0, %s24
    %s41 = sphi 0, %s25
    %s45 = sphi 0, %s45
    %s47 = sphi 0, %s45
    %s48 = sphi 0, %s47
    %s62 = sphi 0, %s48
    %s66 = sphi 0, %s66
    %s68 = sphi 0, %s66
    %s69 = sphi 0, %s68
    %s83 = sphi 0, %s69
    %s87 = sphi 0, %s87
    %s89 = sphi 0, %s87
    %s90 = sphi 0, %s89
    %s104 = sphi 0, %s90
    %s108 = sphi 0, %s108
    %s110 = sphi 0, %s108
    %s111 = sphi 0, %s110
    %s125 = sphi 0, %s111
    %s131 = sphi 0, %s133
    %s134 = sphi 0, %s131
    %s135 = sphi 0, %s134
    %s151 = sphi 0, %s135
  $region4: #{tpu_custom_call.1} parent=0 // loop_header_branch
    %14 = sbr.rel (%p12) target = $region8
  $region5: #{tpu_custom_call.1} parent=0 // loop_body
    %s16 = ssub.s32 %s11, 1
    %s17 = ssub.s32 %s11, 2
    %s18 = sadd.s32 %s11, 1
    %s19 = ssub.s32 %s11, %s18
    %p20 = scmp.eq.s32.totalorder %s19, 0
    %s22 = sadd.s32 %s21, 1
    %s23 = scalar_select %p20, %s21, %s22
    %p26 = pneg %p20
    %p27 = scmp.eq.s32.totalorder %s11, 1
    %p28 = por %p26, %p27
    %p29 = scmp.ne.s32.totalorder %s21, %s24
    %p30 = scmp.eq.s32.totalorder %s11, 0
    %p31 = por %p29, %p30
    %p32 = scmp.ne.s32.totalorder %s21, %s24
    %p33 = scmp.eq.s32.totalorder %s16, 1
    %p34 = por %p32, %p33
    %p35 = scmp.ne.s32.totalorder %s24, %s25
    %p36 = scmp.eq.s32.totalorder %s16, 0
    %p37 = por %p35, %p36
    %p38 = scmp.ne.s32.totalorder %s24, %s25
    %p39 = scmp.eq.s32.totalorder %s17, 1
    %p40 = por %p38, %p39
    %p42 = scmp.ne.s32.totalorder %s25, %s41
    %p43 = scmp.eq.s32.totalorder %s17, 0
    %p44 = por %p42, %p43
    %s46 = sadd.s32 %s45, 1
    %p49 = scmp.eq.s32.totalorder %s11, 1
    %p50 = scmp.ne.s32.totalorder %s45, %s47
    %p51 = scmp.eq.s32.totalorder %s11, 0
    %p52 = por %p50, %p51
    %p53 = scmp.ne.s32.totalorder %s45, %s47
    %p54 = scmp.eq.s32.totalorder %s16, 1
    %p55 = por %p53, %p54
    %p56 = scmp.ne.s32.totalorder %s47, %s48
    %p57 = scmp.eq.s32.totalorder %s16, 0
    %p58 = por %p56, %p57
    %p59 = scmp.ne.s32.totalorder %s47, %s48
    %p60 = scmp.eq.s32.totalorder %s17, 1
    %p61 = por %p59, %p60
    %p63 = scmp.ne.s32.totalorder %s48, %s62
    %p64 = scmp.eq.s32.totalorder %s17, 0
    %p65 = por %p63, %p64
    %s67 = sadd.s32 %s66, 1
    %p70 = scmp.eq.s32.totalorder %s11, 1
    %p71 = scmp.ne.s32.totalorder %s66, %s68
    %p72 = scmp.eq.s32.totalorder %s11, 0
    %p73 = por %p71, %p72
    %p74 = scmp.ne.s32.totalorder %s66, %s68
    %p75 = scmp.eq.s32.totalorder %s16, 1
    %p76 = por %p74, %p75
    %p77 = scmp.ne.s32.totalorder %s68, %s69
    %p78 = scmp.eq.s32.totalorder %s16, 0
    %p79 = por %p77, %p78
    %p80 = scmp.ne.s32.totalorder %s68, %s69
    %p81 = scmp.eq.s32.totalorder %s17, 1
    %p82 = por %p80, %p81
    %p84 = scmp.ne.s32.totalorder %s69, %s83
    %p85 = scmp.eq.s32.totalorder %s17, 0
    %p86 = por %p84, %p85
    %s88 = sadd.s32 %s87, 1
    %p91 = scmp.eq.s32.totalorder %s11, 1
    %p92 = scmp.ne.s32.totalorder %s87, %s89
    %p93 = scmp.eq.s32.totalorder %s11, 0
    %p94 = por %p92, %p93
    %p95 = scmp.ne.s32.totalorder %s87, %s89
    %p96 = scmp.eq.s32.totalorder %s16, 1
    %p97 = por %p95, %p96
    %p98 = scmp.ne.s32.totalorder %s89, %s90
    %p99 = scmp.eq.s32.totalorder %s16, 0
    %p100 = por %p98, %p99
    %p101 = scmp.ne.s32.totalorder %s89, %s90
    %p102 = scmp.eq.s32.totalorder %s17, 1
    %p103 = por %p101, %p102
    %p105 = scmp.ne.s32.totalorder %s90, %s104
    %p106 = scmp.eq.s32.totalorder %s17, 0
    %p107 = por %p105, %p106
    %s109 = sadd.s32 %s108, 1
    %p112 = scmp.eq.s32.totalorder %s11, 1
    %p113 = scmp.ne.s32.totalorder %s108, %s110
    %p114 = scmp.eq.s32.totalorder %s11, 0
    %p115 = por %p113, %p114
    %p116 = scmp.ne.s32.totalorder %s108, %s110
    %p117 = scmp.eq.s32.totalorder %s16, 1
    %p118 = por %p116, %p117
    %p119 = scmp.ne.s32.totalorder %s110, %s111
    %p120 = scmp.eq.s32.totalorder %s16, 0
    %p121 = por %p119, %p120
    %p122 = scmp.ne.s32.totalorder %s110, %s111
    %p123 = scmp.eq.s32.totalorder %s17, 1
    %p124 = por %p122, %p123
    %p126 = scmp.ne.s32.totalorder %s111, %s125
    %p127 = scmp.eq.s32.totalorder %s17, 0
    %p128 = por %p126, %p127
    %s129 = ssub.s32 %s11, %s18
    %p130 = scmp.eq.s32.totalorder %s129, 0
    %s132 = sadd.s32 %s131, 1
    %s133 = scalar_select %p130, %s131, %s132
    %p136 = pneg %p130
    %p137 = scmp.eq.s32.totalorder %s11, 1
    %p138 = por %p136, %p137
    %p139 = scmp.ne.s32.totalorder %s131, %s134
    %p140 = scmp.eq.s32.totalorder %s11, 0
    %p141 = por %p139, %p140
    %p142 = scmp.ne.s32.totalorder %s131, %s134
    %p143 = scmp.eq.s32.totalorder %s16, 1
    %p144 = por %p142, %p143
    %p145 = scmp.ne.s32.totalorder %s134, %s135
    %p146 = scmp.eq.s32.totalorder %s16, 0
    %p147 = por %p145, %p146
    %p148 = scmp.ne.s32.totalorder %s134, %s135
    %p149 = scmp.eq.s32.totalorder %s17, 1
    %p150 = por %p148, %p149
    %p152 = scmp.ne.s32.totalorder %s135, %s151
    %p153 = scmp.eq.s32.totalorder %s17, 0
    %p154 = por %p152, %p153
    %p155 = scmp.le.s32.totalorder 1, %s11
    %p156 = scmp.lt.s32.totalorder %s11, 3
    %p157 = pnand %p155, %p156
    %p158 = pneg %p157
    // Predicated region
    $region9: #{tpu_custom_call.1} parent=5 // pred_check
      _
    $region10: #{tpu_custom_call.1} parent=5 // pred_check_branch
      %160 = sbr.rel (%p157) target = $region12
    $region11: #{tpu_custom_call.1} parent=5 // pred_region
      %s161 = ssub.s32 %s11, 1
      // Predicated region
      $region13: #{tpu_custom_call.1} parent=11 // pred_check
        %p162 = pneg %p58
      $region14: #{tpu_custom_call.1} parent=11 // pred_check_branch
        %164 = sbr.rel (%p162) target = $region16
      $region15: #{tpu_custom_call.1} parent=11 // pred_region
        _
      $region16: #{tpu_custom_call.1} parent=11 // pred_fallthru
        _
      // Predicated region
      $region17: #{tpu_custom_call.1} parent=11 // pred_check
        %p165 = pneg %p79
      $region18: #{tpu_custom_call.1} parent=11 // pred_check_branch
        %167 = sbr.rel (%p165) target = $region20
      $region19: #{tpu_custom_call.1} parent=11 // pred_region
        _
      $region20: #{tpu_custom_call.1} parent=11 // pred_fallthru
        _
      // Predicated region
      $region21: #{tpu_custom_call.1} parent=11 // pred_check
        %p168 = pneg %p100
      $region22: #{tpu_custom_call.1} parent=11 // pred_check_branch
        %170 = sbr.rel (%p168) target = $region24
      $region23: #{tpu_custom_call.1} parent=11 // pred_region
        _
      $region24: #{tpu_custom_call.1} parent=11 // pred_fallthru
        _
      // Predicated region
      $region25: #{tpu_custom_call.1} parent=11 // pred_check
        %p171 = pneg %p121
      $region26: #{tpu_custom_call.1} parent=11 // pred_check_branch
        %173 = sbr.rel (%p171) target = $region28
      $region27: #{tpu_custom_call.1} parent=11 // pred_region
        _
      $region28: #{tpu_custom_call.1} parent=11 // pred_fallthru
        _
    $region12: #{tpu_custom_call.1} parent=5 // pred_fallthru
      _
    %p174 = scmp.lt.s32.totalorder %s11, 2
    // Predicated region
    $region29: #{tpu_custom_call.1} parent=5 // pred_check
      %p175 = pneg %p174
    $region30: #{tpu_custom_call.1} parent=5 // pred_check_branch
      %177 = sbr.rel (%p175) target = $region32
    $region31: #{tpu_custom_call.1} parent=5 // pred_region
      // Predicated region
      $region33: #{tpu_custom_call.1} parent=31 // pred_check
        %p178 = pneg %p31
      $region34: #{tpu_custom_call.1} parent=31 // pred_check_branch
        %180 = sbr.rel (%p178) target = $region36
      $region35: #{tpu_custom_call.1} parent=31 // pred_region
        %s181 = smul.u32 69, %s11
        %p182 = scmp.lt.s32.totalorder %s181, 137
        %s183 = scalar_select %p182, %s181, 137
        %s184 = smul.addr %s183, 3
        %s185 = smul.addr %s184, 8
        %s186 = scalar_lea.vmem %s0, %s185
        %s187 = smul.u32 69, %s11
      $region36: #{tpu_custom_call.1} parent=31 // pred_fallthru
        _
    $region32: #{tpu_custom_call.1} parent=5 // pred_fallthru
      _
    %p188 = scmp.le.s32.totalorder 1, %s11
    %p189 = scmp.lt.s32.totalorder %s11, 3
    %p190 = pnand %p188, %p189
    %p191 = pneg %p190
    // Predicated region
    $region37: #{tpu_custom_call.1} parent=5 // pred_check
      _
    $region38: #{tpu_custom_call.1} parent=5 // pred_check_branch
      %193 = sbr.rel (%p190) target = $region40
    $region39: #{tpu_custom_call.1} parent=5 // pred_region
      %s194 = ssub.s32 %s11, 1
      %s195 = smul.u32 69, %s16
      %p196 = scmp.lt.s32.totalorder %s195, 137
      %s197 = scalar_select %p196, %s195, 137
      %s198 = smul.addr %s197, 3
      %s199 = smul.addr %s198, 8
      %s200 = scalar_lea.vmem %s0, %s199
      %p201 = pneg %p37
      %p202 = pneg %p34
      %p203 = pneg %p58
      %p204 = pneg %p55
      %p205 = pneg %p79
      %p206 = pneg %p76
      %p207 = pneg %p100
      %p208 = pneg %p97
      %p209 = pneg %p121
      %p210 = pneg %p118
      %p211 = pneg %p147
      %p212 = pneg %p144
      %s213 = smul.u32 69, %s16
      %p214 = scmp.lt.s32.totalorder %s213, 137
      %s215 = scalar_select %p214, %s213, 137
      %s216 = smul.addr %s215, 8
      %s217 = scalar_lea.vmem %s5, %s216
      %s218 = smul.u32 69, %s16
      %p219 = scmp.lt.s32.totalorder %s218, 137
      %s220 = scalar_select %p219, %s218, 137
      %s221 = smul.addr %s220, 3
      %s222 = smul.addr %s221, 8
      %s223 = scalar_lea.vmem %s0, %s222
      %s224 = smul.u32 69, %s16
      %s225 = smul.u32 69, %s16
      %p226 = scmp.lt.s32.totalorder %s225, 137
      %s227 = scalar_select %p226, %s225, 137
      %s228 = smul.addr %s227, 8
      %s229 = scalar_lea.vmem %s5, %s228
      %s230 = smul.u32 69, %s16
      %v232 = vld [vmem:[%s223] sm:$0xff]
      %v233 = vld [vmem:[%s223 + $0x8] sm:$0xff]
      %v234 = vld [vmem:[%s223 + $0x10] sm:$0xff]
      %v235 = vld [vmem:[%s223 + $0x18] sm:$0xff]
      %v236 = vld [vmem:[%s223 + $0x20] sm:$0xff]
      %v237 = vld [vmem:[%s223 + $0x28] sm:$0xff]
      %v238 = vld [vmem:[%s223 + $0x30] sm:$0xff]
      %v239 = vld [vmem:[%s223 + $0x38] sm:$0xff]
      %v240 = vld [vmem:[%s223 + $0x40] sm:$0xff]
      %v241 = vld [vmem:[%s223 + $0x48] sm:$0xff]
      %v242 = vld [vmem:[%s223 + $0x50] sm:$0xff]
      %v243 = vld [vmem:[%s223 + $0x58] sm:$0xff]
      %v244 = vld [vmem:[%s223 + $0x60] sm:$0xff]
      %v245 = vld [vmem:[%s223 + $0x68] sm:$0xff]
      %v246 = vld [vmem:[%s223 + $0x70] sm:$0xff]
      %v247 = vld [vmem:[%s223 + $0x78] sm:$0xff]
      %v248 = vld [vmem:[%s223 + $0x80] sm:$0xff]
      %v249 = vld [vmem:[%s223 + $0x88] sm:$0xff]
      %v250 = vld [vmem:[%s223 + $0x90] sm:$0xff]
      %v251 = vld [vmem:[%s223 + $0x98] sm:$0xff]
      %v252 = vld [vmem:[%s223 + $0xa0] sm:$0xff]
      %v253 = vld [vmem:[%s223 + $0xa8] sm:$0xff]
      %v254 = vld [vmem:[%s223 + $0xb0] sm:$0xff]
      %v255 = vld [vmem:[%s223 + $0xb8] sm:$0xff]
      %v256 = vld [vmem:[%s223 + $0xc0] sm:$0xff]
      %v257 = vld [vmem:[%s223 + $0xc8] sm:$0xff]
      %v258 = vld [vmem:[%s223 + $0xd0] sm:$0xff]
      %v259 = vld [vmem:[%s223 + $0xd8] sm:$0xff]
      %v260 = vld [vmem:[%s223 + $0xe0] sm:$0xff]
      %v261 = vld [vmem:[%s223 + $0xe8] sm:$0xff]
      %v262 = vld [vmem:[%s223 + $0xf0] sm:$0xff]
      %v263 = vld [vmem:[%s223 + $0xf8] sm:$0xff]
      %v264 = vld [vmem:[%s223 + $0x100] sm:$0xff]
      %v265 = vld [vmem:[%s223 + $0x108] sm:$0xff]
      %v266 = vld [vmem:[%s223 + $0x110] sm:$0xff]
      %v267 = vld [vmem:[%s223 + $0x118] sm:$0xff]
      %v268 = vld [vmem:[%s223 + $0x120] sm:$0xff]
      %v269 = vld [vmem:[%s223 + $0x128] sm:$0xff]
      %v270 = vld [vmem:[%s223 + $0x130] sm:$0xff]
      %v271 = vld [vmem:[%s223 + $0x138] sm:$0xff]
      %v272 = vld [vmem:[%s223 + $0x140] sm:$0xff]
      %v273 = vld [vmem:[%s223 + $0x148] sm:$0xff]
      %v274 = vld [vmem:[%s223 + $0x150] sm:$0xff]
      %v275 = vld [vmem:[%s223 + $0x158] sm:$0xff]
      %v276 = vld [vmem:[%s223 + $0x160] sm:$0xff]
      %v277 = vld [vmem:[%s223 + $0x168] sm:$0xff]
      %v278 = vld [vmem:[%s223 + $0x170] sm:$0xff]
      %v279 = vld [vmem:[%s223 + $0x178] sm:$0xff]
      %v280 = vld [vmem:[%s223 + $0x180] sm:$0xff]
      %v281 = vld [vmem:[%s223 + $0x188] sm:$0xff]
      %v282 = vld [vmem:[%s223 + $0x190] sm:$0xff]
      %v283 = vld [vmem:[%s223 + $0x198] sm:$0xff]
      %v284 = vld [vmem:[%s223 + $0x1a0] sm:$0xff]
      %v285 = vld [vmem:[%s223 + $0x1a8] sm:$0xff]
      %v286 = vld [vmem:[%s223 + $0x1b0] sm:$0xff]
      %v287 = vld [vmem:[%s223 + $0x1b8] sm:$0xff]
      %v288 = vld [vmem:[%s223 + $0x1c0] sm:$0xff]
      %v289 = vld [vmem:[%s223 + $0x1c8] sm:$0xff]
      %v290 = vld [vmem:[%s223 + $0x1d0] sm:$0xff]
      %v291 = vld [vmem:[%s223 + $0x1d8] sm:$0xff]
      %v292 = vld [vmem:[%s223 + $0x1e0] sm:$0xff]
      %v293 = vld [vmem:[%s223 + $0x1e8] sm:$0xff]
      %v294 = vld [vmem:[%s223 + $0x1f0] sm:$0xff]
      %v295 = vld [vmem:[%s223 + $0x1f8] sm:$0xff]
      %v296 = vld [vmem:[%s223 + $0x200] sm:$0xff]
      %v297 = vld [vmem:[%s223 + $0x208] sm:$0xff]
      %v298 = vld [vmem:[%s223 + $0x210] sm:$0xff]
      %v299 = vld [vmem:[%s223 + $0x218] sm:$0xff]
      %v300 = vld [vmem:[%s223 + $0x220] sm:$0xff]
      %v301 = vld [vmem:[%s223 + $0x228] sm:$0xff]
      %v302 = vld [vmem:[%s223 + $0x230] sm:$0xff]
      %v303 = vld [vmem:[%s223 + $0x238] sm:$0xff]
      %v304 = vld [vmem:[%s223 + $0x240] sm:$0xff]
      %v305 = vld [vmem:[%s223 + $0x248] sm:$0xff]
      %v306 = vld [vmem:[%s223 + $0x250] sm:$0xff]
      %v307 = vld [vmem:[%s223 + $0x258] sm:$0xff]
      %v308 = vld [vmem:[%s223 + $0x260] sm:$0xff]
      %v309 = vld [vmem:[%s223 + $0x268] sm:$0xff]
      %v310 = vld [vmem:[%s223 + $0x270] sm:$0xff]
      %v311 = vld [vmem:[%s223 + $0x278] sm:$0xff]
      %v312 = vld [vmem:[%s223 + $0x280] sm:$0xff]
      %v313 = vld [vmem:[%s223 + $0x288] sm:$0xff]
      %v314 = vld [vmem:[%s223 + $0x290] sm:$0xff]
      %v315 = vld [vmem:[%s223 + $0x298] sm:$0xff]
      %v316 = vld [vmem:[%s223 + $0x2a0] sm:$0xff]
      %v317 = vld [vmem:[%s223 + $0x2a8] sm:$0xff]
      %v318 = vld [vmem:[%s223 + $0x2b0] sm:$0xff]
      %v319 = vld [vmem:[%s223 + $0x2b8] sm:$0xff]
      %v320 = vld [vmem:[%s223 + $0x2c0] sm:$0xff]
      %v321 = vld [vmem:[%s223 + $0x2c8] sm:$0xff]
      %v322 = vld [vmem:[%s223 + $0x2d0] sm:$0xff]
      %v323 = vld [vmem:[%s223 + $0x2d8] sm:$0xff]
      %v324 = vld [vmem:[%s223 + $0x2e0] sm:$0xff]
      %v325 = vld [vmem:[%s223 + $0x2e8] sm:$0xff]
      %v326 = vld [vmem:[%s223 + $0x2f0] sm:$0xff]
      %v327 = vld [vmem:[%s223 + $0x2f8] sm:$0xff]
      %v328 = vld [vmem:[%s223 + $0x300] sm:$0xff]
      %v329 = vld [vmem:[%s223 + $0x308] sm:$0xff]
      %v330 = vld [vmem:[%s223 + $0x310] sm:$0xff]
      %v331 = vld [vmem:[%s223 + $0x318] sm:$0xff]
      %v332 = vld [vmem:[%s223 + $0x320] sm:$0xff]
      %v333 = vld [vmem:[%s223 + $0x328] sm:$0xff]
      %v334 = vld [vmem:[%s223 + $0x330] sm:$0xff]
      %v335 = vld [vmem:[%s223 + $0x338] sm:$0xff]
      %v336 = vld [vmem:[%s223 + $0x340] sm:$0xff]
      %v337 = vld [vmem:[%s223 + $0x348] sm:$0xff]
      %v338 = vld [vmem:[%s223 + $0x350] sm:$0xff]
      %v339 = vld [vmem:[%s223 + $0x358] sm:$0xff]
      %v340 = vld [vmem:[%s223 + $0x360] sm:$0xff]
      %v341 = vld [vmem:[%s223 + $0x368] sm:$0xff]
      %v342 = vld [vmem:[%s223 + $0x370] sm:$0xff]
      %v343 = vld [vmem:[%s223 + $0x378] sm:$0xff]
      %v344 = vld [vmem:[%s223 + $0x380] sm:$0xff]
      %v345 = vld [vmem:[%s223 + $0x388] sm:$0xff]
      %v346 = vld [vmem:[%s223 + $0x390] sm:$0xff]
      %v347 = vld [vmem:[%s223 + $0x398] sm:$0xff]
      %v348 = vld [vmem:[%s223 + $0x3a0] sm:$0xff]
      %v349 = vld [vmem:[%s223 + $0x3a8] sm:$0xff]
      %v350 = vld [vmem:[%s223 + $0x3b0] sm:$0xff]
      %v351 = vld [vmem:[%s223 + $0x3b8] sm:$0xff]
      %v352 = vld [vmem:[%s223 + $0x3c0] sm:$0xff]
      %v353 = vld [vmem:[%s223 + $0x3c8] sm:$0xff]
      %v354 = vld [vmem:[%s223 + $0x3d0] sm:$0xff]
      %v355 = vld [vmem:[%s223 + $0x3d8] sm:$0xff]
      %v356 = vld [vmem:[%s223 + $0x3e0] sm:$0xff]
      %v357 = vld [vmem:[%s223 + $0x3e8] sm:$0xff]
      %v358 = vld [vmem:[%s223 + $0x3f0] sm:$0xff]
      %v359 = vld [vmem:[%s223 + $0x3f8] sm:$0xff]
      %v360 = vld [vmem:[%s223 + $0x400] sm:$0xff]
      %v361 = vld [vmem:[%s223 + $0x408] sm:$0xff]
      %v362 = vld [vmem:[%s223 + $0x410] sm:$0xff]
      %v363 = vld [vmem:[%s223 + $0x418] sm:$0xff]
      %v364 = vld [vmem:[%s223 + $0x420] sm:$0xff]
      %v365 = vld [vmem:[%s223 + $0x428] sm:$0xff]
      %v366 = vld [vmem:[%s223 + $0x430] sm:$0xff]
      %v367 = vld [vmem:[%s223 + $0x438] sm:$0xff]
      %v368 = vld [vmem:[%s223 + $0x440] sm:$0xff]
      %v369 = vld [vmem:[%s223 + $0x448] sm:$0xff]
      %v370 = vld [vmem:[%s223 + $0x450] sm:$0xff]
      %v371 = vld [vmem:[%s223 + $0x458] sm:$0xff]
      %v372 = vld [vmem:[%s223 + $0x460] sm:$0xff]
      %v373 = vld [vmem:[%s223 + $0x468] sm:$0xff]
      %v374 = vld [vmem:[%s223 + $0x470] sm:$0xff]
      %v375 = vld [vmem:[%s223 + $0x478] sm:$0xff]
      %v376 = vld [vmem:[%s223 + $0x480] sm:$0xff]
      %v377 = vld [vmem:[%s223 + $0x488] sm:$0xff]
      %v378 = vld [vmem:[%s223 + $0x490] sm:$0xff]
      %v379 = vld [vmem:[%s223 + $0x498] sm:$0xff]
      %v380 = vld [vmem:[%s223 + $0x4a0] sm:$0xff]
      %v381 = vld [vmem:[%s223 + $0x4a8] sm:$0xff]
      %v382 = vld [vmem:[%s223 + $0x4b0] sm:$0xff]
      %v383 = vld [vmem:[%s223 + $0x4b8] sm:$0xff]
      %v384 = vld [vmem:[%s223 + $0x4c0] sm:$0xff]
      %v385 = vld [vmem:[%s223 + $0x4c8] sm:$0xff]
      %v386 = vld [vmem:[%s223 + $0x4d0] sm:$0xff]
      %v387 = vld [vmem:[%s223 + $0x4d8] sm:$0xff]
      %v388 = vld [vmem:[%s223 + $0x4e0] sm:$0xff]
      %v389 = vld [vmem:[%s223 + $0x4e8] sm:$0xff]
      %v390 = vld [vmem:[%s223 + $0x4f0] sm:$0xff]
      %v391 = vld [vmem:[%s223 + $0x4f8] sm:$0xff]
      %v392 = vld [vmem:[%s223 + $0x500] sm:$0xff]
      %v393 = vld [vmem:[%s223 + $0x508] sm:$0xff]
      %v394 = vld [vmem:[%s223 + $0x510] sm:$0xff]
      %v395 = vld [vmem:[%s223 + $0x518] sm:$0xff]
      %v396 = vld [vmem:[%s223 + $0x520] sm:$0xff]
      %v397 = vld [vmem:[%s223 + $0x528] sm:$0xff]
      %v398 = vld [vmem:[%s223 + $0x530] sm:$0xff]
      %v399 = vld [vmem:[%s223 + $0x538] sm:$0xff]
      %v400 = vld [vmem:[%s223 + $0x540] sm:$0xff]
      %v401 = vld [vmem:[%s223 + $0x548] sm:$0xff]
      %v402 = vld [vmem:[%s223 + $0x550] sm:$0xff]
      %v403 = vld [vmem:[%s223 + $0x558] sm:$0xff]
      %v404 = vld [vmem:[%s223 + $0x560] sm:$0xff]
      %v405 = vld [vmem:[%s223 + $0x568] sm:$0xff]
      %v406 = vld [vmem:[%s223 + $0x570] sm:$0xff]
      %v407 = vld [vmem:[%s223 + $0x578] sm:$0xff]
      %v408 = vld [vmem:[%s223 + $0x580] sm:$0xff]
      %v409 = vld [vmem:[%s223 + $0x588] sm:$0xff]
      %v410 = vld [vmem:[%s223 + $0x590] sm:$0xff]
      %v411 = vld [vmem:[%s223 + $0x598] sm:$0xff]
      %v412 = vld [vmem:[%s223 + $0x5a0] sm:$0xff]
      %v413 = vld [vmem:[%s223 + $0x5a8] sm:$0xff]
      %v414 = vld [vmem:[%s223 + $0x5b0] sm:$0xff]
      %v415 = vld [vmem:[%s223 + $0x5b8] sm:$0xff]
      %v416 = vld [vmem:[%s223 + $0x5c0] sm:$0xff]
      %v417 = vld [vmem:[%s223 + $0x5c8] sm:$0xff]
      %v418 = vld [vmem:[%s223 + $0x5d0] sm:$0xff]
      %v419 = vld [vmem:[%s223 + $0x5d8] sm:$0xff]
      %v420 = vld [vmem:[%s223 + $0x5e0] sm:$0xff]
      %v421 = vld [vmem:[%s223 + $0x5e8] sm:$0xff]
      %v422 = vld [vmem:[%s223 + $0x5f0] sm:$0xff]
      %v423 = vld [vmem:[%s223 + $0x5f8] sm:$0xff]
      %v424 = vld [vmem:[%s223 + $0x600] sm:$0xff]
      %v425 = vld [vmem:[%s223 + $0x608] sm:$0xff]
      %v426 = vld [vmem:[%s223 + $0x610] sm:$0xff]
      %v427 = vld [vmem:[%s223 + $0x618] sm:$0xff]
      %v428 = vld [vmem:[%s223 + $0x620] sm:$0xff]
      %v429 = vld [vmem:[%s223 + $0x628] sm:$0xff]
      %v430 = vld [vmem:[%s223 + $0x630] sm:$0xff]
      %v431 = vld [vmem:[%s223 + $0x638] sm:$0xff]
      %v432 = vld [vmem:[%s223 + $0x640] sm:$0xff]
      %v433 = vld [vmem:[%s223 + $0x648] sm:$0xff]
      %v434 = vld [vmem:[%s223 + $0x650] sm:$0xff]
      %v435 = vld [vmem:[%s223 + $0x658] sm:$0xff]
      %v436 = vld [vmem:[%s223 + $0x660] sm:$0xff]
      %v437 = vld [vmem:[%s223 + $0x668] sm:$0xff]
      %v438 = vld [vmem:[%s223 + $0x670] sm:$0xff]
      %v439 = vpack.c.bf16 %v235, %v232
      %v440 = vpack.c.bf16 %v236, %v233
      %v441 = vpack.c.bf16 %v237, %v234
      %v442 = vpack.c.bf16 %v241, %v238
      %v443 = vpack.c.bf16 %v242, %v239
      %v444 = vpack.c.bf16 %v243, %v240
      %v445 = vpack.c.bf16 %v247, %v244
      %v446 = vpack.c.bf16 %v248, %v245
      %v447 = vpack.c.bf16 %v249, %v246
      %v448 = vpack.c.bf16 %v253, %v250
      %v449 = vpack.c.bf16 %v254, %v251
      %v450 = vpack.c.bf16 %v255, %v252
      %v451 = vpack.c.bf16 %v259, %v256
      %v452 = vpack.c.bf16 %v260, %v257
      %v453 = vpack.c.bf16 %v261, %v258
      %v454 = vpack.c.bf16 %v265, %v262
      %v455 = vpack.c.bf16 %v266, %v263
      %v456 = vpack.c.bf16 %v267, %v264
      %v457 = vpack.c.bf16 %v271, %v268
      %v458 = vpack.c.bf16 %v272, %v269
      %v459 = vpack.c.bf16 %v273, %v270
      %v460 = vpack.c.bf16 %v277, %v274
      %v461 = vpack.c.bf16 %v278, %v275
      %v462 = vpack.c.bf16 %v279, %v276
      %v463 = vpack.c.bf16 %v283, %v280
      %v464 = vpack.c.bf16 %v284, %v281
      %v465 = vpack.c.bf16 %v285, %v282
      %v466 = vpack.c.bf16 %v289, %v286
      %v467 = vpack.c.bf16 %v290, %v287
      %v468 = vpack.c.bf16 %v291, %v288
      %v469 = vpack.c.bf16 %v295, %v292
      %v470 = vpack.c.bf16 %v296, %v293
      %v471 = vpack.c.bf16 %v297, %v294
      %v472 = vpack.c.bf16 %v301, %v298
      %v473 = vpack.c.bf16 %v302, %v299
      %v474 = vpack.c.bf16 %v303, %v300
      %v475 = vpack.c.bf16 %v307, %v304
      %v476 = vpack.c.bf16 %v308, %v305
      %v477 = vpack.c.bf16 %v309, %v306
      %v478 = vpack.c.bf16 %v313, %v310
      %v479 = vpack.c.bf16 %v314, %v311
      %v480 = vpack.c.bf16 %v315, %v312
      %v481 = vpack.c.bf16 %v319, %v316
      %v482 = vpack.c.bf16 %v320, %v317
      %v483 = vpack.c.bf16 %v321, %v318
      %v484 = vpack.c.bf16 %v325, %v322
      %v485 = vpack.c.bf16 %v326, %v323
      %v486 = vpack.c.bf16 %v327, %v324
      %v487 = vpack.c.bf16 %v331, %v328
      %v488 = vpack.c.bf16 %v332, %v329
      %v489 = vpack.c.bf16 %v333, %v330
      %v490 = vpack.c.bf16 %v337, %v334
      %v491 = vpack.c.bf16 %v338, %v335
      %v492 = vpack.c.bf16 %v339, %v336
      %v493 = vpack.c.bf16 %v343, %v340
      %v494 = vpack.c.bf16 %v344, %v341
      %v495 = vpack.c.bf16 %v345, %v342
      %v496 = vpack.c.bf16 %v349, %v346
      %v497 = vpack.c.bf16 %v350, %v347
      %v498 = vpack.c.bf16 %v351, %v348
      %v499 = vpack.c.bf16 %v355, %v352
      %v500 = vpack.c.bf16 %v356, %v353
      %v501 = vpack.c.bf16 %v357, %v354
      %v502 = vpack.c.bf16 %v361, %v358
      %v503 = vpack.c.bf16 %v362, %v359
      %v504 = vpack.c.bf16 %v363, %v360
      %v505 = vpack.c.bf16 %v367, %v364
      %v506 = vpack.c.bf16 %v368, %v365
      %v507 = vpack.c.bf16 %v369, %v366
      %v508 = vpack.c.bf16 %v373, %v370
      %v509 = vpack.c.bf16 %v374, %v371
      %v510 = vpack.c.bf16 %v375, %v372
      %v511 = vpack.c.bf16 %v379, %v376
      %v512 = vpack.c.bf16 %v380, %v377
      %v513 = vpack.c.bf16 %v381, %v378
      %v514 = vpack.c.bf16 %v385, %v382
      %v515 = vpack.c.bf16 %v386, %v383
      %v516 = vpack.c.bf16 %v387, %v384
      %v517 = vpack.c.bf16 %v391, %v388
      %v518 = vpack.c.bf16 %v392, %v389
      %v519 = vpack.c.bf16 %v393, %v390
      %v520 = vpack.c.bf16 %v397, %v394
      %v521 = vpack.c.bf16 %v398, %v395
      %v522 = vpack.c.bf16 %v399, %v396
      %v523 = vpack.c.bf16 %v403, %v400
      %v524 = vpack.c.bf16 %v404, %v401
      %v525 = vpack.c.bf16 %v405, %v402
      %v526 = vpack.c.bf16 %v409, %v406
      %v527 = vpack.c.bf16 %v410, %v407
      %v528 = vpack.c.bf16 %v411, %v408
      %v529 = vpack.c.bf16 %v415, %v412
      %v530 = vpack.c.bf16 %v416, %v413
      %v531 = vpack.c.bf16 %v417, %v414
      %v532 = vpack.c.bf16 %v421, %v418
      %v533 = vpack.c.bf16 %v422, %v419
      %v534 = vpack.c.bf16 %v423, %v420
      %v535 = vpack.c.bf16 %v427, %v424
      %v536 = vpack.c.bf16 %v428, %v425
      %v537 = vpack.c.bf16 %v429, %v426
      %v538 = vpack.c.bf16 %v433, %v430
      %v539 = vpack.c.bf16 %v434, %v431
      %v540 = vpack.c.bf16 %v435, %v432
      %v541 = vpack.c.bf16 %v436, %v436
      %v542 = vpack.c.bf16 %v437, %v437
      %v543 = vpack.c.bf16 %v438, %v438
      %v544 = vld [vmem:[%s1] sm:$0xf]
      %v545 = vld [vmem:[%s1 + $0x4] sm:$0xf]
      %v546 = vld [vmem:[%s1 + $0x8] sm:$0xf]
      %v547 = vld [vmem:[%s1 + $0xc] sm:$0xf]
      %v548 = vld [vmem:[%s1 + $0x10] sm:$0xf]
      %v549 = vld [vmem:[%s1 + $0x14] sm:$0xf]
      %v550 = vld [vmem:[%s1 + $0x18] sm:$0xf]
      %v551 = vld [vmem:[%s1 + $0x1c] sm:$0xf]
      %v552 = vld [vmem:[%s1 + $0x20] sm:$0xf]
      %v553 = vld [vmem:[%s1 + $0x24] sm:$0xf]
      %v554 = vld [vmem:[%s1 + $0x28] sm:$0xf]
      %v555 = vld [vmem:[%s1 + $0x2c] sm:$0xf]
      %v556 = vld [vmem:[%s1 + $0x30] sm:$0xf]
      %v557 = vld [vmem:[%s1 + $0x34] sm:$0xf]
      %v558 = vld [vmem:[%s1 + $0x38] sm:$0xf]
      %v559 = vld [vmem:[%s1 + $0x3c] sm:$0xf]
      %v560 = vld [vmem:[%s1 + $0x40] sm:$0xf]
      %v561 = vld [vmem:[%s1 + $0x44] sm:$0xf]
      %v562 = vld [vmem:[%s1 + $0x48] sm:$0xf]
      %v563 = vld [vmem:[%s1 + $0x4c] sm:$0xf]
      %v564 = vld [vmem:[%s1 + $0x50] sm:$0xf]
      %v565 = vld [vmem:[%s1 + $0x54] sm:$0xf]
      %v566 = vld [vmem:[%s1 + $0x58] sm:$0xf]
      %v567 = vld [vmem:[%s1 + $0x5c] sm:$0xf]
      %v568 = vld [vmem:[%s1 + $0x60] sm:$0xf]
      %v569 = vld [vmem:[%s1 + $0x64] sm:$0xf]
      %v570 = vld [vmem:[%s1 + $0x68] sm:$0xf]
      %v571 = vld [vmem:[%s1 + $0x6c] sm:$0xf]
      %v572 = vld [vmem:[%s1 + $0x70] sm:$0xf]
      %v573 = vld [vmem:[%s1 + $0x74] sm:$0xf]
      %v574 = vld [vmem:[%s1 + $0x78] sm:$0xf]
      %v575 = vld [vmem:[%s1 + $0x7c] sm:$0xf]
      %v576 = vld [vmem:[%s1 + $0x80] sm:$0xf]
      %v577 = vld [vmem:[%s1 + $0x84] sm:$0x7]
      %v578 = vld [vmem:[%s2] sm:$0x1]
      %v580 = vperm.slane %v578, 0
      %v616 = vunpack.c.l.b16 %v544
      %v617 = vunpack.c.l.b16 %v545
      %v618 = vunpack.c.l.b16 %v546
      %v619 = vunpack.c.l.b16 %v547
      %v620 = vunpack.c.l.b16 %v548
      %v621 = vunpack.c.l.b16 %v549
      %v622 = vunpack.c.l.b16 %v550
      %v623 = vunpack.c.l.b16 %v551
      %v624 = vunpack.c.l.b16 %v552
      %v625 = vunpack.c.l.b16 %v553
      %v626 = vunpack.c.l.b16 %v554
      %v627 = vunpack.c.l.b16 %v555
      %v628 = vunpack.c.l.b16 %v556
      %v629 = vunpack.c.l.b16 %v557
      %v630 = vunpack.c.l.b16 %v558
      %v631 = vunpack.c.l.b16 %v559
      %v632 = vunpack.c.l.b16 %v560
      %v633 = vunpack.c.l.b16 %v561
      %v634 = vunpack.c.l.b16 %v562
      %v635 = vunpack.c.l.b16 %v563
      %v636 = vunpack.c.l.b16 %v564
      %v637 = vunpack.c.l.b16 %v565
      %v638 = vunpack.c.l.b16 %v566
      %v639 = vunpack.c.l.b16 %v567
      %v640 = vunpack.c.l.b16 %v568
      %v641 = vunpack.c.l.b16 %v569
      %v642 = vunpack.c.l.b16 %v570
      %v643 = vunpack.c.l.b16 %v571
      %v644 = vunpack.c.l.b16 %v572
      %v645 = vunpack.c.l.b16 %v573
      %v646 = vunpack.c.l.b16 %v574
      %v647 = vunpack.c.l.b16 %v575
      %v648 = vunpack.c.l.b16 %v576
      %v649 = vunpack.c.l.b16 %v577
      %v650 = vpack.c.b16 %v617, %v616
      %v651 = vpack.c.b16 %v619, %v618
      %v652 = vpack.c.b16 %v621, %v620
      %v653 = vpack.c.b16 %v623, %v622
      %v654 = vpack.c.b16 %v625, %v624
      %v655 = vpack.c.b16 %v627, %v626
      %v656 = vpack.c.b16 %v629, %v628
      %v657 = vpack.c.b16 %v631, %v630
      %v658 = vpack.c.b16 %v633, %v632
      %v659 = vpack.c.b16 %v635, %v634
      %v660 = vpack.c.b16 %v637, %v636
      %v661 = vpack.c.b16 %v639, %v638
      %v662 = vpack.c.b16 %v641, %v640
      %v663 = vpack.c.b16 %v643, %v642
      %v664 = vpack.c.b16 %v645, %v644
      %v665 = vpack.c.b16 %v647, %v646
      %v666 = vpack.c.b16 %v649, %v648
      %vm683 = vcmask 113664
      %v685 = vsel %vm683, %v441, 0
      %v688 = vsel %vm683, %v444, 0
      %v691 = vsel %vm683, %v447, 0
      %v694 = vsel %vm683, %v450, 0
      %v697 = vsel %vm683, %v453, 0
      %v700 = vsel %vm683, %v456, 0
      %v703 = vsel %vm683, %v459, 0
      %v706 = vsel %vm683, %v462, 0
      %v709 = vsel %vm683, %v465, 0
      %v712 = vsel %vm683, %v468, 0
      %v715 = vsel %vm683, %v471, 0
      %v718 = vsel %vm683, %v474, 0
      %v721 = vsel %vm683, %v477, 0
      %v724 = vsel %vm683, %v480, 0
      %v727 = vsel %vm683, %v483, 0
      %v730 = vsel %vm683, %v486, 0
      %v733 = vsel %vm683, %v489, 0
      %v736 = vsel %vm683, %v492, 0
      %v739 = vsel %vm683, %v495, 0
      %v742 = vsel %vm683, %v498, 0
      %v745 = vsel %vm683, %v501, 0
      %v748 = vsel %vm683, %v504, 0
      %v751 = vsel %vm683, %v507, 0
      %v754 = vsel %vm683, %v510, 0
      %v757 = vsel %vm683, %v513, 0
      %v760 = vsel %vm683, %v516, 0
      %v763 = vsel %vm683, %v519, 0
      %v766 = vsel %vm683, %v522, 0
      %v769 = vsel %vm683, %v525, 0
      %v772 = vsel %vm683, %v528, 0
      %v775 = vsel %vm683, %v531, 0
      %v778 = vsel %vm683, %v534, 0
      %v781 = vsel %vm683, %v537, 0
      %v784 = vsel %vm683, %v540, 0
      %v787 = vsel %vm683, %v543, 0
      %vm789 = vcmask 1046528
      %v791 = vsel %vm789, %v666, 0
      %793 = vmatpush.bf16.msra.mxu0 %v657
      %794 = vmatpush.bf16.msra.mxu0 %v656
      %795 = vmatpush.bf16.msra.mxu0 %v655
      %796 = vmatpush.bf16.msra.mxu0 %v654
      %797 = vmatpush.bf16.msra.mxu0 %v653
      %798 = vmatpush.bf16.msra.mxu0 %v652
      %799 = vmatpush.bf16.msra.mxu0 %v651
      %800 = vmatpush.bf16.msra.mxu0 %v650
      %801 = vmatmul.bf16.gmra.mxu0 %v439
      %v802 = vpop.f32.mrf.mxu0
      %v803 = vadd.f32 %v580, %v802
      %v804 = vpop.f32.mrf.mxu0
      %v805 = vadd.f32 %v580, %v804
      %806 = vmatmul.bf16.gmra.mxu0 %v442
      %v807 = vpop.f32.mrf.mxu0
      %v808 = vadd.f32 %v580, %v807
      %v809 = vpop.f32.mrf.mxu0
      %v810 = vadd.f32 %v580, %v809
      %811 = vmatmul.bf16.gmra.mxu0 %v445
      %v812 = vpop.f32.mrf.mxu0
      %v813 = vadd.f32 %v580, %v812
      %v814 = vpop.f32.mrf.mxu0
      %v815 = vadd.f32 %v580, %v814
      %816 = vmatmul.bf16.gmra.mxu0 %v448
      %v817 = vpop.f32.mrf.mxu0
      %v818 = vadd.f32 %v580, %v817
      %v819 = vpop.f32.mrf.mxu0
      %v820 = vadd.f32 %v580, %v819
      %821 = vmatmul.bf16.gmra.mxu0 %v451
      %v822 = vpop.f32.mrf.mxu0
      %v823 = vadd.f32 %v580, %v822
      %v824 = vpop.f32.mrf.mxu0
      %v825 = vadd.f32 %v580, %v824
      %826 = vmatmul.bf16.gmra.mxu0 %v454
      %v827 = vpop.f32.mrf.mxu0
      %v828 = vadd.f32 %v580, %v827
      %v829 = vpop.f32.mrf.mxu0
      %v830 = vadd.f32 %v580, %v829
      %831 = vmatmul.bf16.gmra.mxu0 %v457
      %v832 = vpop.f32.mrf.mxu0
      %v833 = vadd.f32 %v580, %v832
      %v834 = vpop.f32.mrf.mxu0
      %v835 = vadd.f32 %v580, %v834
      %836 = vmatmul.bf16.gmra.mxu0 %v460
      %v837 = vpop.f32.mrf.mxu0
      %v838 = vadd.f32 %v580, %v837
      %v839 = vpop.f32.mrf.mxu0
      %v840 = vadd.f32 %v580, %v839
      %841 = vmatmul.bf16.gmra.mxu0 %v463
      %v842 = vpop.f32.mrf.mxu0
      %v843 = vadd.f32 %v580, %v842
      %v844 = vpop.f32.mrf.mxu0
      %v845 = vadd.f32 %v580, %v844
      %846 = vmatmul.bf16.gmra.mxu0 %v466
      %v847 = vpop.f32.mrf.mxu0
      %v848 = vadd.f32 %v580, %v847
      %v849 = vpop.f32.mrf.mxu0
      %v850 = vadd.f32 %v580, %v849
      %851 = vmatmul.bf16.gmra.mxu0 %v469
      %v852 = vpop.f32.mrf.mxu0
      %v853 = vadd.f32 %v580, %v852
      %v854 = vpop.f32.mrf.mxu0
      %v855 = vadd.f32 %v580, %v854
      %856 = vmatmul.bf16.gmra.mxu0 %v472
      %v857 = vpop.f32.mrf.mxu0
      %v858 = vadd.f32 %v580, %v857
      %v859 = vpop.f32.mrf.mxu0
      %v860 = vadd.f32 %v580, %v859
      %861 = vmatmul.bf16.gmra.mxu0 %v475
      %v862 = vpop.f32.mrf.mxu0
      %v863 = vadd.f32 %v580, %v862
      %v864 = vpop.f32.mrf.mxu0
      %v865 = vadd.f32 %v580, %v864
      %866 = vmatmul.bf16.gmra.mxu0 %v478
      %v867 = vpop.f32.mrf.mxu0
      %v868 = vadd.f32 %v580, %v867
      %v869 = vpop.f32.mrf.mxu0
      %v870 = vadd.f32 %v580, %v869
      %871 = vmatmul.bf16.gmra.mxu0 %v481
      %v872 = vpop.f32.mrf.mxu0
      %v873 = vadd.f32 %v580, %v872
      %v874 = vpop.f32.mrf.mxu0
      %v875 = vadd.f32 %v580, %v874
      %876 = vmatmul.bf16.gmra.mxu0 %v484
      %v877 = vpop.f32.mrf.mxu0
      %v878 = vadd.f32 %v580, %v877
      %v879 = vpop.f32.mrf.mxu0
      %v880 = vadd.f32 %v580, %v879
      %881 = vmatmul.bf16.gmra.mxu0 %v487
      %v882 = vpop.f32.mrf.mxu0
      %v883 = vadd.f32 %v580, %v882
      %v884 = vpop.f32.mrf.mxu0
      %v885 = vadd.f32 %v580, %v884
      %886 = vmatmul.bf16.gmra.mxu0 %v490
      %v887 = vpop.f32.mrf.mxu0
      %v888 = vadd.f32 %v580, %v887
      %v889 = vpop.f32.mrf.mxu0
      %v890 = vadd.f32 %v580, %v889
      %891 = vmatmul.bf16.gmra.mxu0 %v493
      %v892 = vpop.f32.mrf.mxu0
      %v893 = vadd.f32 %v580, %v892
      %v894 = vpop.f32.mrf.mxu0
      %v895 = vadd.f32 %v580, %v894
      %896 = vmatmul.bf16.gmra.mxu0 %v496
      %v897 = vpop.f32.mrf.mxu0
      %v898 = vadd.f32 %v580, %v897
      %v899 = vpop.f32.mrf.mxu0
      %v900 = vadd.f32 %v580, %v899
      %901 = vmatmul.bf16.gmra.mxu0 %v499
      %v902 = vpop.f32.mrf.mxu0
      %v903 = vadd.f32 %v580, %v902
      %v904 = vpop.f32.mrf.mxu0
      %v905 = vadd.f32 %v580, %v904
      %906 = vmatmul.bf16.gmra.mxu0 %v502
      %v907 = vpop.f32.mrf.mxu0
      %v908 = vadd.f32 %v580, %v907
      %v909 = vpop.f32.mrf.mxu0
      %v910 = vadd.f32 %v580, %v909
      %911 = vmatmul.bf16.gmra.mxu0 %v505
      %v912 = vpop.f32.mrf.mxu0
      %v913 = vadd.f32 %v580, %v912
      %v914 = vpop.f32.mrf.mxu0
      %v915 = vadd.f32 %v580, %v914
      %916 = vmatmul.bf16.gmra.mxu0 %v508
      %v917 = vpop.f32.mrf.mxu0
      %v918 = vadd.f32 %v580, %v917
      %v919 = vpop.f32.mrf.mxu0
      %v920 = vadd.f32 %v580, %v919
      %921 = vmatmul.bf16.gmra.mxu0 %v511
      %v922 = vpop.f32.mrf.mxu0
      %v923 = vadd.f32 %v580, %v922
      %v924 = vpop.f32.mrf.mxu0
      %v925 = vadd.f32 %v580, %v924
      %926 = vmatmul.bf16.gmra.mxu0 %v514
      %v927 = vpop.f32.mrf.mxu0
      %v928 = vadd.f32 %v580, %v927
      %v929 = vpop.f32.mrf.mxu0
      %v930 = vadd.f32 %v580, %v929
      %931 = vmatmul.bf16.gmra.mxu0 %v517
      %v932 = vpop.f32.mrf.mxu0
      %v933 = vadd.f32 %v580, %v932
      %v934 = vpop.f32.mrf.mxu0
      %v935 = vadd.f32 %v580, %v934
      %936 = vmatmul.bf16.gmra.mxu0 %v520
      %v937 = vpop.f32.mrf.mxu0
      %v938 = vadd.f32 %v580, %v937
      %v939 = vpop.f32.mrf.mxu0
      %v940 = vadd.f32 %v580, %v939
      %941 = vmatmul.bf16.gmra.mxu0 %v523
      %v942 = vpop.f32.mrf.mxu0
      %v943 = vadd.f32 %v580, %v942
      %v944 = vpop.f32.mrf.mxu0
      %v945 = vadd.f32 %v580, %v944
      %946 = vmatmul.bf16.gmra.mxu0 %v526
      %v947 = vpop.f32.mrf.mxu0
      %v948 = vadd.f32 %v580, %v947
      %v949 = vpop.f32.mrf.mxu0
      %v950 = vadd.f32 %v580, %v949
      %951 = vmatmul.bf16.gmra.mxu0 %v529
      %v952 = vpop.f32.mrf.mxu0
      %v953 = vadd.f32 %v580, %v952
      %v954 = vpop.f32.mrf.mxu0
      %v955 = vadd.f32 %v580, %v954
      %956 = vmatmul.bf16.gmra.mxu0 %v532
      %v957 = vpop.f32.mrf.mxu0
      %v958 = vadd.f32 %v580, %v957
      %v959 = vpop.f32.mrf.mxu0
      %v960 = vadd.f32 %v580, %v959
      %961 = vmatmul.bf16.gmra.mxu0 %v535
      %v962 = vpop.f32.mrf.mxu0
      %v963 = vadd.f32 %v580, %v962
      %v964 = vpop.f32.mrf.mxu0
      %v965 = vadd.f32 %v580, %v964
      %966 = vmatmul.bf16.gmra.mxu0 %v538
      %v967 = vpop.f32.mrf.mxu0
      %v968 = vadd.f32 %v580, %v967
      %v969 = vpop.f32.mrf.mxu0
      %v970 = vadd.f32 %v580, %v969
      %971 = vmatmul.bf16.gmra.mxu0 %v541
      %v972 = vpop.f32.mrf.mxu0
      %v973 = vadd.f32 %v580, %v972
      %v974 = vpop.f32.mrf.mxu0
      %975 = vdwg.mxu0
      %976 = vmatpush.bf16.msra.mxu0 %v665
      %977 = vmatpush.bf16.msra.mxu0 %v664
      %978 = vmatpush.bf16.msra.mxu0 %v663
      %979 = vmatpush.bf16.msra.mxu0 %v662
      %980 = vmatpush.bf16.msra.mxu0 %v661
      %981 = vmatpush.bf16.msra.mxu0 %v660
      %982 = vmatpush.bf16.msra.mxu0 %v659
      %983 = vmatpush.bf16.msra.mxu0 %v658
      %984 = vmatmul.bf16.gmra.mxu0 %v440
      %v985 = vpop.f32.mrf.mxu0
      %v986 = vadd.f32 %v803, %v985
      %v987 = vpop.f32.mrf.mxu0
      %v988 = vadd.f32 %v805, %v987
      %989 = vmatmul.bf16.gmra.mxu0 %v443
      %v990 = vpop.f32.mrf.mxu0
      %v991 = vadd.f32 %v808, %v990
      %v992 = vpop.f32.mrf.mxu0
      %v993 = vadd.f32 %v810, %v992
      %994 = vmatmul.bf16.gmra.mxu0 %v446
      %v995 = vpop.f32.mrf.mxu0
      %v996 = vadd.f32 %v813, %v995
      %v997 = vpop.f32.mrf.mxu0
      %v998 = vadd.f32 %v815, %v997
      %999 = vmatmul.bf16.gmra.mxu0 %v449
      %v1000 = vpop.f32.mrf.mxu0
      %v1001 = vadd.f32 %v818, %v1000
      %v1002 = vpop.f32.mrf.mxu0
      %v1003 = vadd.f32 %v820, %v1002
      %1004 = vmatmul.bf16.gmra.mxu0 %v452
      %v1005 = vpop.f32.mrf.mxu0
      %v1006 = vadd.f32 %v823, %v1005
      %v1007 = vpop.f32.mrf.mxu0
      %v1008 = vadd.f32 %v825, %v1007
      %1009 = vmatmul.bf16.gmra.mxu0 %v455
      %v1010 = vpop.f32.mrf.mxu0
      %v1011 = vadd.f32 %v828, %v1010
      %v1012 = vpop.f32.mrf.mxu0
      %v1013 = vadd.f32 %v830, %v1012
      %1014 = vmatmul.bf16.gmra.mxu0 %v458
      %v1015 = vpop.f32.mrf.mxu0
      %v1016 = vadd.f32 %v833, %v1015
      %v1017 = vpop.f32.mrf.mxu0
      %v1018 = vadd.f32 %v835, %v1017
      %1019 = vmatmul.bf16.gmra.mxu0 %v461
      %v1020 = vpop.f32.mrf.mxu0
      %v1021 = vadd.f32 %v838, %v1020
      %v1022 = vpop.f32.mrf.mxu0
      %v1023 = vadd.f32 %v840, %v1022
      %1024 = vmatmul.bf16.gmra.mxu0 %v464
      %v1025 = vpop.f32.mrf.mxu0
      %v1026 = vadd.f32 %v843, %v1025
      %v1027 = vpop.f32.mrf.mxu0
      %v1028 = vadd.f32 %v845, %v1027
      %1029 = vmatmul.bf16.gmra.mxu0 %v467
      %v1030 = vpop.f32.mrf.mxu0
      %v1031 = vadd.f32 %v848, %v1030
      %v1032 = vpop.f32.mrf.mxu0
      %v1033 = vadd.f32 %v850, %v1032
      %1034 = vmatmul.bf16.gmra.mxu0 %v470
      %v1035 = vpop.f32.mrf.mxu0
      %v1036 = vadd.f32 %v853, %v1035
      %v1037 = vpop.f32.mrf.mxu0
      %v1038 = vadd.f32 %v855, %v1037
      %1039 = vmatmul.bf16.gmra.mxu0 %v473
      %v1040 = vpop.f32.mrf.mxu0
      %v1041 = vadd.f32 %v858, %v1040
      %v1042 = vpop.f32.mrf.mxu0
      %v1043 = vadd.f32 %v860, %v1042
      %1044 = vmatmul.bf16.gmra.mxu0 %v476
      %v1045 = vpop.f32.mrf.mxu0
      %v1046 = vadd.f32 %v863, %v1045
      %v1047 = vpop.f32.mrf.mxu0
      %v1048 = vadd.f32 %v865, %v1047
      %1049 = vmatmul.bf16.gmra.mxu0 %v479
      %v1050 = vpop.f32.mrf.mxu0
      %v1051 = vadd.f32 %v868, %v1050
      %v1052 = vpop.f32.mrf.mxu0
      %v1053 = vadd.f32 %v870, %v1052
      %1054 = vmatmul.bf16.gmra.mxu0 %v482
      %v1055 = vpop.f32.mrf.mxu0
      %v1056 = vadd.f32 %v873, %v1055
      %v1057 = vpop.f32.mrf.mxu0
      %v1058 = vadd.f32 %v875, %v1057
      %1059 = vmatmul.bf16.gmra.mxu0 %v485
      %v1060 = vpop.f32.mrf.mxu0
      %v1061 = vadd.f32 %v878, %v1060
      %v1062 = vpop.f32.mrf.mxu0
      %v1063 = vadd.f32 %v880, %v1062
      %1064 = vmatmul.bf16.gmra.mxu0 %v488
      %v1065 = vpop.f32.mrf.mxu0
      %v1066 = vadd.f32 %v883, %v1065
      %v1067 = vpop.f32.mrf.mxu0
      %v1068 = vadd.f32 %v885, %v1067
      %1069 = vmatmul.bf16.gmra.mxu0 %v491
      %v1070 = vpop.f32.mrf.mxu0
      %v1071 = vadd.f32 %v888, %v1070
      %v1072 = vpop.f32.mrf.mxu0
      %v1073 = vadd.f32 %v890, %v1072
      %1074 = vmatmul.bf16.gmra.mxu0 %v494
      %v1075 = vpop.f32.mrf.mxu0
      %v1076 = vadd.f32 %v893, %v1075
      %v1077 = vpop.f32.mrf.mxu0
      %v1078 = vadd.f32 %v895, %v1077
      %1079 = vmatmul.bf16.gmra.mxu0 %v497
      %v1080 = vpop.f32.mrf.mxu0
      %v1081 = vadd.f32 %v898, %v1080
      %v1082 = vpop.f32.mrf.mxu0
      %v1083 = vadd.f32 %v900, %v1082
      %1084 = vmatmul.bf16.gmra.mxu0 %v500
      %v1085 = vpop.f32.mrf.mxu0
      %v1086 = vadd.f32 %v903, %v1085
      %v1087 = vpop.f32.mrf.mxu0
      %v1088 = vadd.f32 %v905, %v1087
      %1089 = vmatmul.bf16.gmra.mxu0 %v503
      %v1090 = vpop.f32.mrf.mxu0
      %v1091 = vadd.f32 %v908, %v1090
      %v1092 = vpop.f32.mrf.mxu0
      %v1093 = vadd.f32 %v910, %v1092
      %1094 = vmatmul.bf16.gmra.mxu0 %v506
      %v1095 = vpop.f32.mrf.mxu0
      %v1096 = vadd.f32 %v913, %v1095
      %v1097 = vpop.f32.mrf.mxu0
      %v1098 = vadd.f32 %v915, %v1097
      %1099 = vmatmul.bf16.gmra.mxu0 %v509
      %v1100 = vpop.f32.mrf.mxu0
      %v1101 = vadd.f32 %v918, %v1100
      %v1102 = vpop.f32.mrf.mxu0
      %v1103 = vadd.f32 %v920, %v1102
      %1104 = vmatmul.bf16.gmra.mxu0 %v512
      %v1105 = vpop.f32.mrf.mxu0
      %v1106 = vadd.f32 %v923, %v1105
      %v1107 = vpop.f32.mrf.mxu0
      %v1108 = vadd.f32 %v925, %v1107
      %1109 = vmatmul.bf16.gmra.mxu0 %v515
      %v1110 = vpop.f32.mrf.mxu0
      %v1111 = vadd.f32 %v928, %v1110
      %v1112 = vpop.f32.mrf.mxu0
      %v1113 = vadd.f32 %v930, %v1112
      %1114 = vmatmul.bf16.gmra.mxu0 %v518
      %v1115 = vpop.f32.mrf.mxu0
      %v1116 = vadd.f32 %v933, %v1115
      %v1117 = vpop.f32.mrf.mxu0
      %v1118 = vadd.f32 %v935, %v1117
      %1119 = vmatmul.bf16.gmra.mxu0 %v521
      %v1120 = vpop.f32.mrf.mxu0
      %v1121 = vadd.f32 %v938, %v1120
      %v1122 = vpop.f32.mrf.mxu0
      %v1123 = vadd.f32 %v940, %v1122
      %1124 = vmatmul.bf16.gmra.mxu0 %v524
      %v1125 = vpop.f32.mrf.mxu0
      %v1126 = vadd.f32 %v943, %v1125
      %v1127 = vpop.f32.mrf.mxu0
      %v1128 = vadd.f32 %v945, %v1127
      %1129 = vmatmul.bf16.gmra.mxu0 %v527
      %v1130 = vpop.f32.mrf.mxu0
      %v1131 = vadd.f32 %v948, %v1130
      %v1132 = vpop.f32.mrf.mxu0
      %v1133 = vadd.f32 %v950, %v1132
      %1134 = vmatmul.bf16.gmra.mxu0 %v530
      %v1135 = vpop.f32.mrf.mxu0
      %v1136 = vadd.f32 %v953, %v1135
      %v1137 = vpop.f32.mrf.mxu0
      %v1138 = vadd.f32 %v955, %v1137
      %1139 = vmatmul.bf16.gmra.mxu0 %v533
      %v1140 = vpop.f32.mrf.mxu0
      %v1141 = vadd.f32 %v958, %v1140
      %v1142 = vpop.f32.mrf.mxu0
      %v1143 = vadd.f32 %v960, %v1142
      %1144 = vmatmul.bf16.gmra.mxu0 %v536
      %v1145 = vpop.f32.mrf.mxu0
      %v1146 = vadd.f32 %v963, %v1145
      %v1147 = vpop.f32.mrf.mxu0
      %v1148 = vadd.f32 %v965, %v1147
      %1149 = vmatmul.bf16.gmra.mxu0 %v539
      %v1150 = vpop.f32.mrf.mxu0
      %v1151 = vadd.f32 %v968, %v1150
      %v1152 = vpop.f32.mrf.mxu0
      %v1153 = vadd.f32 %v970, %v1152
      %1154 = vmatmul.bf16.gmra.mxu0 %v542
      %v1155 = vpop.f32.mrf.mxu0
      %v1156 = vadd.f32 %v973, %v1155
      %v1157 = vpop.f32.mrf.mxu0
      %1158 = vdwg.mxu0
      %1159 = vmatpush.bf16.msra.mxu0 0
      %1160 = vmatpush.bf16.msra.mxu0 0
      %1161 = vmatpush.bf16.msra.mxu0 0
      %1162 = vmatpush.bf16.msra.mxu0 0
      %1163 = vmatpush.bf16.msra.mxu0 0
      %1164 = vmatpush.bf16.msra.mxu0 0
      %1165 = vmatpush.bf16.msra.mxu0 0
      %1166 = vmatpush.bf16.msra.mxu0 %v791
      %1167 = vmatmul.bf16.gmra.mxu0 %v685
      %v1168 = vpop.f32.mrf.mxu0
      %v1169 = vadd.f32 %v986, %v1168
      %v1170 = vpop.f32.mrf.mxu0
      %v1171 = vadd.f32 %v988, %v1170
      %1172 = vmatmul.bf16.gmra.mxu0 %v688
      %v1173 = vpop.f32.mrf.mxu0
      %v1174 = vadd.f32 %v991, %v1173
      %v1175 = vpop.f32.mrf.mxu0
      %v1176 = vadd.f32 %v993, %v1175
      %1177 = vmatmul.bf16.gmra.mxu0 %v691
      %v1178 = vpop.f32.mrf.mxu0
      %v1179 = vadd.f32 %v996, %v1178
      %v1180 = vpop.f32.mrf.mxu0
      %v1181 = vadd.f32 %v998, %v1180
      %1182 = vmatmul.bf16.gmra.mxu0 %v694
      %v1183 = vpop.f32.mrf.mxu0
      %v1184 = vadd.f32 %v1001, %v1183
      %v1185 = vpop.f32.mrf.mxu0
      %v1186 = vadd.f32 %v1003, %v1185
      %1187 = vmatmul.bf16.gmra.mxu0 %v697
      %v1188 = vpop.f32.mrf.mxu0
      %v1189 = vadd.f32 %v1006, %v1188
      %v1190 = vpop.f32.mrf.mxu0
      %v1191 = vadd.f32 %v1008, %v1190
      %1192 = vmatmul.bf16.gmra.mxu0 %v700
      %v1193 = vpop.f32.mrf.mxu0
      %v1194 = vadd.f32 %v1011, %v1193
      %v1195 = vpop.f32.mrf.mxu0
      %v1196 = vadd.f32 %v1013, %v1195
      %1197 = vmatmul.bf16.gmra.mxu0 %v703
      %v1198 = vpop.f32.mrf.mxu0
      %v1199 = vadd.f32 %v1016, %v1198
      %v1200 = vpop.f32.mrf.mxu0
      %v1201 = vadd.f32 %v1018, %v1200
      %1202 = vmatmul.bf16.gmra.mxu0 %v706
      %v1203 = vpop.f32.mrf.mxu0
      %v1204 = vadd.f32 %v1021, %v1203
      %v1205 = vpop.f32.mrf.mxu0
      %v1206 = vadd.f32 %v1023, %v1205
      %1207 = vmatmul.bf16.gmra.mxu0 %v709
      %v1208 = vpop.f32.mrf.mxu0
      %v1209 = vadd.f32 %v1026, %v1208
      %v1210 = vpop.f32.mrf.mxu0
      %v1211 = vadd.f32 %v1028, %v1210
      %1212 = vmatmul.bf16.gmra.mxu0 %v712
      %v1213 = vpop.f32.mrf.mxu0
      %v1214 = vadd.f32 %v1031, %v1213
      %v1215 = vpop.f32.mrf.mxu0
      %v1216 = vadd.f32 %v1033, %v1215
      %1217 = vmatmul.bf16.gmra.mxu0 %v715
      %v1218 = vpop.f32.mrf.mxu0
      %v1219 = vadd.f32 %v1036, %v1218
      %v1220 = vpop.f32.mrf.mxu0
      %v1221 = vadd.f32 %v1038, %v1220
      %1222 = vmatmul.bf16.gmra.mxu0 %v718
      %v1223 = vpop.f32.mrf.mxu0
      %v1224 = vadd.f32 %v1041, %v1223
      %v1225 = vpop.f32.mrf.mxu0
      %v1226 = vadd.f32 %v1043, %v1225
      %1227 = vmatmul.bf16.gmra.mxu0 %v721
      %v1228 = vpop.f32.mrf.mxu0
      %v1229 = vadd.f32 %v1046, %v1228
      %v1230 = vpop.f32.mrf.mxu0
      %v1231 = vadd.f32 %v1048, %v1230
      %1232 = vmatmul.bf16.gmra.mxu0 %v724
      %v1233 = vpop.f32.mrf.mxu0
      %v1234 = vadd.f32 %v1051, %v1233
      %v1235 = vpop.f32.mrf.mxu0
      %v1236 = vadd.f32 %v1053, %v1235
      %1237 = vmatmul.bf16.gmra.mxu0 %v727
      %v1238 = vpop.f32.mrf.mxu0
      %v1239 = vadd.f32 %v1056, %v1238
      %v1240 = vpop.f32.mrf.mxu0
      %v1241 = vadd.f32 %v1058, %v1240
      %1242 = vmatmul.bf16.gmra.mxu0 %v730
      %v1243 = vpop.f32.mrf.mxu0
      %v1244 = vadd.f32 %v1061, %v1243
      %v1245 = vpop.f32.mrf.mxu0
      %v1246 = vadd.f32 %v1063, %v1245
      %1247 = vmatmul.bf16.gmra.mxu0 %v733
      %v1248 = vpop.f32.mrf.mxu0
      %v1249 = vadd.f32 %v1066, %v1248
      %v1250 = vpop.f32.mrf.mxu0
      %v1251 = vadd.f32 %v1068, %v1250
      %1252 = vmatmul.bf16.gmra.mxu0 %v736
      %v1253 = vpop.f32.mrf.mxu0
      %v1254 = vadd.f32 %v1071, %v1253
      %v1255 = vpop.f32.mrf.mxu0
      %v1256 = vadd.f32 %v1073, %v1255
      %1257 = vmatmul.bf16.gmra.mxu0 %v739
      %v1258 = vpop.f32.mrf.mxu0
      %v1259 = vadd.f32 %v1076, %v1258
      %v1260 = vpop.f32.mrf.mxu0
      %v1261 = vadd.f32 %v1078, %v1260
      %1262 = vmatmul.bf16.gmra.mxu0 %v742
      %v1263 = vpop.f32.mrf.mxu0
      %v1264 = vadd.f32 %v1081, %v1263
      %v1265 = vpop.f32.mrf.mxu0
      %v1266 = vadd.f32 %v1083, %v1265
      %1267 = vmatmul.bf16.gmra.mxu0 %v745
      %v1268 = vpop.f32.mrf.mxu0
      %v1269 = vadd.f32 %v1086, %v1268
      %v1270 = vpop.f32.mrf.mxu0
      %v1271 = vadd.f32 %v1088, %v1270
      %1272 = vmatmul.bf16.gmra.mxu0 %v748
      %v1273 = vpop.f32.mrf.mxu0
      %v1274 = vadd.f32 %v1091, %v1273
      %v1275 = vpop.f32.mrf.mxu0
      %v1276 = vadd.f32 %v1093, %v1275
      %1277 = vmatmul.bf16.gmra.mxu0 %v751
      %v1278 = vpop.f32.mrf.mxu0
      %v1279 = vadd.f32 %v1096, %v1278
      %v1280 = vpop.f32.mrf.mxu0
      %v1281 = vadd.f32 %v1098, %v1280
      %1282 = vmatmul.bf16.gmra.mxu0 %v754
      %v1283 = vpop.f32.mrf.mxu0
      %v1284 = vadd.f32 %v1101, %v1283
      %v1285 = vpop.f32.mrf.mxu0
      %v1286 = vadd.f32 %v1103, %v1285
      %1287 = vmatmul.bf16.gmra.mxu0 %v757
      %v1288 = vpop.f32.mrf.mxu0
      %v1289 = vadd.f32 %v1106, %v1288
      %v1290 = vpop.f32.mrf.mxu0
      %v1291 = vadd.f32 %v1108, %v1290
      %1292 = vmatmul.bf16.gmra.mxu0 %v760
      %v1293 = vpop.f32.mrf.mxu0
      %v1294 = vadd.f32 %v1111, %v1293
      %v1295 = vpop.f32.mrf.mxu0
      %v1296 = vadd.f32 %v1113, %v1295
      %1297 = vmatmul.bf16.gmra.mxu0 %v763
      %v1298 = vpop.f32.mrf.mxu0
      %v1299 = vadd.f32 %v1116, %v1298
      %v1300 = vpop.f32.mrf.mxu0
      %v1301 = vadd.f32 %v1118, %v1300
      %1302 = vmatmul.bf16.gmra.mxu0 %v766
      %v1303 = vpop.f32.mrf.mxu0
      %v1304 = vadd.f32 %v1121, %v1303
      %v1305 = vpop.f32.mrf.mxu0
      %v1306 = vadd.f32 %v1123, %v1305
      %1307 = vmatmul.bf16.gmra.mxu0 %v769
      %v1308 = vpop.f32.mrf.mxu0
      %v1309 = vadd.f32 %v1126, %v1308
      %v1310 = vpop.f32.mrf.mxu0
      %v1311 = vadd.f32 %v1128, %v1310
      %1312 = vmatmul.bf16.gmra.mxu0 %v772
      %v1313 = vpop.f32.mrf.mxu0
      %v1314 = vadd.f32 %v1131, %v1313
      %v1315 = vpop.f32.mrf.mxu0
      %v1316 = vadd.f32 %v1133, %v1315
      %1317 = vmatmul.bf16.gmra.mxu0 %v775
      %v1318 = vpop.f32.mrf.mxu0
      %v1319 = vadd.f32 %v1136, %v1318
      %v1320 = vpop.f32.mrf.mxu0
      %v1321 = vadd.f32 %v1138, %v1320
      %1322 = vmatmul.bf16.gmra.mxu0 %v778
      %v1323 = vpop.f32.mrf.mxu0
      %v1324 = vadd.f32 %v1141, %v1323
      %v1325 = vpop.f32.mrf.mxu0
      %v1326 = vadd.f32 %v1143, %v1325
      %1327 = vmatmul.bf16.gmra.mxu0 %v781
      %v1328 = vpop.f32.mrf.mxu0
      %v1329 = vadd.f32 %v1146, %v1328
      %v1330 = vpop.f32.mrf.mxu0
      %v1331 = vadd.f32 %v1148, %v1330
      %1332 = vmatmul.bf16.gmra.mxu0 %v784
      %v1333 = vpop.f32.mrf.mxu0
      %v1334 = vadd.f32 %v1151, %v1333
      %v1335 = vpop.f32.mrf.mxu0
      %v1336 = vadd.f32 %v1153, %v1335
      %1337 = vmatmul.bf16.gmra.mxu0 %v787
      %v1338 = vpop.f32.mrf.mxu0
      %v1339 = vadd.f32 %v1156, %v1338
      %v1340 = vpop.f32.mrf.mxu0
      %1341 = vdwg.mxu0
      %v1342 = vmul.f32 %v1169, 0.01
      %v1343 = vmul.f32 %v1171, 0.01
      %v1344 = vmul.f32 %v1174, 0.01
      %v1345 = vmul.f32 %v1176, 0.01
      %v1346 = vmul.f32 %v1179, 0.01
      %v1347 = vmul.f32 %v1181, 0.01
      %v1348 = vmul.f32 %v1184, 0.01
      %v1349 = vmul.f32 %v1186, 0.01
      %v1350 = vmul.f32 %v1189, 0.01
      %v1351 = vmul.f32 %v1191, 0.01
      %v1352 = vmul.f32 %v1194, 0.01
      %v1353 = vmul.f32 %v1196, 0.01
      %v1354 = vmul.f32 %v1199, 0.01
      %v1355 = vmul.f32 %v1201, 0.01
      %v1356 = vmul.f32 %v1204, 0.01
      %v1357 = vmul.f32 %v1206, 0.01
      %v1358 = vmul.f32 %v1209, 0.01
      %v1359 = vmul.f32 %v1211, 0.01
      %v1360 = vmul.f32 %v1214, 0.01
      %v1361 = vmul.f32 %v1216, 0.01
      %v1362 = vmul.f32 %v1219, 0.01
      %v1363 = vmul.f32 %v1221, 0.01
      %v1364 = vmul.f32 %v1224, 0.01
      %v1365 = vmul.f32 %v1226, 0.01
      %v1366 = vmul.f32 %v1229, 0.01
      %v1367 = vmul.f32 %v1231, 0.01
      %v1368 = vmul.f32 %v1234, 0.01
      %v1369 = vmul.f32 %v1236, 0.01
      %v1370 = vmul.f32 %v1239, 0.01
      %v1371 = vmul.f32 %v1241, 0.01
      %v1372 = vmul.f32 %v1244, 0.01
      %v1373 = vmul.f32 %v1246, 0.01
      %v1374 = vmul.f32 %v1249, 0.01
      %v1375 = vmul.f32 %v1251, 0.01
      %v1376 = vmul.f32 %v1254, 0.01
      %v1377 = vmul.f32 %v1256, 0.01
      %v1378 = vmul.f32 %v1259, 0.01
      %v1379 = vmul.f32 %v1261, 0.01
      %v1380 = vmul.f32 %v1264, 0.01
      %v1381 = vmul.f32 %v1266, 0.01
      %v1382 = vmul.f32 %v1269, 0.01
      %v1383 = vmul.f32 %v1271, 0.01
      %v1384 = vmul.f32 %v1274, 0.01
      %v1385 = vmul.f32 %v1276, 0.01
      %v1386 = vmul.f32 %v1279, 0.01
      %v1387 = vmul.f32 %v1281, 0.01
      %v1388 = vmul.f32 %v1284, 0.01
      %v1389 = vmul.f32 %v1286, 0.01
      %v1390 = vmul.f32 %v1289, 0.01
      %v1391 = vmul.f32 %v1291, 0.01
      %v1392 = vmul.f32 %v1294, 0.01
      %v1393 = vmul.f32 %v1296, 0.01
      %v1394 = vmul.f32 %v1299, 0.01
      %v1395 = vmul.f32 %v1301, 0.01
      %v1396 = vmul.f32 %v1304, 0.01
      %v1397 = vmul.f32 %v1306, 0.01
      %v1398 = vmul.f32 %v1309, 0.01
      %v1399 = vmul.f32 %v1311, 0.01
      %v1400 = vmul.f32 %v1314, 0.01
      %v1401 = vmul.f32 %v1316, 0.01
      %v1402 = vmul.f32 %v1319, 0.01
      %v1403 = vmul.f32 %v1321, 0.01
      %v1404 = vmul.f32 %v1324, 0.01
      %v1405 = vmul.f32 %v1326, 0.01
      %v1406 = vmul.f32 %v1329, 0.01
      %v1407 = vmul.f32 %v1331, 0.01
      %v1408 = vmul.f32 %v1334, 0.01
      %v1409 = vmul.f32 %v1336, 0.01
      %v1410 = vmul.f32 %v1339, 0.01
      %v1411 = vmax.f32 %v1169, %v1342
      %v1412 = vmax.f32 %v1171, %v1343
      %v1413 = vmax.f32 %v1174, %v1344
      %v1414 = vmax.f32 %v1176, %v1345
      %v1415 = vmax.f32 %v1179, %v1346
      %v1416 = vmax.f32 %v1181, %v1347
      %v1417 = vmax.f32 %v1184, %v1348
      %v1418 = vmax.f32 %v1186, %v1349
      %v1419 = vmax.f32 %v1189, %v1350
      %v1420 = vmax.f32 %v1191, %v1351
      %v1421 = vmax.f32 %v1194, %v1352
      %v1422 = vmax.f32 %v1196, %v1353
      %v1423 = vmax.f32 %v1199, %v1354
      %v1424 = vmax.f32 %v1201, %v1355
      %v1425 = vmax.f32 %v1204, %v1356
      %v1426 = vmax.f32 %v1206, %v1357
      %v1427 = vmax.f32 %v1209, %v1358
      %v1428 = vmax.f32 %v1211, %v1359
      %v1429 = vmax.f32 %v1214, %v1360
      %v1430 = vmax.f32 %v1216, %v1361
      %v1431 = vmax.f32 %v1219, %v1362
      %v1432 = vmax.f32 %v1221, %v1363
      %v1433 = vmax.f32 %v1224, %v1364
      %v1434 = vmax.f32 %v1226, %v1365
      %v1435 = vmax.f32 %v1229, %v1366
      %v1436 = vmax.f32 %v1231, %v1367
      %v1437 = vmax.f32 %v1234, %v1368
      %v1438 = vmax.f32 %v1236, %v1369
      %v1439 = vmax.f32 %v1239, %v1370
      %v1440 = vmax.f32 %v1241, %v1371
      %v1441 = vmax.f32 %v1244, %v1372
      %v1442 = vmax.f32 %v1246, %v1373
      %v1443 = vmax.f32 %v1249, %v1374
      %v1444 = vmax.f32 %v1251, %v1375
      %v1445 = vmax.f32 %v1254, %v1376
      %v1446 = vmax.f32 %v1256, %v1377
      %v1447 = vmax.f32 %v1259, %v1378
      %v1448 = vmax.f32 %v1261, %v1379
      %v1449 = vmax.f32 %v1264, %v1380
      %v1450 = vmax.f32 %v1266, %v1381
      %v1451 = vmax.f32 %v1269, %v1382
      %v1452 = vmax.f32 %v1271, %v1383
      %v1453 = vmax.f32 %v1274, %v1384
      %v1454 = vmax.f32 %v1276, %v1385
      %v1455 = vmax.f32 %v1279, %v1386
      %v1456 = vmax.f32 %v1281, %v1387
      %v1457 = vmax.f32 %v1284, %v1388
      %v1458 = vmax.f32 %v1286, %v1389
      %v1459 = vmax.f32 %v1289, %v1390
      %v1460 = vmax.f32 %v1291, %v1391
      %v1461 = vmax.f32 %v1294, %v1392
      %v1462 = vmax.f32 %v1296, %v1393
      %v1463 = vmax.f32 %v1299, %v1394
      %v1464 = vmax.f32 %v1301, %v1395
      %v1465 = vmax.f32 %v1304, %v1396
      %v1466 = vmax.f32 %v1306, %v1397
      %v1467 = vmax.f32 %v1309, %v1398
      %v1468 = vmax.f32 %v1311, %v1399
      %v1469 = vmax.f32 %v1314, %v1400
      %v1470 = vmax.f32 %v1316, %v1401
      %v1471 = vmax.f32 %v1319, %v1402
      %v1472 = vmax.f32 %v1321, %v1403
      %v1473 = vmax.f32 %v1324, %v1404
      %v1474 = vmax.f32 %v1326, %v1405
      %v1475 = vmax.f32 %v1329, %v1406
      %v1476 = vmax.f32 %v1331, %v1407
      %v1477 = vmax.f32 %v1334, %v1408
      %v1478 = vmax.f32 %v1336, %v1409
      %v1479 = vmax.f32 %v1339, %v1410
      %v1480 = vpack.c.bf16 %v1412, %v1411
      %v1481 = vpack.c.bf16 %v1414, %v1413
      %v1482 = vpack.c.bf16 %v1416, %v1415
      %v1483 = vpack.c.bf16 %v1418, %v1417
      %v1484 = vpack.c.bf16 %v1420, %v1419
      %v1485 = vpack.c.bf16 %v1422, %v1421
      %v1486 = vpack.c.bf16 %v1424, %v1423
      %v1487 = vpack.c.bf16 %v1426, %v1425
      %v1488 = vpack.c.bf16 %v1428, %v1427
      %v1489 = vpack.c.bf16 %v1430, %v1429
      %v1490 = vpack.c.bf16 %v1432, %v1431
      %v1491 = vpack.c.bf16 %v1434, %v1433
      %v1492 = vpack.c.bf16 %v1436, %v1435
      %v1493 = vpack.c.bf16 %v1438, %v1437
      %v1494 = vpack.c.bf16 %v1440, %v1439
      %v1495 = vpack.c.bf16 %v1442, %v1441
      %v1496 = vpack.c.bf16 %v1444, %v1443
      %v1497 = vpack.c.bf16 %v1446, %v1445
      %v1498 = vpack.c.bf16 %v1448, %v1447
      %v1499 = vpack.c.bf16 %v1450, %v1449
      %v1500 = vpack.c.bf16 %v1452, %v1451
      %v1501 = vpack.c.bf16 %v1454, %v1453
      %v1502 = vpack.c.bf16 %v1456, %v1455
      %v1503 = vpack.c.bf16 %v1458, %v1457
      %v1504 = vpack.c.bf16 %v1460, %v1459
      %v1505 = vpack.c.bf16 %v1462, %v1461
      %v1506 = vpack.c.bf16 %v1464, %v1463
      %v1507 = vpack.c.bf16 %v1466, %v1465
      %v1508 = vpack.c.bf16 %v1468, %v1467
      %v1509 = vpack.c.bf16 %v1470, %v1469
      %v1510 = vpack.c.bf16 %v1472, %v1471
      %v1511 = vpack.c.bf16 %v1474, %v1473
      %v1512 = vpack.c.bf16 %v1476, %v1475
      %v1513 = vpack.c.bf16 %v1478, %v1477
      %v1514 = vpack.c.bf16 %v1479, %v1479
      %v1515 = vld [vmem:[%s3] sm:$0xf]
      %v1516 = vld [vmem:[%s3 + $0x4] sm:$0xf]
      %v1517 = vld [vmem:[%s3 + $0x8] sm:$0xf]
      %v1518 = vld [vmem:[%s3 + $0xc] sm:$0xf]
      %v1519 = vld [vmem:[%s3 + $0x10] sm:$0xf]
      %v1520 = vld [vmem:[%s3 + $0x14] sm:$0xf]
      %v1521 = vld [vmem:[%s3 + $0x18] sm:$0xf]
      %v1522 = vld [vmem:[%s3 + $0x1c] sm:$0xf]
      %v1523 = vld [vmem:[%s3 + $0x20] sm:$0xf]
      %v1524 = vld [vmem:[%s3 + $0x24] sm:$0xf]
      %v1525 = vld [vmem:[%s3 + $0x28] sm:$0xf]
      %v1526 = vld [vmem:[%s3 + $0x2c] sm:$0xf]
      %v1527 = vld [vmem:[%s3 + $0x30] sm:$0xf]
      %v1528 = vld [vmem:[%s3 + $0x34] sm:$0xf]
      %v1529 = vld [vmem:[%s3 + $0x38] sm:$0xf]
      %v1530 = vld [vmem:[%s3 + $0x3c] sm:$0xf]
      %v1531 = vld [vmem:[%s4] sm:$0x1]
      %v1533 = vperm.slane %v1531, 0
      %v1551 = vunpack.c.l.b16 %v1515
      %v1552 = vunpack.c.l.b16 %v1516
      %v1553 = vunpack.c.l.b16 %v1517
      %v1554 = vunpack.c.l.b16 %v1518
      %v1555 = vunpack.c.l.b16 %v1519
      %v1556 = vunpack.c.l.b16 %v1520
      %v1557 = vunpack.c.l.b16 %v1521
      %v1558 = vunpack.c.l.b16 %v1522
      %v1559 = vunpack.c.l.b16 %v1523
      %v1560 = vunpack.c.l.b16 %v1524
      %v1561 = vunpack.c.l.b16 %v1525
      %v1562 = vunpack.c.l.b16 %v1526
      %v1563 = vunpack.c.l.b16 %v1527
      %v1564 = vunpack.c.l.b16 %v1528
      %v1565 = vunpack.c.l.b16 %v1529
      %v1566 = vunpack.c.l.b16 %v1530
      %v1567 = vpack.c.b16 %v1552, %v1551
      %v1568 = vpack.c.b16 %v1554, %v1553
      %v1569 = vpack.c.b16 %v1556, %v1555
      %v1570 = vpack.c.b16 %v1558, %v1557
      %v1571 = vpack.c.b16 %v1560, %v1559
      %v1572 = vpack.c.b16 %v1562, %v1561
      %v1573 = vpack.c.b16 %v1564, %v1563
      %v1574 = vpack.c.b16 %v1566, %v1565
      %1583 = vmatpush.bf16.msra.mxu0 %v1574
      %1584 = vmatpush.bf16.msra.mxu0 %v1573
      %1585 = vmatpush.bf16.msra.mxu0 %v1572
      %1586 = vmatpush.bf16.msra.mxu0 %v1571
      %1587 = vmatpush.bf16.msra.mxu0 %v1570
      %1588 = vmatpush.bf16.msra.mxu0 %v1569
      %1589 = vmatpush.bf16.msra.mxu0 %v1568
      %1590 = vmatpush.bf16.msra.mxu0 %v1567
      %1591 = vmatmul.bf16.gmra.mxu0 %v1480
      %v1592 = vpop.f32.mrf.mxu0
      %v1593 = vadd.f32 %v1533, %v1592
      %v1594 = vpop.f32.mrf.mxu0
      %v1595 = vadd.f32 %v1533, %v1594
      %1596 = vmatmul.bf16.gmra.mxu0 %v1481
      %v1597 = vpop.f32.mrf.mxu0
      %v1598 = vadd.f32 %v1533, %v1597
      %v1599 = vpop.f32.mrf.mxu0
      %v1600 = vadd.f32 %v1533, %v1599
      %1601 = vmatmul.bf16.gmra.mxu0 %v1482
      %v1602 = vpop.f32.mrf.mxu0
      %v1603 = vadd.f32 %v1533, %v1602
      %v1604 = vpop.f32.mrf.mxu0
      %v1605 = vadd.f32 %v1533, %v1604
      %1606 = vmatmul.bf16.gmra.mxu0 %v1483
      %v1607 = vpop.f32.mrf.mxu0
      %v1608 = vadd.f32 %v1533, %v1607
      %v1609 = vpop.f32.mrf.mxu0
      %v1610 = vadd.f32 %v1533, %v1609
      %1611 = vmatmul.bf16.gmra.mxu0 %v1484
      %v1612 = vpop.f32.mrf.mxu0
      %v1613 = vadd.f32 %v1533, %v1612
      %v1614 = vpop.f32.mrf.mxu0
      %v1615 = vadd.f32 %v1533, %v1614
      %1616 = vmatmul.bf16.gmra.mxu0 %v1485
      %v1617 = vpop.f32.mrf.mxu0
      %v1618 = vadd.f32 %v1533, %v1617
      %v1619 = vpop.f32.mrf.mxu0
      %v1620 = vadd.f32 %v1533, %v1619
      %1621 = vmatmul.bf16.gmra.mxu0 %v1486
      %v1622 = vpop.f32.mrf.mxu0
      %v1623 = vadd.f32 %v1533, %v1622
      %v1624 = vpop.f32.mrf.mxu0
      %v1625 = vadd.f32 %v1533, %v1624
      %1626 = vmatmul.bf16.gmra.mxu0 %v1487
      %v1627 = vpop.f32.mrf.mxu0
      %v1628 = vadd.f32 %v1533, %v1627
      %v1629 = vpop.f32.mrf.mxu0
      %v1630 = vadd.f32 %v1533, %v1629
      %1631 = vmatmul.bf16.gmra.mxu0 %v1488
      %v1632 = vpop.f32.mrf.mxu0
      %v1633 = vadd.f32 %v1533, %v1632
      %v1634 = vpop.f32.mrf.mxu0
      %v1635 = vadd.f32 %v1533, %v1634
      %1636 = vmatmul.bf16.gmra.mxu0 %v1489
      %v1637 = vpop.f32.mrf.mxu0
      %v1638 = vadd.f32 %v1533, %v1637
      %v1639 = vpop.f32.mrf.mxu0
      %v1640 = vadd.f32 %v1533, %v1639
      %1641 = vmatmul.bf16.gmra.mxu0 %v1490
      %v1642 = vpop.f32.mrf.mxu0
      %v1643 = vadd.f32 %v1533, %v1642
      %v1644 = vpop.f32.mrf.mxu0
      %v1645 = vadd.f32 %v1533, %v1644
      %1646 = vmatmul.bf16.gmra.mxu0 %v1491
      %v1647 = vpop.f32.mrf.mxu0
      %v1648 = vadd.f32 %v1533, %v1647
      %v1649 = vpop.f32.mrf.mxu0
      %v1650 = vadd.f32 %v1533, %v1649
      %1651 = vmatmul.bf16.gmra.mxu0 %v1492
      %v1652 = vpop.f32.mrf.mxu0
      %v1653 = vadd.f32 %v1533, %v1652
      %v1654 = vpop.f32.mrf.mxu0
      %v1655 = vadd.f32 %v1533, %v1654
      %1656 = vmatmul.bf16.gmra.mxu0 %v1493
      %v1657 = vpop.f32.mrf.mxu0
      %v1658 = vadd.f32 %v1533, %v1657
      %v1659 = vpop.f32.mrf.mxu0
      %v1660 = vadd.f32 %v1533, %v1659
      %1661 = vmatmul.bf16.gmra.mxu0 %v1494
      %v1662 = vpop.f32.mrf.mxu0
      %v1663 = vadd.f32 %v1533, %v1662
      %v1664 = vpop.f32.mrf.mxu0
      %v1665 = vadd.f32 %v1533, %v1664
      %1666 = vmatmul.bf16.gmra.mxu0 %v1495
      %v1667 = vpop.f32.mrf.mxu0
      %v1668 = vadd.f32 %v1533, %v1667
      %v1669 = vpop.f32.mrf.mxu0
      %v1670 = vadd.f32 %v1533, %v1669
      %1671 = vmatmul.bf16.gmra.mxu0 %v1496
      %v1672 = vpop.f32.mrf.mxu0
      %v1673 = vadd.f32 %v1533, %v1672
      %v1674 = vpop.f32.mrf.mxu0
      %v1675 = vadd.f32 %v1533, %v1674
      %1676 = vmatmul.bf16.gmra.mxu0 %v1497
      %v1677 = vpop.f32.mrf.mxu0
      %v1678 = vadd.f32 %v1533, %v1677
      %v1679 = vpop.f32.mrf.mxu0
      %v1680 = vadd.f32 %v1533, %v1679
      %1681 = vmatmul.bf16.gmra.mxu0 %v1498
      %v1682 = vpop.f32.mrf.mxu0
      %v1683 = vadd.f32 %v1533, %v1682
      %v1684 = vpop.f32.mrf.mxu0
      %v1685 = vadd.f32 %v1533, %v1684
      %1686 = vmatmul.bf16.gmra.mxu0 %v1499
      %v1687 = vpop.f32.mrf.mxu0
      %v1688 = vadd.f32 %v1533, %v1687
      %v1689 = vpop.f32.mrf.mxu0
      %v1690 = vadd.f32 %v1533, %v1689
      %1691 = vmatmul.bf16.gmra.mxu0 %v1500
      %v1692 = vpop.f32.mrf.mxu0
      %v1693 = vadd.f32 %v1533, %v1692
      %v1694 = vpop.f32.mrf.mxu0
      %v1695 = vadd.f32 %v1533, %v1694
      %1696 = vmatmul.bf16.gmra.mxu0 %v1501
      %v1697 = vpop.f32.mrf.mxu0
      %v1698 = vadd.f32 %v1533, %v1697
      %v1699 = vpop.f32.mrf.mxu0
      %v1700 = vadd.f32 %v1533, %v1699
      %1701 = vmatmul.bf16.gmra.mxu0 %v1502
      %v1702 = vpop.f32.mrf.mxu0
      %v1703 = vadd.f32 %v1533, %v1702
      %v1704 = vpop.f32.mrf.mxu0
      %v1705 = vadd.f32 %v1533, %v1704
      %1706 = vmatmul.bf16.gmra.mxu0 %v1503
      %v1707 = vpop.f32.mrf.mxu0
      %v1708 = vadd.f32 %v1533, %v1707
      %v1709 = vpop.f32.mrf.mxu0
      %v1710 = vadd.f32 %v1533, %v1709
      %1711 = vmatmul.bf16.gmra.mxu0 %v1504
      %v1712 = vpop.f32.mrf.mxu0
      %v1713 = vadd.f32 %v1533, %v1712
      %v1714 = vpop.f32.mrf.mxu0
      %v1715 = vadd.f32 %v1533, %v1714
      %1716 = vmatmul.bf16.gmra.mxu0 %v1505
      %v1717 = vpop.f32.mrf.mxu0
      %v1718 = vadd.f32 %v1533, %v1717
      %v1719 = vpop.f32.mrf.mxu0
      %v1720 = vadd.f32 %v1533, %v1719
      %1721 = vmatmul.bf16.gmra.mxu0 %v1506
      %v1722 = vpop.f32.mrf.mxu0
      %v1723 = vadd.f32 %v1533, %v1722
      %v1724 = vpop.f32.mrf.mxu0
      %v1725 = vadd.f32 %v1533, %v1724
      %1726 = vmatmul.bf16.gmra.mxu0 %v1507
      %v1727 = vpop.f32.mrf.mxu0
      %v1728 = vadd.f32 %v1533, %v1727
      %v1729 = vpop.f32.mrf.mxu0
      %v1730 = vadd.f32 %v1533, %v1729
      %1731 = vmatmul.bf16.gmra.mxu0 %v1508
      %v1732 = vpop.f32.mrf.mxu0
      %v1733 = vadd.f32 %v1533, %v1732
      %v1734 = vpop.f32.mrf.mxu0
      %v1735 = vadd.f32 %v1533, %v1734
      %1736 = vmatmul.bf16.gmra.mxu0 %v1509
      %v1737 = vpop.f32.mrf.mxu0
      %v1738 = vadd.f32 %v1533, %v1737
      %v1739 = vpop.f32.mrf.mxu0
      %v1740 = vadd.f32 %v1533, %v1739
      %1741 = vmatmul.bf16.gmra.mxu0 %v1510
      %v1742 = vpop.f32.mrf.mxu0
      %v1743 = vadd.f32 %v1533, %v1742
      %v1744 = vpop.f32.mrf.mxu0
      %v1745 = vadd.f32 %v1533, %v1744
      %1746 = vmatmul.bf16.gmra.mxu0 %v1511
      %v1747 = vpop.f32.mrf.mxu0
      %v1748 = vadd.f32 %v1533, %v1747
      %v1749 = vpop.f32.mrf.mxu0
      %v1750 = vadd.f32 %v1533, %v1749
      %1751 = vmatmul.bf16.gmra.mxu0 %v1512
      %v1752 = vpop.f32.mrf.mxu0
      %v1753 = vadd.f32 %v1533, %v1752
      %v1754 = vpop.f32.mrf.mxu0
      %v1755 = vadd.f32 %v1533, %v1754
      %1756 = vmatmul.bf16.gmra.mxu0 %v1513
      %v1757 = vpop.f32.mrf.mxu0
      %v1758 = vadd.f32 %v1533, %v1757
      %v1759 = vpop.f32.mrf.mxu0
      %v1760 = vadd.f32 %v1533, %v1759
      %1761 = vmatmul.bf16.gmra.mxu0 %v1514
      %v1762 = vpop.f32.mrf.mxu0
      %v1763 = vadd.f32 %v1533, %v1762
      %v1764 = vpop.f32.mrf.mxu0
      %1765 = vdwg.mxu0
      %v1766 = vmul.f32 %v1593, 0.01
      %v1767 = vmul.f32 %v1595, 0.01
      %v1768 = vmul.f32 %v1598, 0.01
      %v1769 = vmul.f32 %v1600, 0.01
      %v1770 = vmul.f32 %v1603, 0.01
      %v1771 = vmul.f32 %v1605, 0.01
      %v1772 = vmul.f32 %v1608, 0.01
      %v1773 = vmul.f32 %v1610, 0.01
      %v1774 = vmul.f32 %v1613, 0.01
      %v1775 = vmul.f32 %v1615, 0.01
      %v1776 = vmul.f32 %v1618, 0.01
      %v1777 = vmul.f32 %v1620, 0.01
      %v1778 = vmul.f32 %v1623, 0.01
      %v1779 = vmul.f32 %v1625, 0.01
      %v1780 = vmul.f32 %v1628, 0.01
      %v1781 = vmul.f32 %v1630, 0.01
      %v1782 = vmul.f32 %v1633, 0.01
      %v1783 = vmul.f32 %v1635, 0.01
      %v1784 = vmul.f32 %v1638, 0.01
      %v1785 = vmul.f32 %v1640, 0.01
      %v1786 = vmul.f32 %v1643, 0.01
      %v1787 = vmul.f32 %v1645, 0.01
      %v1788 = vmul.f32 %v1648, 0.01
      %v1789 = vmul.f32 %v1650, 0.01
      %v1790 = vmul.f32 %v1653, 0.01
      %v1791 = vmul.f32 %v1655, 0.01
      %v1792 = vmul.f32 %v1658, 0.01
      %v1793 = vmul.f32 %v1660, 0.01
      %v1794 = vmul.f32 %v1663, 0.01
      %v1795 = vmul.f32 %v1665, 0.01
      %v1796 = vmul.f32 %v1668, 0.01
      %v1797 = vmul.f32 %v1670, 0.01
      %v1798 = vmul.f32 %v1673, 0.01
      %v1799 = vmul.f32 %v1675, 0.01
      %v1800 = vmul.f32 %v1678, 0.01
      %v1801 = vmul.f32 %v1680, 0.01
      %v1802 = vmul.f32 %v1683, 0.01
      %v1803 = vmul.f32 %v1685, 0.01
      %v1804 = vmul.f32 %v1688, 0.01
      %v1805 = vmul.f32 %v1690, 0.01
      %v1806 = vmul.f32 %v1693, 0.01
      %v1807 = vmul.f32 %v1695, 0.01
      %v1808 = vmul.f32 %v1698, 0.01
      %v1809 = vmul.f32 %v1700, 0.01
      %v1810 = vmul.f32 %v1703, 0.01
      %v1811 = vmul.f32 %v1705, 0.01
      %v1812 = vmul.f32 %v1708, 0.01
      %v1813 = vmul.f32 %v1710, 0.01
      %v1814 = vmul.f32 %v1713, 0.01
      %v1815 = vmul.f32 %v1715, 0.01
      %v1816 = vmul.f32 %v1718, 0.01
      %v1817 = vmul.f32 %v1720, 0.01
      %v1818 = vmul.f32 %v1723, 0.01
      %v1819 = vmul.f32 %v1725, 0.01
      %v1820 = vmul.f32 %v1728, 0.01
      %v1821 = vmul.f32 %v1730, 0.01
      %v1822 = vmul.f32 %v1733, 0.01
      %v1823 = vmul.f32 %v1735, 0.01
      %v1824 = vmul.f32 %v1738, 0.01
      %v1825 = vmul.f32 %v1740, 0.01
      %v1826 = vmul.f32 %v1743, 0.01
      %v1827 = vmul.f32 %v1745, 0.01
      %v1828 = vmul.f32 %v1748, 0.01
      %v1829 = vmul.f32 %v1750, 0.01
      %v1830 = vmul.f32 %v1753, 0.01
      %v1831 = vmul.f32 %v1755, 0.01
      %v1832 = vmul.f32 %v1758, 0.01
      %v1833 = vmul.f32 %v1760, 0.01
      %v1834 = vmul.f32 %v1763, 0.01
      %v1835 = vmax.f32 %v1593, %v1766
      %v1836 = vmax.f32 %v1595, %v1767
      %v1837 = vmax.f32 %v1598, %v1768
      %v1838 = vmax.f32 %v1600, %v1769
      %v1839 = vmax.f32 %v1603, %v1770
      %v1840 = vmax.f32 %v1605, %v1771
      %v1841 = vmax.f32 %v1608, %v1772
      %v1842 = vmax.f32 %v1610, %v1773
      %v1843 = vmax.f32 %v1613, %v1774
      %v1844 = vmax.f32 %v1615, %v1775
      %v1845 = vmax.f32 %v1618, %v1776
      %v1846 = vmax.f32 %v1620, %v1777
      %v1847 = vmax.f32 %v1623, %v1778
      %v1848 = vmax.f32 %v1625, %v1779
      %v1849 = vmax.f32 %v1628, %v1780
      %v1850 = vmax.f32 %v1630, %v1781
      %v1851 = vmax.f32 %v1633, %v1782
      %v1852 = vmax.f32 %v1635, %v1783
      %v1853 = vmax.f32 %v1638, %v1784
      %v1854 = vmax.f32 %v1640, %v1785
      %v1855 = vmax.f32 %v1643, %v1786
      %v1856 = vmax.f32 %v1645, %v1787
      %v1857 = vmax.f32 %v1648, %v1788
      %v1858 = vmax.f32 %v1650, %v1789
      %v1859 = vmax.f32 %v1653, %v1790
      %v1860 = vmax.f32 %v1655, %v1791
      %v1861 = vmax.f32 %v1658, %v1792
      %v1862 = vmax.f32 %v1660, %v1793
      %v1863 = vmax.f32 %v1663, %v1794
      %v1864 = vmax.f32 %v1665, %v1795
      %v1865 = vmax.f32 %v1668, %v1796
      %v1866 = vmax.f32 %v1670, %v1797
      %v1867 = vmax.f32 %v1673, %v1798
      %v1868 = vmax.f32 %v1675, %v1799
      %v1869 = vmax.f32 %v1678, %v1800
      %v1870 = vmax.f32 %v1680, %v1801
      %v1871 = vmax.f32 %v1683, %v1802
      %v1872 = vmax.f32 %v1685, %v1803
      %v1873 = vmax.f32 %v1688, %v1804
      %v1874 = vmax.f32 %v1690, %v1805
      %v1875 = vmax.f32 %v1693, %v1806
      %v1876 = vmax.f32 %v1695, %v1807
      %v1877 = vmax.f32 %v1698, %v1808
      %v1878 = vmax.f32 %v1700, %v1809
      %v1879 = vmax.f32 %v1703, %v1810
      %v1880 = vmax.f32 %v1705, %v1811
      %v1881 = vmax.f32 %v1708, %v1812
      %v1882 = vmax.f32 %v1710, %v1813
      %v1883 = vmax.f32 %v1713, %v1814
      %v1884 = vmax.f32 %v1715, %v1815
      %v1885 = vmax.f32 %v1718, %v1816
      %v1886 = vmax.f32 %v1720, %v1817
      %v1887 = vmax.f32 %v1723, %v1818
      %v1888 = vmax.f32 %v1725, %v1819
      %v1889 = vmax.f32 %v1728, %v1820
      %v1890 = vmax.f32 %v1730, %v1821
      %v1891 = vmax.f32 %v1733, %v1822
      %v1892 = vmax.f32 %v1735, %v1823
      %v1893 = vmax.f32 %v1738, %v1824
      %v1894 = vmax.f32 %v1740, %v1825
      %v1895 = vmax.f32 %v1743, %v1826
      %v1896 = vmax.f32 %v1745, %v1827
      %v1897 = vmax.f32 %v1748, %v1828
      %v1898 = vmax.f32 %v1750, %v1829
      %v1899 = vmax.f32 %v1753, %v1830
      %v1900 = vmax.f32 %v1755, %v1831
      %v1901 = vmax.f32 %v1758, %v1832
      %v1902 = vmax.f32 %v1760, %v1833
      %v1903 = vmax.f32 %v1763, %v1834
      %vm1904 = vcmask 490496
      %1905 = vst.msk [vmem:[%s229] sm:$0xff] %vm1904, %v1835
      %1906 = vst.msk [vmem:[%s229 + $0x8] sm:$0xff] %vm1904, %v1836
      %1907 = vst.msk [vmem:[%s229 + $0x10] sm:$0xff] %vm1904, %v1837
      %1908 = vst.msk [vmem:[%s229 + $0x18] sm:$0xff] %vm1904, %v1838
      %1909 = vst.msk [vmem:[%s229 + $0x20] sm:$0xff] %vm1904, %v1839
      %1910 = vst.msk [vmem:[%s229 + $0x28] sm:$0xff] %vm1904, %v1840
      %1911 = vst.msk [vmem:[%s229 + $0x30] sm:$0xff] %vm1904, %v1841
      %1912 = vst.msk [vmem:[%s229 + $0x38] sm:$0xff] %vm1904, %v1842
      %1913 = vst.msk [vmem:[%s229 + $0x40] sm:$0xff] %vm1904, %v1843
      %1914 = vst.msk [vmem:[%s229 + $0x48] sm:$0xff] %vm1904, %v1844
      %1915 = vst.msk [vmem:[%s229 + $0x50] sm:$0xff] %vm1904, %v1845
      %1916 = vst.msk [vmem:[%s229 + $0x58] sm:$0xff] %vm1904, %v1846
      %1917 = vst.msk [vmem:[%s229 + $0x60] sm:$0xff] %vm1904, %v1847
      %1918 = vst.msk [vmem:[%s229 + $0x68] sm:$0xff] %vm1904, %v1848
      %1919 = vst.msk [vmem:[%s229 + $0x70] sm:$0xff] %vm1904, %v1849
      %1920 = vst.msk [vmem:[%s229 + $0x78] sm:$0xff] %vm1904, %v1850
      %1921 = vst.msk [vmem:[%s229 + $0x80] sm:$0xff] %vm1904, %v1851
      %1922 = vst.msk [vmem:[%s229 + $0x88] sm:$0xff] %vm1904, %v1852
      %1923 = vst.msk [vmem:[%s229 + $0x90] sm:$0xff] %vm1904, %v1853
      %1924 = vst.msk [vmem:[%s229 + $0x98] sm:$0xff] %vm1904, %v1854
      %1925 = vst.msk [vmem:[%s229 + $0xa0] sm:$0xff] %vm1904, %v1855
      %1926 = vst.msk [vmem:[%s229 + $0xa8] sm:$0xff] %vm1904, %v1856
      %1927 = vst.msk [vmem:[%s229 + $0xb0] sm:$0xff] %vm1904, %v1857
      %1928 = vst.msk [vmem:[%s229 + $0xb8] sm:$0xff] %vm1904, %v1858
      %1929 = vst.msk [vmem:[%s229 + $0xc0] sm:$0xff] %vm1904, %v1859
      %1930 = vst.msk [vmem:[%s229 + $0xc8] sm:$0xff] %vm1904, %v1860
      %1931 = vst.msk [vmem:[%s229 + $0xd0] sm:$0xff] %vm1904, %v1861
      %1932 = vst.msk [vmem:[%s229 + $0xd8] sm:$0xff] %vm1904, %v1862
      %1933 = vst.msk [vmem:[%s229 + $0xe0] sm:$0xff] %vm1904, %v1863
      %1934 = vst.msk [vmem:[%s229 + $0xe8] sm:$0xff] %vm1904, %v1864
      %1935 = vst.msk [vmem:[%s229 + $0xf0] sm:$0xff] %vm1904, %v1865
      %1936 = vst.msk [vmem:[%s229 + $0xf8] sm:$0xff] %vm1904, %v1866
      %1937 = vst.msk [vmem:[%s229 + $0x100] sm:$0xff] %vm1904, %v1867
      %1938 = vst.msk [vmem:[%s229 + $0x108] sm:$0xff] %vm1904, %v1868
      %1939 = vst.msk [vmem:[%s229 + $0x110] sm:$0xff] %vm1904, %v1869
      %1940 = vst.msk [vmem:[%s229 + $0x118] sm:$0xff] %vm1904, %v1870
      %1941 = vst.msk [vmem:[%s229 + $0x120] sm:$0xff] %vm1904, %v1871
      %1942 = vst.msk [vmem:[%s229 + $0x128] sm:$0xff] %vm1904, %v1872
      %1943 = vst.msk [vmem:[%s229 + $0x130] sm:$0xff] %vm1904, %v1873
      %1944 = vst.msk [vmem:[%s229 + $0x138] sm:$0xff] %vm1904, %v1874
      %1945 = vst.msk [vmem:[%s229 + $0x140] sm:$0xff] %vm1904, %v1875
      %1946 = vst.msk [vmem:[%s229 + $0x148] sm:$0xff] %vm1904, %v1876
      %1947 = vst.msk [vmem:[%s229 + $0x150] sm:$0xff] %vm1904, %v1877
      %1948 = vst.msk [vmem:[%s229 + $0x158] sm:$0xff] %vm1904, %v1878
      %1949 = vst.msk [vmem:[%s229 + $0x160] sm:$0xff] %vm1904, %v1879
      %1950 = vst.msk [vmem:[%s229 + $0x168] sm:$0xff] %vm1904, %v1880
      %1951 = vst.msk [vmem:[%s229 + $0x170] sm:$0xff] %vm1904, %v1881
      %1952 = vst.msk [vmem:[%s229 + $0x178] sm:$0xff] %vm1904, %v1882
      %1953 = vst.msk [vmem:[%s229 + $0x180] sm:$0xff] %vm1904, %v1883
      %1954 = vst.msk [vmem:[%s229 + $0x188] sm:$0xff] %vm1904, %v1884
      %1955 = vst.msk [vmem:[%s229 + $0x190] sm:$0xff] %vm1904, %v1885
      %1956 = vst.msk [vmem:[%s229 + $0x198] sm:$0xff] %vm1904, %v1886
      %1957 = vst.msk [vmem:[%s229 + $0x1a0] sm:$0xff] %vm1904, %v1887
      %1958 = vst.msk [vmem:[%s229 + $0x1a8] sm:$0xff] %vm1904, %v1888
      %1959 = vst.msk [vmem:[%s229 + $0x1b0] sm:$0xff] %vm1904, %v1889
      %1960 = vst.msk [vmem:[%s229 + $0x1b8] sm:$0xff] %vm1904, %v1890
      %1961 = vst.msk [vmem:[%s229 + $0x1c0] sm:$0xff] %vm1904, %v1891
      %1962 = vst.msk [vmem:[%s229 + $0x1c8] sm:$0xff] %vm1904, %v1892
      %1963 = vst.msk [vmem:[%s229 + $0x1d0] sm:$0xff] %vm1904, %v1893
      %1964 = vst.msk [vmem:[%s229 + $0x1d8] sm:$0xff] %vm1904, %v1894
      %1965 = vst.msk [vmem:[%s229 + $0x1e0] sm:$0xff] %vm1904, %v1895
      %1966 = vst.msk [vmem:[%s229 + $0x1e8] sm:$0xff] %vm1904, %v1896
      %1967 = vst.msk [vmem:[%s229 + $0x1f0] sm:$0xff] %vm1904, %v1897
      %1968 = vst.msk [vmem:[%s229 + $0x1f8] sm:$0xff] %vm1904, %v1898
      %1969 = vst.msk [vmem:[%s229 + $0x200] sm:$0xff] %vm1904, %v1899
      %1970 = vst.msk [vmem:[%s229 + $0x208] sm:$0xff] %vm1904, %v1900
      %1971 = vst.msk [vmem:[%s229 + $0x210] sm:$0xff] %vm1904, %v1901
      %1972 = vst.msk [vmem:[%s229 + $0x218] sm:$0xff] %vm1904, %v1902
      %1973 = vst.msk [vmem:[%s229 + $0x220] sm:$0xff] %vm1904, %v1903
      %s1974 = smul.u32 69, %s16
      %p1975 = scmp.lt.s32.totalorder %s1974, 137
      %s1976 = scalar_select %p1975, %s1974, 137
      %s1977 = smul.addr %s1976, 8
      %s1978 = scalar_lea.vmem %s5, %s1977
      // Predicated region
      $region41: #{tpu_custom_call.1} parent=39 // pred_check
        %p1979 = pneg %p144
      $region42: #{tpu_custom_call.1} parent=39 // pred_check_branch
        %1981 = sbr.rel (%p1979) target = $region44
      $region43: #{tpu_custom_call.1} parent=39 // pred_region
        %s1982 = smul.u32 69, %s16
      $region44: #{tpu_custom_call.1} parent=39 // pred_fallthru
        _
    $region40: #{tpu_custom_call.1} parent=5 // pred_fallthru
      _
    %p1983 = scmp.le.s32.totalorder 2, %s11
    // Predicated region
    $region45: #{tpu_custom_call.1} parent=5 // pred_check
      %p1984 = pneg %p1983
    $region46: #{tpu_custom_call.1} parent=5 // pred_check_branch
      %1986 = sbr.rel (%p1984) target = $region48
    $region47: #{tpu_custom_call.1} parent=5 // pred_region
      %s1987 = ssub.s32 %s11, 2
      // Predicated region
      $region49: #{tpu_custom_call.1} parent=47 // pred_check
        %p1988 = pneg %p150
      $region50: #{tpu_custom_call.1} parent=47 // pred_check_branch
        %1990 = sbr.rel (%p1988) target = $region52
      $region51: #{tpu_custom_call.1} parent=47 // pred_region
        %s1991 = smul.u32 69, %s17
        %p1992 = scmp.lt.s32.totalorder %s1991, 137
        %s1993 = scalar_select %p1992, %s1991, 137
        %s1994 = smul.addr %s1993, 8
        %s1995 = scalar_lea.vmem %s5, %s1994
      $region52: #{tpu_custom_call.1} parent=47 // pred_fallthru
        _
    $region48: #{tpu_custom_call.1} parent=5 // pred_fallthru
      _
  $region6: #{tpu_custom_call.1} parent=0 // loop_footer
    %s15 = sadd.s32 1, %s11
  $region7: #{tpu_custom_call.1} parent=0 // loop_footer_branch
    %10 = sbr.rel target = $region3
  $region8: #{tpu_custom_call.1} parent=0 // loop_exit
    _

// kernel: tpu_custom_call.1
$region0: #{tpu_custom_call.1}
  #allocation0 [shape = 'u32[]', space=smem, size = 0x4, offset = 0x4, fixed_abs, tag = 'smem constant byte address 0x4 - core index']
  #allocation1 [shape = 'u32[72,128]{1,0:T(1,128)}', space=vmem, size = 0x9000, scoped, tag = 'internal scratch']
  %s0 = inlined_call_operand.vmem [shape: f32[1100,270], index: 0, kind: input, shape index: {}]
  %s1 = inlined_call_operand.vmem [shape: bf16[270,128], index: 1, kind: input, shape index: {}]
  %s2 = inlined_call_operand.vmem [shape: f32[1,128], index: 2, kind: input, shape index: {}]
  %s3 = inlined_call_operand.vmem [shape: bf16[128,60], index: 3, kind: input, shape index: {}]
  %s4 = inlined_call_operand.vmem [shape: f32[1,60], index: 4, kind: input, shape index: {}]
  %s5 = inlined_call_operand.vmem [shape: f32[1100,60], index: 5, kind: output, shape index: {}]
  %s6 = sld [smem:[#allocation0]]
  $region53: #{tpu_custom_call.1} parent=0
    _
  %s8 = ssub.s32 1, %s6
  %s9 = scalar_select 0, %s8, %s6
  loop: start=0, step=1, limit=4
  $region2: #{tpu_custom_call.1} parent=0 // loop_pre_header
    _
  $region3: #{tpu_custom_call.1} parent=0 // loop_header
    %s11 = sphi 0, %s15
    %p12 = scmp.ge.s32.totalorder %s11, 4
    %s21 = sphi 0, %s23
    %s24 = sphi 0, %s21
    %s25 = sphi 0, %s24
    %s41 = sphi 0, %s25
    %s45 = sphi 0, %s45
    %s47 = sphi 0, %s45
    %s48 = sphi 0, %s47
    %s62 = sphi 0, %s48
    %s66 = sphi 0, %s66
    %s68 = sphi 0, %s66
    %s69 = sphi 0, %s68
    %s83 = sphi 0, %s69
    %s87 = sphi 0, %s87
    %s89 = sphi 0, %s87
    %s90 = sphi 0, %s89
    %s104 = sphi 0, %s90
    %s108 = sphi 0, %s108
    %s110 = sphi 0, %s108
    %s111 = sphi 0, %s110
    %s125 = sphi 0, %s111
    %s131 = sphi 0, %s133
    %s134 = sphi 0, %s131
    %s135 = sphi 0, %s134
    %s151 = sphi 0, %s135
  $region4: #{tpu_custom_call.1} parent=0 // loop_header_branch
    %14 = sbr.rel (%p12) target = $region8
  $region5: #{tpu_custom_call.1} parent=0 // loop_body
    %s16 = ssub.s32 %s11, 1
    %s17 = ssub.s32 %s11, 2
    %s18 = sadd.s32 %s11, 1
    %s19 = ssub.s32 %s11, %s18
    %p20 = scmp.eq.s32.totalorder %s19, 0
    %s22 = sadd.s32 %s21, 1
    %s23 = scalar_select %p20, %s21, %s22
    %p26 = pneg %p20
    %p27 = scmp.eq.s32.totalorder %s11, 1
    %p28 = por %p26, %p27
    %p29 = scmp.ne.s32.totalorder %s21, %s24
    %p30 = scmp.eq.s32.totalorder %s11, 0
    %p31 = por %p29, %p30
    %p32 = scmp.ne.s32.totalorder %s21, %s24
    %p33 = scmp.eq.s32.totalorder %s16, 1
    %p34 = por %p32, %p33
    %p35 = scmp.ne.s32.totalorder %s24, %s25
    %p36 = scmp.eq.s32.totalorder %s16, 0
    %p37 = por %p35, %p36
    %p38 = scmp.ne.s32.totalorder %s24, %s25
    %p39 = scmp.eq.s32.totalorder %s17, 1
    %p40 = por %p38, %p39
    %p42 = scmp.ne.s32.totalorder %s25, %s41
    %p43 = scmp.eq.s32.totalorder %s17, 0
    %p44 = por %p42, %p43
    %s46 = sadd.s32 %s45, 1
    %p49 = scmp.eq.s32.totalorder %s11, 1
    %p50 = scmp.ne.s32.totalorder %s45, %s47
    %p51 = scmp.eq.s32.totalorder %s11, 0
    %p52 = por %p50, %p51
    %p53 = scmp.ne.s32.totalorder %s45, %s47
    %p54 = scmp.eq.s32.totalorder %s16, 1
    %p55 = por %p53, %p54
    %p56 = scmp.ne.s32.totalorder %s47, %s48
    %p57 = scmp.eq.s32.totalorder %s16, 0
    %p58 = por %p56, %p57
    %p59 = scmp.ne.s32.totalorder %s47, %s48
    %p60 = scmp.eq.s32.totalorder %s17, 1
    %p61 = por %p59, %p60
    %p63 = scmp.ne.s32.totalorder %s48, %s62
    %p64 = scmp.eq.s32.totalorder %s17, 0
    %p65 = por %p63, %p64
    %s67 = sadd.s32 %s66, 1
    %p70 = scmp.eq.s32.totalorder %s11, 1
    %p71 = scmp.ne.s32.totalorder %s66, %s68
    %p72 = scmp.eq.s32.totalorder %s11, 0
    %p73 = por %p71, %p72
    %p74 = scmp.ne.s32.totalorder %s66, %s68
    %p75 = scmp.eq.s32.totalorder %s16, 1
    %p76 = por %p74, %p75
    %p77 = scmp.ne.s32.totalorder %s68, %s69
    %p78 = scmp.eq.s32.totalorder %s16, 0
    %p79 = por %p77, %p78
    %p80 = scmp.ne.s32.totalorder %s68, %s69
    %p81 = scmp.eq.s32.totalorder %s17, 1
    %p82 = por %p80, %p81
    %p84 = scmp.ne.s32.totalorder %s69, %s83
    %p85 = scmp.eq.s32.totalorder %s17, 0
    %p86 = por %p84, %p85
    %s88 = sadd.s32 %s87, 1
    %p91 = scmp.eq.s32.totalorder %s11, 1
    %p92 = scmp.ne.s32.totalorder %s87, %s89
    %p93 = scmp.eq.s32.totalorder %s11, 0
    %p94 = por %p92, %p93
    %p95 = scmp.ne.s32.totalorder %s87, %s89
    %p96 = scmp.eq.s32.totalorder %s16, 1
    %p97 = por %p95, %p96
    %p98 = scmp.ne.s32.totalorder %s89, %s90
    %p99 = scmp.eq.s32.totalorder %s16, 0
    %p100 = por %p98, %p99
    %p101 = scmp.ne.s32.totalorder %s89, %s90
    %p102 = scmp.eq.s32.totalorder %s17, 1
    %p103 = por %p101, %p102
    %p105 = scmp.ne.s32.totalorder %s90, %s104
    %p106 = scmp.eq.s32.totalorder %s17, 0
    %p107 = por %p105, %p106
    %s109 = sadd.s32 %s108, 1
    %p112 = scmp.eq.s32.totalorder %s11, 1
    %p113 = scmp.ne.s32.totalorder %s108, %s110
    %p114 = scmp.eq.s32.totalorder %s11, 0
    %p115 = por %p113, %p114
    %p116 = scmp.ne.s32.totalorder %s108, %s110
    %p117 = scmp.eq.s32.totalorder %s16, 1
    %p118 = por %p116, %p117
    %p119 = scmp.ne.s32.totalorder %s110, %s111
    %p120 = scmp.eq.s32.totalorder %s16, 0
    %p121 = por %p119, %p120
    %p122 = scmp.ne.s32.totalorder %s110, %s111
    %p123 = scmp.eq.s32.totalorder %s17, 1
    %p124 = por %p122, %p123
    %p126 = scmp.ne.s32.totalorder %s111, %s125
    %p127 = scmp.eq.s32.totalorder %s17, 0
    %p128 = por %p126, %p127
    %s129 = ssub.s32 %s11, %s18
    %p130 = scmp.eq.s32.totalorder %s129, 0
    %s132 = sadd.s32 %s131, 1
    %s133 = scalar_select %p130, %s131, %s132
    %p136 = pneg %p130
    %p137 = scmp.eq.s32.totalorder %s11, 1
    %p138 = por %p136, %p137
    %p139 = scmp.ne.s32.totalorder %s131, %s134
    %p140 = scmp.eq.s32.totalorder %s11, 0
    %p141 = por %p139, %p140
    %p142 = scmp.ne.s32.totalorder %s131, %s134
    %p143 = scmp.eq.s32.totalorder %s16, 1
    %p144 = por %p142, %p143
    %p145 = scmp.ne.s32.totalorder %s134, %s135
    %p146 = scmp.eq.s32.totalorder %s16, 0
    %p147 = por %p145, %p146
    %p148 = scmp.ne.s32.totalorder %s134, %s135
    %p149 = scmp.eq.s32.totalorder %s17, 1
    %p150 = por %p148, %p149
    %p152 = scmp.ne.s32.totalorder %s135, %s151
    %p153 = scmp.eq.s32.totalorder %s17, 0
    %p154 = por %p152, %p153
    %p155 = scmp.le.s32.totalorder 1, %s11
    %p156 = scmp.lt.s32.totalorder %s11, 3
    %p157 = pnand %p155, %p156
    %p158 = pneg %p157
    // Predicated region
    $region9: #{tpu_custom_call.1} parent=5 // pred_check
      _
    $region10: #{tpu_custom_call.1} parent=5 // pred_check_branch
      %160 = sbr.rel (%p157) target = $region12
    $region11: #{tpu_custom_call.1} parent=5 // pred_region
      %s161 = ssub.s32 %s11, 1
      // Predicated region
      $region13: #{tpu_custom_call.1} parent=11 // pred_check
        %p162 = pneg %p58
      $region14: #{tpu_custom_call.1} parent=11 // pred_check_branch
        %164 = sbr.rel (%p162) target = $region16
      $region15: #{tpu_custom_call.1} parent=11 // pred_region
        _
      $region16: #{tpu_custom_call.1} parent=11 // pred_fallthru
        _
      // Predicated region
      $region17: #{tpu_custom_call.1} parent=11 // pred_check
        %p165 = pneg %p79
      $region18: #{tpu_custom_call.1} parent=11 // pred_check_branch
        %167 = sbr.rel (%p165) target = $region20
      $region19: #{tpu_custom_call.1} parent=11 // pred_region
        _
      $region20: #{tpu_custom_call.1} parent=11 // pred_fallthru
        _
      // Predicated region
      $region21: #{tpu_custom_call.1} parent=11 // pred_check
        %p168 = pneg %p100
      $region22: #{tpu_custom_call.1} parent=11 // pred_check_branch
        %170 = sbr.rel (%p168) target = $region24
      $region23: #{tpu_custom_call.1} parent=11 // pred_region
        _
      $region24: #{tpu_custom_call.1} parent=11 // pred_fallthru
        _
      // Predicated region
      $region25: #{tpu_custom_call.1} parent=11 // pred_check
        %p171 = pneg %p121
      $region26: #{tpu_custom_call.1} parent=11 // pred_check_branch
        %173 = sbr.rel (%p171) target = $region28
      $region27: #{tpu_custom_call.1} parent=11 // pred_region
        _
      $region28: #{tpu_custom_call.1} parent=11 // pred_fallthru
        _
    $region12: #{tpu_custom_call.1} parent=5 // pred_fallthru
      _
    %p174 = scmp.lt.s32.totalorder %s11, 2
    // Predicated region
    $region29: #{tpu_custom_call.1} parent=5 // pred_check
      %p175 = pneg %p174
    $region30: #{tpu_custom_call.1} parent=5 // pred_check_branch
      %177 = sbr.rel (%p175) target = $region32
    $region31: #{tpu_custom_call.1} parent=5 // pred_region
      // Predicated region
      $region33: #{tpu_custom_call.1} parent=31 // pred_check
        %p178 = pneg %p31
      $region34: #{tpu_custom_call.1} parent=31 // pred_check_branch
        %180 = sbr.rel (%p178) target = $region36
      $region35: #{tpu_custom_call.1} parent=31 // pred_region
        %s181 = smul.u32 69, %s11
        %p182 = scmp.lt.s32.totalorder %s181, 137
        %s183 = scalar_select %p182, %s181, 137
        %s184 = smul.addr %s183, 3
        %s185 = smul.addr %s184, 8
        %s186 = scalar_lea.vmem %s0, %s185
        %s187 = smul.u32 69, %s11
      $region36: #{tpu_custom_call.1} parent=31 // pred_fallthru
        _
    $region32: #{tpu_custom_call.1} parent=5 // pred_fallthru
      _
    %p188 = scmp.le.s32.totalorder 1, %s11
    %p189 = scmp.lt.s32.totalorder %s11, 3
    %p190 = pnand %p188, %p189
    %p191 = pneg %p190
    // Predicated region
    $region37: #{tpu_custom_call.1} parent=5 // pred_check
      _
    $region38: #{tpu_custom_call.1} parent=5 // pred_check_branch
      %193 = sbr.rel (%p190) target = $region40
    $region39: #{tpu_custom_call.1} parent=5 // pred_region
      %s194 = ssub.s32 %s11, 1
      %s195 = smul.u32 69, %s16
      %p196 = scmp.lt.s32.totalorder %s195, 137
      %s197 = scalar_select %p196, %s195, 137
      %s198 = smul.addr %s197, 3
      %s199 = smul.addr %s198, 8
      %s200 = scalar_lea.vmem %s0, %s199
      %p201 = pneg %p37
      %p202 = pneg %p34
      %p203 = pneg %p58
      %p204 = pneg %p55
      %p205 = pneg %p79
      %p206 = pneg %p76
      %p207 = pneg %p100
      %p208 = pneg %p97
      %p209 = pneg %p121
      %p210 = pneg %p118
      %p211 = pneg %p147
      %p212 = pneg %p144
      %s213 = smul.u32 69, %s16
      %p214 = scmp.lt.s32.totalorder %s213, 137
      %s215 = scalar_select %p214, %s213, 137
      %s216 = smul.addr %s215, 8
      %s217 = scalar_lea.vmem %s5, %s216
      %s218 = smul.u32 69, %s16
      %p219 = scmp.lt.s32.totalorder %s218, 137
      %s220 = scalar_select %p219, %s218, 137
      %s221 = smul.addr %s220, 3
      %s222 = smul.addr %s221, 8
      %s223 = scalar_lea.vmem %s0, %s222
      %s224 = smul.u32 69, %s16
      %s225 = smul.u32 69, %s16
      %p226 = scmp.lt.s32.totalorder %s225, 137
      %s227 = scalar_select %p226, %s225, 137
      %s228 = smul.addr %s227, 8
      %s229 = scalar_lea.vmem %s5, %s228
      %s230 = smul.u32 69, %s16
      %v232 = vld [vmem:[%s223] sm:$0xff]
      %v233 = vld [vmem:[%s223 + $0x8] sm:$0xff]
      %v234 = vld [vmem:[%s223 + $0x10] sm:$0xff]
      %v235 = vld [vmem:[%s223 + $0x18] sm:$0xff]
      %v236 = vld [vmem:[%s223 + $0x20] sm:$0xff]
      %v237 = vld [vmem:[%s223 + $0x28] sm:$0xff]
      %v238 = vld [vmem:[%s223 + $0x30] sm:$0xff]
      %v239 = vld [vmem:[%s223 + $0x38] sm:$0xff]
      %v240 = vld [vmem:[%s223 + $0x40] sm:$0xff]
      %v241 = vld [vmem:[%s223 + $0x48] sm:$0xff]
      %v242 = vld [vmem:[%s223 + $0x50] sm:$0xff]
      %v243 = vld [vmem:[%s223 + $0x58] sm:$0xff]
      %v244 = vld [vmem:[%s223 + $0x60] sm:$0xff]
      %v245 = vld [vmem:[%s223 + $0x68] sm:$0xff]
      %v246 = vld [vmem:[%s223 + $0x70] sm:$0xff]
      %v247 = vld [vmem:[%s223 + $0x78] sm:$0xff]
      %v248 = vld [vmem:[%s223 + $0x80] sm:$0xff]
      %v249 = vld [vmem:[%s223 + $0x88] sm:$0xff]
      %v250 = vld [vmem:[%s223 + $0x90] sm:$0xff]
      %v251 = vld [vmem:[%s223 + $0x98] sm:$0xff]
      %v252 = vld [vmem:[%s223 + $0xa0] sm:$0xff]
      %v253 = vld [vmem:[%s223 + $0xa8] sm:$0xff]
      %v254 = vld [vmem:[%s223 + $0xb0] sm:$0xff]
      %v255 = vld [vmem:[%s223 + $0xb8] sm:$0xff]
      %v256 = vld [vmem:[%s223 + $0xc0] sm:$0xff]
      %v257 = vld [vmem:[%s223 + $0xc8] sm:$0xff]
      %v258 = vld [vmem:[%s223 + $0xd0] sm:$0xff]
      %v259 = vld [vmem:[%s223 + $0xd8] sm:$0xff]
      %v260 = vld [vmem:[%s223 + $0xe0] sm:$0xff]
      %v261 = vld [vmem:[%s223 + $0xe8] sm:$0xff]
      %v262 = vld [vmem:[%s223 + $0xf0] sm:$0xff]
      %v263 = vld [vmem:[%s223 + $0xf8] sm:$0xff]
      %v264 = vld [vmem:[%s223 + $0x100] sm:$0xff]
      %v265 = vld [vmem:[%s223 + $0x108] sm:$0xff]
      %v266 = vld [vmem:[%s223 + $0x110] sm:$0xff]
      %v267 = vld [vmem:[%s223 + $0x118] sm:$0xff]
      %v268 = vld [vmem:[%s223 + $0x120] sm:$0xff]
      %v269 = vld [vmem:[%s223 + $0x128] sm:$0xff]
      %v270 = vld [vmem:[%s223 + $0x130] sm:$0xff]
      %v271 = vld [vmem:[%s223 + $0x138] sm:$0xff]
      %v272 = vld [vmem:[%s223 + $0x140] sm:$0xff]
      %v273 = vld [vmem:[%s223 + $0x148] sm:$0xff]
      %v274 = vld [vmem:[%s223 + $0x150] sm:$0xff]
      %v275 = vld [vmem:[%s223 + $0x158] sm:$0xff]
      %v276 = vld [vmem:[%s223 + $0x160] sm:$0xff]
      %v277 = vld [vmem:[%s223 + $0x168] sm:$0xff]
      %v278 = vld [vmem:[%s223 + $0x170] sm:$0xff]
      %v279 = vld [vmem:[%s223 + $0x178] sm:$0xff]
      %v280 = vld [vmem:[%s223 + $0x180] sm:$0xff]
      %v281 = vld [vmem:[%s223 + $0x188] sm:$0xff]
      %v282 = vld [vmem:[%s223 + $0x190] sm:$0xff]
      %v283 = vld [vmem:[%s223 + $0x198] sm:$0xff]
      %v284 = vld [vmem:[%s223 + $0x1a0] sm:$0xff]
      %v285 = vld [vmem:[%s223 + $0x1a8] sm:$0xff]
      %v286 = vld [vmem:[%s223 + $0x1b0] sm:$0xff]
      %v287 = vld [vmem:[%s223 + $0x1b8] sm:$0xff]
      %v288 = vld [vmem:[%s223 + $0x1c0] sm:$0xff]
      %v289 = vld [vmem:[%s223 + $0x1c8] sm:$0xff]
      %v290 = vld [vmem:[%s223 + $0x1d0] sm:$0xff]
      %v291 = vld [vmem:[%s223 + $0x1d8] sm:$0xff]
      %v292 = vld [vmem:[%s223 + $0x1e0] sm:$0xff]
      %v293 = vld [vmem:[%s223 + $0x1e8] sm:$0xff]
      %v294 = vld [vmem:[%s223 + $0x1f0] sm:$0xff]
      %v295 = vld [vmem:[%s223 + $0x1f8] sm:$0xff]
      %v296 = vld [vmem:[%s223 + $0x200] sm:$0xff]
      %v297 = vld [vmem:[%s223 + $0x208] sm:$0xff]
      %v298 = vld [vmem:[%s223 + $0x210] sm:$0xff]
      %v299 = vld [vmem:[%s223 + $0x218] sm:$0xff]
      %v300 = vld [vmem:[%s223 + $0x220] sm:$0xff]
      %v301 = vld [vmem:[%s223 + $0x228] sm:$0xff]
      %v302 = vld [vmem:[%s223 + $0x230] sm:$0xff]
      %v303 = vld [vmem:[%s223 + $0x238] sm:$0xff]
      %v304 = vld [vmem:[%s223 + $0x240] sm:$0xff]
      %v305 = vld [vmem:[%s223 + $0x248] sm:$0xff]
      %v306 = vld [vmem:[%s223 + $0x250] sm:$0xff]
      %v307 = vld [vmem:[%s223 + $0x258] sm:$0xff]
      %v308 = vld [vmem:[%s223 + $0x260] sm:$0xff]
      %v309 = vld [vmem:[%s223 + $0x268] sm:$0xff]
      %v310 = vld [vmem:[%s223 + $0x270] sm:$0xff]
      %v311 = vld [vmem:[%s223 + $0x278] sm:$0xff]
      %v312 = vld [vmem:[%s223 + $0x280] sm:$0xff]
      %v313 = vld [vmem:[%s223 + $0x288] sm:$0xff]
      %v314 = vld [vmem:[%s223 + $0x290] sm:$0xff]
      %v315 = vld [vmem:[%s223 + $0x298] sm:$0xff]
      %v316 = vld [vmem:[%s223 + $0x2a0] sm:$0xff]
      %v317 = vld [vmem:[%s223 + $0x2a8] sm:$0xff]
      %v318 = vld [vmem:[%s223 + $0x2b0] sm:$0xff]
      %v319 = vld [vmem:[%s223 + $0x2b8] sm:$0xff]
      %v320 = vld [vmem:[%s223 + $0x2c0] sm:$0xff]
      %v321 = vld [vmem:[%s223 + $0x2c8] sm:$0xff]
      %v322 = vld [vmem:[%s223 + $0x2d0] sm:$0xff]
      %v323 = vld [vmem:[%s223 + $0x2d8] sm:$0xff]
      %v324 = vld [vmem:[%s223 + $0x2e0] sm:$0xff]
      %v325 = vld [vmem:[%s223 + $0x2e8] sm:$0xff]
      %v326 = vld [vmem:[%s223 + $0x2f0] sm:$0xff]
      %v327 = vld [vmem:[%s223 + $0x2f8] sm:$0xff]
      %v328 = vld [vmem:[%s223 + $0x300] sm:$0xff]
      %v329 = vld [vmem:[%s223 + $0x308] sm:$0xff]
      %v330 = vld [vmem:[%s223 + $0x310] sm:$0xff]
      %v331 = vld [vmem:[%s223 + $0x318] sm:$0xff]
      %v332 = vld [vmem:[%s223 + $0x320] sm:$0xff]
      %v333 = vld [vmem:[%s223 + $0x328] sm:$0xff]
      %v334 = vld [vmem:[%s223 + $0x330] sm:$0xff]
      %v335 = vld [vmem:[%s223 + $0x338] sm:$0xff]
      %v336 = vld [vmem:[%s223 + $0x340] sm:$0xff]
      %v337 = vld [vmem:[%s223 + $0x348] sm:$0xff]
      %v338 = vld [vmem:[%s223 + $0x350] sm:$0xff]
      %v339 = vld [vmem:[%s223 + $0x358] sm:$0xff]
      %v340 = vld [vmem:[%s223 + $0x360] sm:$0xff]
      %v341 = vld [vmem:[%s223 + $0x368] sm:$0xff]
      %v342 = vld [vmem:[%s223 + $0x370] sm:$0xff]
      %v343 = vld [vmem:[%s223 + $0x378] sm:$0xff]
      %v344 = vld [vmem:[%s223 + $0x380] sm:$0xff]
      %v345 = vld [vmem:[%s223 + $0x388] sm:$0xff]
      %v346 = vld [vmem:[%s223 + $0x390] sm:$0xff]
      %v347 = vld [vmem:[%s223 + $0x398] sm:$0xff]
      %v348 = vld [vmem:[%s223 + $0x3a0] sm:$0xff]
      %v349 = vld [vmem:[%s223 + $0x3a8] sm:$0xff]
      %v350 = vld [vmem:[%s223 + $0x3b0] sm:$0xff]
      %v351 = vld [vmem:[%s223 + $0x3b8] sm:$0xff]
      %v352 = vld [vmem:[%s223 + $0x3c0] sm:$0xff]
      %v353 = vld [vmem:[%s223 + $0x3c8] sm:$0xff]
      %v354 = vld [vmem:[%s223 + $0x3d0] sm:$0xff]
      %v355 = vld [vmem:[%s223 + $0x3d8] sm:$0xff]
      %v356 = vld [vmem:[%s223 + $0x3e0] sm:$0xff]
      %v357 = vld [vmem:[%s223 + $0x3e8] sm:$0xff]
      %v358 = vld [vmem:[%s223 + $0x3f0] sm:$0xff]
      %v359 = vld [vmem:[%s223 + $0x3f8] sm:$0xff]
      %v360 = vld [vmem:[%s223 + $0x400] sm:$0xff]
      %v361 = vld [vmem:[%s223 + $0x408] sm:$0xff]
      %v362 = vld [vmem:[%s223 + $0x410] sm:$0xff]
      %v363 = vld [vmem:[%s223 + $0x418] sm:$0xff]
      %v364 = vld [vmem:[%s223 + $0x420] sm:$0xff]
      %v365 = vld [vmem:[%s223 + $0x428] sm:$0xff]
      %v366 = vld [vmem:[%s223 + $0x430] sm:$0xff]
      %v367 = vld [vmem:[%s223 + $0x438] sm:$0xff]
      %v368 = vld [vmem:[%s223 + $0x440] sm:$0xff]
      %v369 = vld [vmem:[%s223 + $0x448] sm:$0xff]
      %v370 = vld [vmem:[%s223 + $0x450] sm:$0xff]
      %v371 = vld [vmem:[%s223 + $0x458] sm:$0xff]
      %v372 = vld [vmem:[%s223 + $0x460] sm:$0xff]
      %v373 = vld [vmem:[%s223 + $0x468] sm:$0xff]
      %v374 = vld [vmem:[%s223 + $0x470] sm:$0xff]
      %v375 = vld [vmem:[%s223 + $0x478] sm:$0xff]
      %v376 = vld [vmem:[%s223 + $0x480] sm:$0xff]
      %v377 = vld [vmem:[%s223 + $0x488] sm:$0xff]
      %v378 = vld [vmem:[%s223 + $0x490] sm:$0xff]
      %v379 = vld [vmem:[%s223 + $0x498] sm:$0xff]
      %v380 = vld [vmem:[%s223 + $0x4a0] sm:$0xff]
      %v381 = vld [vmem:[%s223 + $0x4a8] sm:$0xff]
      %v382 = vld [vmem:[%s223 + $0x4b0] sm:$0xff]
      %v383 = vld [vmem:[%s223 + $0x4b8] sm:$0xff]
      %v384 = vld [vmem:[%s223 + $0x4c0] sm:$0xff]
      %v385 = vld [vmem:[%s223 + $0x4c8] sm:$0xff]
      %v386 = vld [vmem:[%s223 + $0x4d0] sm:$0xff]
      %v387 = vld [vmem:[%s223 + $0x4d8] sm:$0xff]
      %v388 = vld [vmem:[%s223 + $0x4e0] sm:$0xff]
      %v389 = vld [vmem:[%s223 + $0x4e8] sm:$0xff]
      %v390 = vld [vmem:[%s223 + $0x4f0] sm:$0xff]
      %v391 = vld [vmem:[%s223 + $0x4f8] sm:$0xff]
      %v392 = vld [vmem:[%s223 + $0x500] sm:$0xff]
      %v393 = vld [vmem:[%s223 + $0x508] sm:$0xff]
      %v394 = vld [vmem:[%s223 + $0x510] sm:$0xff]
      %v395 = vld [vmem:[%s223 + $0x518] sm:$0xff]
      %v396 = vld [vmem:[%s223 + $0x520] sm:$0xff]
      %v397 = vld [vmem:[%s223 + $0x528] sm:$0xff]
      %v398 = vld [vmem:[%s223 + $0x530] sm:$0xff]
      %v399 = vld [vmem:[%s223 + $0x538] sm:$0xff]
      %v400 = vld [vmem:[%s223 + $0x540] sm:$0xff]
      %v401 = vld [vmem:[%s223 + $0x548] sm:$0xff]
      %v402 = vld [vmem:[%s223 + $0x550] sm:$0xff]
      %v403 = vld [vmem:[%s223 + $0x558] sm:$0xff]
      %v404 = vld [vmem:[%s223 + $0x560] sm:$0xff]
      %v405 = vld [vmem:[%s223 + $0x568] sm:$0xff]
      %v406 = vld [vmem:[%s223 + $0x570] sm:$0xff]
      %v407 = vld [vmem:[%s223 + $0x578] sm:$0xff]
      %v408 = vld [vmem:[%s223 + $0x580] sm:$0xff]
      %v409 = vld [vmem:[%s223 + $0x588] sm:$0xff]
      %v410 = vld [vmem:[%s223 + $0x590] sm:$0xff]
      %v411 = vld [vmem:[%s223 + $0x598] sm:$0xff]
      %v412 = vld [vmem:[%s223 + $0x5a0] sm:$0xff]
      %v413 = vld [vmem:[%s223 + $0x5a8] sm:$0xff]
      %v414 = vld [vmem:[%s223 + $0x5b0] sm:$0xff]
      %v415 = vld [vmem:[%s223 + $0x5b8] sm:$0xff]
      %v416 = vld [vmem:[%s223 + $0x5c0] sm:$0xff]
      %v417 = vld [vmem:[%s223 + $0x5c8] sm:$0xff]
      %v418 = vld [vmem:[%s223 + $0x5d0] sm:$0xff]
      %v419 = vld [vmem:[%s223 + $0x5d8] sm:$0xff]
      %v420 = vld [vmem:[%s223 + $0x5e0] sm:$0xff]
      %v421 = vld [vmem:[%s223 + $0x5e8] sm:$0xff]
      %v422 = vld [vmem:[%s223 + $0x5f0] sm:$0xff]
      %v423 = vld [vmem:[%s223 + $0x5f8] sm:$0xff]
      %v424 = vld [vmem:[%s223 + $0x600] sm:$0xff]
      %v425 = vld [vmem:[%s223 + $0x608] sm:$0xff]
      %v426 = vld [vmem:[%s223 + $0x610] sm:$0xff]
      %v427 = vld [vmem:[%s223 + $0x618] sm:$0xff]
      %v428 = vld [vmem:[%s223 + $0x620] sm:$0xff]
      %v429 = vld [vmem:[%s223 + $0x628] sm:$0xff]
      %v430 = vld [vmem:[%s223 + $0x630] sm:$0xff]
      %v431 = vld [vmem:[%s223 + $0x638] sm:$0xff]
      %v432 = vld [vmem:[%s223 + $0x640] sm:$0xff]
      %v433 = vld [vmem:[%s223 + $0x648] sm:$0xff]
      %v434 = vld [vmem:[%s223 + $0x650] sm:$0xff]
      %v435 = vld [vmem:[%s223 + $0x658] sm:$0xff]
      %v436 = vld [vmem:[%s223 + $0x660] sm:$0xff]
      %v437 = vld [vmem:[%s223 + $0x668] sm:$0xff]
      %v438 = vld [vmem:[%s223 + $0x670] sm:$0xff]
      %v439 = vpack.c.bf16 %v235, %v232
      %v440 = vpack.c.bf16 %v236, %v233
      %v441 = vpack.c.bf16 %v237, %v234
      %v442 = vpack.c.bf16 %v241, %v238
      %v443 = vpack.c.bf16 %v242, %v239
      %v444 = vpack.c.bf16 %v243, %v240
      %v445 = vpack.c.bf16 %v247, %v244
      %v446 = vpack.c.bf16 %v248, %v245
      %v447 = vpack.c.bf16 %v249, %v246
      %v448 = vpack.c.bf16 %v253, %v250
      %v449 = vpack.c.bf16 %v254, %v251
      %v450 = vpack.c.bf16 %v255, %v252
      %v451 = vpack.c.bf16 %v259, %v256
      %v452 = vpack.c.bf16 %v260, %v257
      %v453 = vpack.c.bf16 %v261, %v258
      %v454 = vpack.c.bf16 %v265, %v262
      %v455 = vpack.c.bf16 %v266, %v263
      %v456 = vpack.c.bf16 %v267, %v264
      %v457 = vpack.c.bf16 %v271, %v268
      %v458 = vpack.c.bf16 %v272, %v269
      %v459 = vpack.c.bf16 %v273, %v270
      %v460 = vpack.c.bf16 %v277, %v274
      %v461 = vpack.c.bf16 %v278, %v275
      %v462 = vpack.c.bf16 %v279, %v276
      %v463 = vpack.c.bf16 %v283, %v280
      %v464 = vpack.c.bf16 %v284, %v281
      %v465 = vpack.c.bf16 %v285, %v282
      %v466 = vpack.c.bf16 %v289, %v286
      %v467 = vpack.c.bf16 %v290, %v287
      %v468 = vpack.c.bf16 %v291, %v288
      %v469 = vpack.c.bf16 %v295, %v292
      %v470 = vpack.c.bf16 %v296, %v293
      %v471 = vpack.c.bf16 %v297, %v294
      %v472 = vpack.c.bf16 %v301, %v298
      %v473 = vpack.c.bf16 %v302, %v299
      %v474 = vpack.c.bf16 %v303, %v300
      %v475 = vpack.c.bf16 %v307, %v304
      %v476 = vpack.c.bf16 %v308, %v305
      %v477 = vpack.c.bf16 %v309, %v306
      %v478 = vpack.c.bf16 %v313, %v310
      %v479 = vpack.c.bf16 %v314, %v311
      %v480 = vpack.c.bf16 %v315, %v312
      %v481 = vpack.c.bf16 %v319, %v316
      %v482 = vpack.c.bf16 %v320, %v317
      %v483 = vpack.c.bf16 %v321, %v318
      %v484 = vpack.c.bf16 %v325, %v322
      %v485 = vpack.c.bf16 %v326, %v323
      %v486 = vpack.c.bf16 %v327, %v324
      %v487 = vpack.c.bf16 %v331, %v328
      %v488 = vpack.c.bf16 %v332, %v329
      %v489 = vpack.c.bf16 %v333, %v330
      %v490 = vpack.c.bf16 %v337, %v334
      %v491 = vpack.c.bf16 %v338, %v335
      %v492 = vpack.c.bf16 %v339, %v336
      %v493 = vpack.c.bf16 %v343, %v340
      %v494 = vpack.c.bf16 %v344, %v341
      %v495 = vpack.c.bf16 %v345, %v342
      %v496 = vpack.c.bf16 %v349, %v346
      %v497 = vpack.c.bf16 %v350, %v347
      %v498 = vpack.c.bf16 %v351, %v348
      %v499 = vpack.c.bf16 %v355, %v352
      %v500 = vpack.c.bf16 %v356, %v353
      %v501 = vpack.c.bf16 %v357, %v354
      %v502 = vpack.c.bf16 %v361, %v358
      %v503 = vpack.c.bf16 %v362, %v359
      %v504 = vpack.c.bf16 %v363, %v360
      %v505 = vpack.c.bf16 %v367, %v364
      %v506 = vpack.c.bf16 %v368, %v365
      %v507 = vpack.c.bf16 %v369, %v366
      %v508 = vpack.c.bf16 %v373, %v370
      %v509 = vpack.c.bf16 %v374, %v371
      %v510 = vpack.c.bf16 %v375, %v372
      %v511 = vpack.c.bf16 %v379, %v376
      %v512 = vpack.c.bf16 %v380, %v377
      %v513 = vpack.c.bf16 %v381, %v378
      %v514 = vpack.c.bf16 %v385, %v382
      %v515 = vpack.c.bf16 %v386, %v383
      %v516 = vpack.c.bf16 %v387, %v384
      %v517 = vpack.c.bf16 %v391, %v388
      %v518 = vpack.c.bf16 %v392, %v389
      %v519 = vpack.c.bf16 %v393, %v390
      %v520 = vpack.c.bf16 %v397, %v394
      %v521 = vpack.c.bf16 %v398, %v395
      %v522 = vpack.c.bf16 %v399, %v396
      %v523 = vpack.c.bf16 %v403, %v400
      %v524 = vpack.c.bf16 %v404, %v401
      %v525 = vpack.c.bf16 %v405, %v402
      %v526 = vpack.c.bf16 %v409, %v406
      %v527 = vpack.c.bf16 %v410, %v407
      %v528 = vpack.c.bf16 %v411, %v408
      %v529 = vpack.c.bf16 %v415, %v412
      %v530 = vpack.c.bf16 %v416, %v413
      %v531 = vpack.c.bf16 %v417, %v414
      %v532 = vpack.c.bf16 %v421, %v418
      %v533 = vpack.c.bf16 %v422, %v419
      %v534 = vpack.c.bf16 %v423, %v420
      %v535 = vpack.c.bf16 %v427, %v424
      %v536 = vpack.c.bf16 %v428, %v425
      %v537 = vpack.c.bf16 %v429, %v426
      %v538 = vpack.c.bf16 %v433, %v430
      %v539 = vpack.c.bf16 %v434, %v431
      %v540 = vpack.c.bf16 %v435, %v432
      %v541 = vpack.c.bf16 %v436, %v436
      %v542 = vpack.c.bf16 %v437, %v437
      %v543 = vpack.c.bf16 %v438, %v438
      %v544 = vld [vmem:[%s1] sm:$0xf]
      %v545 = vld [vmem:[%s1 + $0x4] sm:$0xf]
      %v546 = vld [vmem:[%s1 + $0x8] sm:$0xf]
      %v547 = vld [vmem:[%s1 + $0xc] sm:$0xf]
      %v548 = vld [vmem:[%s1 + $0x10] sm:$0xf]
      %v549 = vld [vmem:[%s1 + $0x14] sm:$0xf]
      %v550 = vld [vmem:[%s1 + $0x18] sm:$0xf]
      %v551 = vld [vmem:[%s1 + $0x1c] sm:$0xf]
      %v552 = vld [vmem:[%s1 + $0x20] sm:$0xf]
      %v553 = vld [vmem:[%s1 + $0x24] sm:$0xf]
      %v554 = vld [vmem:[%s1 + $0x28] sm:$0xf]
      %v555 = vld [vmem:[%s1 + $0x2c] sm:$0xf]
      %v556 = vld [vmem:[%s1 + $0x30] sm:$0xf]
      %v557 = vld [vmem:[%s1 + $0x34] sm:$0xf]
      %v558 = vld [vmem:[%s1 + $0x38] sm:$0xf]
      %v559 = vld [vmem:[%s1 + $0x3c] sm:$0xf]
      %v560 = vld [vmem:[%s1 + $0x40] sm:$0xf]
      %v561 = vld [vmem:[%s1 + $0x44] sm:$0xf]
      %v562 = vld [vmem:[%s1 + $0x48] sm:$0xf]
      %v563 = vld [vmem:[%s1 + $0x4c] sm:$0xf]
      %v564 = vld [vmem:[%s1 + $0x50] sm:$0xf]
      %v565 = vld [vmem:[%s1 + $0x54] sm:$0xf]
      %v566 = vld [vmem:[%s1 + $0x58] sm:$0xf]
      %v567 = vld [vmem:[%s1 + $0x5c] sm:$0xf]
      %v568 = vld [vmem:[%s1 + $0x60] sm:$0xf]
      %v569 = vld [vmem:[%s1 + $0x64] sm:$0xf]
      %v570 = vld [vmem:[%s1 + $0x68] sm:$0xf]
      %v571 = vld [vmem:[%s1 + $0x6c] sm:$0xf]
      %v572 = vld [vmem:[%s1 + $0x70] sm:$0xf]
      %v573 = vld [vmem:[%s1 + $0x74] sm:$0xf]
      %v574 = vld [vmem:[%s1 + $0x78] sm:$0xf]
      %v575 = vld [vmem:[%s1 + $0x7c] sm:$0xf]
      %v576 = vld [vmem:[%s1 + $0x80] sm:$0xf]
      %v577 = vld [vmem:[%s1 + $0x84] sm:$0x7]
      %v578 = vld [vmem:[%s2] sm:$0x1]
      %v580 = vperm.slane %v578, 0
      %v616 = vunpack.c.l.b16 %v544
      %v617 = vunpack.c.l.b16 %v545
      %v618 = vunpack.c.l.b16 %v546
      %v619 = vunpack.c.l.b16 %v547
      %v620 = vunpack.c.l.b16 %v548
      %v621 = vunpack.c.l.b16 %v549
      %v622 = vunpack.c.l.b16 %v550
      %v623 = vunpack.c.l.b16 %v551
      %v624 = vunpack.c.l.b16 %v552
      %v625 = vunpack.c.l.b16 %v553
      %v626 = vunpack.c.l.b16 %v554
      %v627 = vunpack.c.l.b16 %v555
      %v628 = vunpack.c.l.b16 %v556
      %v629 = vunpack.c.l.b16 %v557
      %v630 = vunpack.c.l.b16 %v558
      %v631 = vunpack.c.l.b16 %v559
      %v632 = vunpack.c.l.b16 %v560
      %v633 = vunpack.c.l.b16 %v561
      %v634 = vunpack.c.l.b16 %v562
      %v635 = vunpack.c.l.b16 %v563
      %v636 = vunpack.c.l.b16 %v564
      %v637 = vunpack.c.l.b16 %v565
      %v638 = vunpack.c.l.b16 %v566
      %v639 = vunpack.c.l.b16 %v567
      %v640 = vunpack.c.l.b16 %v568
      %v641 = vunpack.c.l.b16 %v569
      %v642 = vunpack.c.l.b16 %v570
      %v643 = vunpack.c.l.b16 %v571
      %v644 = vunpack.c.l.b16 %v572
      %v645 = vunpack.c.l.b16 %v573
      %v646 = vunpack.c.l.b16 %v574
      %v647 = vunpack.c.l.b16 %v575
      %v648 = vunpack.c.l.b16 %v576
      %v649 = vunpack.c.l.b16 %v577
      %v650 = vpack.c.b16 %v617, %v616
      %v651 = vpack.c.b16 %v619, %v618
      %v652 = vpack.c.b16 %v621, %v620
      %v653 = vpack.c.b16 %v623, %v622
      %v654 = vpack.c.b16 %v625, %v624
      %v655 = vpack.c.b16 %v627, %v626
      %v656 = vpack.c.b16 %v629, %v628
      %v657 = vpack.c.b16 %v631, %v630
      %v658 = vpack.c.b16 %v633, %v632
      %v659 = vpack.c.b16 %v635, %v634
      %v660 = vpack.c.b16 %v637, %v636
      %v661 = vpack.c.b16 %v639, %v638
      %v662 = vpack.c.b16 %v641, %v640
      %v663 = vpack.c.b16 %v643, %v642
      %v664 = vpack.c.b16 %v645, %v644
      %v665 = vpack.c.b16 %v647, %v646
      %v666 = vpack.c.b16 %v649, %v648
      %vm683 = vcmask 113664
      %v685 = vsel %vm683, %v441, 0
      %v688 = vsel %vm683, %v444, 0
      %v691 = vsel %vm683, %v447, 0
      %v694 = vsel %vm683, %v450, 0
      %v697 = vsel %vm683, %v453, 0
      %v700 = vsel %vm683, %v456, 0
      %v703 = vsel %vm683, %v459, 0
      %v706 = vsel %vm683, %v462, 0
      %v709 = vsel %vm683, %v465, 0
      %v712 = vsel %vm683, %v468, 0
      %v715 = vsel %vm683, %v471, 0
      %v718 = vsel %vm683, %v474, 0
      %v721 = vsel %vm683, %v477, 0
      %v724 = vsel %vm683, %v480, 0
      %v727 = vsel %vm683, %v483, 0
      %v730 = vsel %vm683, %v486, 0
      %v733 = vsel %vm683, %v489, 0
      %v736 = vsel %vm683, %v492, 0
      %v739 = vsel %vm683, %v495, 0
      %v742 = vsel %vm683, %v498, 0
      %v745 = vsel %vm683, %v501, 0
      %v748 = vsel %vm683, %v504, 0
      %v751 = vsel %vm683, %v507, 0
      %v754 = vsel %vm683, %v510, 0
      %v757 = vsel %vm683, %v513, 0
      %v760 = vsel %vm683, %v516, 0
      %v763 = vsel %vm683, %v519, 0
      %v766 = vsel %vm683, %v522, 0
      %v769 = vsel %vm683, %v525, 0
      %v772 = vsel %vm683, %v528, 0
      %v775 = vsel %vm683, %v531, 0
      %v778 = vsel %vm683, %v534, 0
      %v781 = vsel %vm683, %v537, 0
      %v784 = vsel %vm683, %v540, 0
      %v787 = vsel %vm683, %v543, 0
      %vm789 = vcmask 1046528
      %v791 = vsel %vm789, %v666, 0
      %793 = vmatpush.bf16.msra.mxu0 %v657
      %794 = vmatpush.bf16.msra.mxu0 %v656
      %795 = vmatpush.bf16.msra.mxu0 %v655
      %796 = vmatpush.bf16.msra.mxu0 %v654
      %797 = vmatpush.bf16.msra.mxu0 %v653
      %798 = vmatpush.bf16.msra.mxu0 %v652
      %799 = vmatpush.bf16.msra.mxu0 %v651
      %800 = vmatpush.bf16.msra.mxu0 %v650
      %801 = vmatmul.bf16.gmra.mxu0 %v439
      %v802 = vpop.f32.mrf.mxu0
      %v803 = vadd.f32 %v580, %v802
      %v804 = vpop.f32.mrf.mxu0
      %v805 = vadd.f32 %v580, %v804
      %806 = vmatmul.bf16.gmra.mxu0 %v442
      %v807 = vpop.f32.mrf.mxu0
      %v808 = vadd.f32 %v580, %v807
      %v809 = vpop.f32.mrf.mxu0
      %v810 = vadd.f32 %v580, %v809
      %811 = vmatmul.bf16.gmra.mxu0 %v445
      %v812 = vpop.f32.mrf.mxu0
      %v813 = vadd.f32 %v580, %v812
      %v814 = vpop.f32.mrf.mxu0
      %v815 = vadd.f32 %v580, %v814
      %816 = vmatmul.bf16.gmra.mxu0 %v448
      %v817 = vpop.f32.mrf.mxu0
      %v818 = vadd.f32 %v580, %v817
      %v819 = vpop.f32.mrf.mxu0
      %v820 = vadd.f32 %v580, %v819
      %821 = vmatmul.bf16.gmra.mxu0 %v451
      %v822 = vpop.f32.mrf.mxu0
      %v823 = vadd.f32 %v580, %v822
      %v824 = vpop.f32.mrf.mxu0
      %v825 = vadd.f32 %v580, %v824
      %826 = vmatmul.bf16.gmra.mxu0 %v454
      %v827 = vpop.f32.mrf.mxu0
      %v828 = vadd.f32 %v580, %v827
      %v829 = vpop.f32.mrf.mxu0
      %v830 = vadd.f32 %v580, %v829
      %831 = vmatmul.bf16.gmra.mxu0 %v457
      %v832 = vpop.f32.mrf.mxu0
      %v833 = vadd.f32 %v580, %v832
      %v834 = vpop.f32.mrf.mxu0
      %v835 = vadd.f32 %v580, %v834
      %836 = vmatmul.bf16.gmra.mxu0 %v460
      %v837 = vpop.f32.mrf.mxu0
      %v838 = vadd.f32 %v580, %v837
      %v839 = vpop.f32.mrf.mxu0
      %v840 = vadd.f32 %v580, %v839
      %841 = vmatmul.bf16.gmra.mxu0 %v463
      %v842 = vpop.f32.mrf.mxu0
      %v843 = vadd.f32 %v580, %v842
      %v844 = vpop.f32.mrf.mxu0
      %v845 = vadd.f32 %v580, %v844
      %846 = vmatmul.bf16.gmra.mxu0 %v466
      %v847 = vpop.f32.mrf.mxu0
      %v848 = vadd.f32 %v580, %v847
      %v849 = vpop.f32.mrf.mxu0
      %v850 = vadd.f32 %v580, %v849
      %851 = vmatmul.bf16.gmra.mxu0 %v469
      %v852 = vpop.f32.mrf.mxu0
      %v853 = vadd.f32 %v580, %v852
      %v854 = vpop.f32.mrf.mxu0
      %v855 = vadd.f32 %v580, %v854
      %856 = vmatmul.bf16.gmra.mxu0 %v472
      %v857 = vpop.f32.mrf.mxu0
      %v858 = vadd.f32 %v580, %v857
      %v859 = vpop.f32.mrf.mxu0
      %v860 = vadd.f32 %v580, %v859
      %861 = vmatmul.bf16.gmra.mxu0 %v475
      %v862 = vpop.f32.mrf.mxu0
      %v863 = vadd.f32 %v580, %v862
      %v864 = vpop.f32.mrf.mxu0
      %v865 = vadd.f32 %v580, %v864
      %866 = vmatmul.bf16.gmra.mxu0 %v478
      %v867 = vpop.f32.mrf.mxu0
      %v868 = vadd.f32 %v580, %v867
      %v869 = vpop.f32.mrf.mxu0
      %v870 = vadd.f32 %v580, %v869
      %871 = vmatmul.bf16.gmra.mxu0 %v481
      %v872 = vpop.f32.mrf.mxu0
      %v873 = vadd.f32 %v580, %v872
      %v874 = vpop.f32.mrf.mxu0
      %v875 = vadd.f32 %v580, %v874
      %876 = vmatmul.bf16.gmra.mxu0 %v484
      %v877 = vpop.f32.mrf.mxu0
      %v878 = vadd.f32 %v580, %v877
      %v879 = vpop.f32.mrf.mxu0
      %v880 = vadd.f32 %v580, %v879
      %881 = vmatmul.bf16.gmra.mxu0 %v487
      %v882 = vpop.f32.mrf.mxu0
      %v883 = vadd.f32 %v580, %v882
      %v884 = vpop.f32.mrf.mxu0
      %v885 = vadd.f32 %v580, %v884
      %886 = vmatmul.bf16.gmra.mxu0 %v490
      %v887 = vpop.f32.mrf.mxu0
      %v888 = vadd.f32 %v580, %v887
      %v889 = vpop.f32.mrf.mxu0
      %v890 = vadd.f32 %v580, %v889
      %891 = vmatmul.bf16.gmra.mxu0 %v493
      %v892 = vpop.f32.mrf.mxu0
      %v893 = vadd.f32 %v580, %v892
      %v894 = vpop.f32.mrf.mxu0
      %v895 = vadd.f32 %v580, %v894
      %896 = vmatmul.bf16.gmra.mxu0 %v496
      %v897 = vpop.f32.mrf.mxu0
      %v898 = vadd.f32 %v580, %v897
      %v899 = vpop.f32.mrf.mxu0
      %v900 = vadd.f32 %v580, %v899
      %901 = vmatmul.bf16.gmra.mxu0 %v499
      %v902 = vpop.f32.mrf.mxu0
      %v903 = vadd.f32 %v580, %v902
      %v904 = vpop.f32.mrf.mxu0
      %v905 = vadd.f32 %v580, %v904
      %906 = vmatmul.bf16.gmra.mxu0 %v502
      %v907 = vpop.f32.mrf.mxu0
      %v908 = vadd.f32 %v580, %v907
      %v909 = vpop.f32.mrf.mxu0
      %v910 = vadd.f32 %v580, %v909
      %911 = vmatmul.bf16.gmra.mxu0 %v505
      %v912 = vpop.f32.mrf.mxu0
      %v913 = vadd.f32 %v580, %v912
      %v914 = vpop.f32.mrf.mxu0
      %v915 = vadd.f32 %v580, %v914
      %916 = vmatmul.bf16.gmra.mxu0 %v508
      %v917 = vpop.f32.mrf.mxu0
      %v918 = vadd.f32 %v580, %v917
      %v919 = vpop.f32.mrf.mxu0
      %v920 = vadd.f32 %v580, %v919
      %921 = vmatmul.bf16.gmra.mxu0 %v511
      %v922 = vpop.f32.mrf.mxu0
      %v923 = vadd.f32 %v580, %v922
      %v924 = vpop.f32.mrf.mxu0
      %v925 = vadd.f32 %v580, %v924
      %926 = vmatmul.bf16.gmra.mxu0 %v514
      %v927 = vpop.f32.mrf.mxu0
      %v928 = vadd.f32 %v580, %v927
      %v929 = vpop.f32.mrf.mxu0
      %v930 = vadd.f32 %v580, %v929
      %931 = vmatmul.bf16.gmra.mxu0 %v517
      %v932 = vpop.f32.mrf.mxu0
      %v933 = vadd.f32 %v580, %v932
      %v934 = vpop.f32.mrf.mxu0
      %v935 = vadd.f32 %v580, %v934
      %936 = vmatmul.bf16.gmra.mxu0 %v520
      %v937 = vpop.f32.mrf.mxu0
      %v938 = vadd.f32 %v580, %v937
      %v939 = vpop.f32.mrf.mxu0
      %v940 = vadd.f32 %v580, %v939
      %941 = vmatmul.bf16.gmra.mxu0 %v523
      %v942 = vpop.f32.mrf.mxu0
      %v943 = vadd.f32 %v580, %v942
      %v944 = vpop.f32.mrf.mxu0
      %v945 = vadd.f32 %v580, %v944
      %946 = vmatmul.bf16.gmra.mxu0 %v526
      %v947 = vpop.f32.mrf.mxu0
      %v948 = vadd.f32 %v580, %v947
      %v949 = vpop.f32.mrf.mxu0
      %v950 = vadd.f32 %v580, %v949
      %951 = vmatmul.bf16.gmra.mxu0 %v529
      %v952 = vpop.f32.mrf.mxu0
      %v953 = vadd.f32 %v580, %v952
      %v954 = vpop.f32.mrf.mxu0
      %v955 = vadd.f32 %v580, %v954
      %956 = vmatmul.bf16.gmra.mxu0 %v532
      %v957 = vpop.f32.mrf.mxu0
      %v958 = vadd.f32 %v580, %v957
      %v959 = vpop.f32.mrf.mxu0
      %v960 = vadd.f32 %v580, %v959
      %961 = vmatmul.bf16.gmra.mxu0 %v535
      %v962 = vpop.f32.mrf.mxu0
      %v963 = vadd.f32 %v580, %v962
      %v964 = vpop.f32.mrf.mxu0
      %v965 = vadd.f32 %v580, %v964
      %966 = vmatmul.bf16.gmra.mxu0 %v538
      %v967 = vpop.f32.mrf.mxu0
      %v968 = vadd.f32 %v580, %v967
      %v969 = vpop.f32.mrf.mxu0
      %v970 = vadd.f32 %v580, %v969
      %971 = vmatmul.bf16.gmra.mxu0 %v541
      %v972 = vpop.f32.mrf.mxu0
      %v973 = vadd.f32 %v580, %v972
      %v974 = vpop.f32.mrf.mxu0
      %975 = vdwg.mxu0
      %976 = vmatpush.bf16.msra.mxu0 %v665
      %977 = vmatpush.bf16.msra.mxu0 %v664
      %978 = vmatpush.bf16.msra.mxu0 %v663
      %979 = vmatpush.bf16.msra.mxu0 %v662
      %980 = vmatpush.bf16.msra.mxu0 %v661
      %981 = vmatpush.bf16.msra.mxu0 %v660
      %982 = vmatpush.bf16.msra.mxu0 %v659
      %983 = vmatpush.bf16.msra.mxu0 %v658
      %984 = vmatmul.bf16.gmra.mxu0 %v440
      %v985 = vpop.f32.mrf.mxu0
      %v986 = vadd.f32 %v803, %v985
      %v987 = vpop.f32.mrf.mxu0
      %v988 = vadd.f32 %v805, %v987
      %989 = vmatmul.bf16.gmra.mxu0 %v443
      %v990 = vpop.f32.mrf.mxu0
      %v991 = vadd.f32 %v808, %v990
      %v992 = vpop.f32.mrf.mxu0
      %v993 = vadd.f32 %v810, %v992
      %994 = vmatmul.bf16.gmra.mxu0 %v446
      %v995 = vpop.f32.mrf.mxu0
      %v996 = vadd.f32 %v813, %v995
      %v997 = vpop.f32.mrf.mxu0
      %v998 = vadd.f32 %v815, %v997
      %999 = vmatmul.bf16.gmra.mxu0 %v449
      %v1000 = vpop.f32.mrf.mxu0
      %v1001 = vadd.f32 %v818, %v1000
      %v1002 = vpop.f32.mrf.mxu0
      %v1003 = vadd.f32 %v820, %v1002
      %1004 = vmatmul.bf16.gmra.mxu0 %v452
      %v1005 = vpop.f32.mrf.mxu0
      %v1006 = vadd.f32 %v823, %v1005
      %v1007 = vpop.f32.mrf.mxu0
      %v1008 = vadd.f32 %v825, %v1007
      %1009 = vmatmul.bf16.gmra.mxu0 %v455
      %v1010 = vpop.f32.mrf.mxu0
      %v1011 = vadd.f32 %v828, %v1010
      %v1012 = vpop.f32.mrf.mxu0
      %v1013 = vadd.f32 %v830, %v1012
      %1014 = vmatmul.bf16.gmra.mxu0 %v458
      %v1015 = vpop.f32.mrf.mxu0
      %v1016 = vadd.f32 %v833, %v1015
      %v1017 = vpop.f32.mrf.mxu0
      %v1018 = vadd.f32 %v835, %v1017
      %1019 = vmatmul.bf16.gmra.mxu0 %v461
      %v1020 = vpop.f32.mrf.mxu0
      %v1021 = vadd.f32 %v838, %v1020
      %v1022 = vpop.f32.mrf.mxu0
      %v1023 = vadd.f32 %v840, %v1022
      %1024 = vmatmul.bf16.gmra.mxu0 %v464
      %v1025 = vpop.f32.mrf.mxu0
      %v1026 = vadd.f32 %v843, %v1025
      %v1027 = vpop.f32.mrf.mxu0
      %v1028 = vadd.f32 %v845, %v1027
      %1029 = vmatmul.bf16.gmra.mxu0 %v467
      %v1030 = vpop.f32.mrf.mxu0
      %v1031 = vadd.f32 %v848, %v1030
      %v1032 = vpop.f32.mrf.mxu0
      %v1033 = vadd.f32 %v850, %v1032
      %1034 = vmatmul.bf16.gmra.mxu0 %v470
      %v1035 = vpop.f32.mrf.mxu0
      %v1036 = vadd.f32 %v853, %v1035
      %v1037 = vpop.f32.mrf.mxu0
      %v1038 = vadd.f32 %v855, %v1037
      %1039 = vmatmul.bf16.gmra.mxu0 %v473
      %v1040 = vpop.f32.mrf.mxu0
      %v1041 = vadd.f32 %v858, %v1040
      %v1042 = vpop.f32.mrf.mxu0
      %v1043 = vadd.f32 %v860, %v1042
      %1044 = vmatmul.bf16.gmra.mxu0 %v476
      %v1045 = vpop.f32.mrf.mxu0
      %v1046 = vadd.f32 %v863, %v1045
      %v1047 = vpop.f32.mrf.mxu0
      %v1048 = vadd.f32 %v865, %v1047
      %1049 = vmatmul.bf16.gmra.mxu0 %v479
      %v1050 = vpop.f32.mrf.mxu0
      %v1051 = vadd.f32 %v868, %v1050
      %v1052 = vpop.f32.mrf.mxu0
      %v1053 = vadd.f32 %v870, %v1052
      %1054 = vmatmul.bf16.gmra.mxu0 %v482
      %v1055 = vpop.f32.mrf.mxu0
      %v1056 = vadd.f32 %v873, %v1055
      %v1057 = vpop.f32.mrf.mxu0
      %v1058 = vadd.f32 %v875, %v1057
      %1059 = vmatmul.bf16.gmra.mxu0 %v485
      %v1060 = vpop.f32.mrf.mxu0
      %v1061 = vadd.f32 %v878, %v1060
      %v1062 = vpop.f32.mrf.mxu0
      %v1063 = vadd.f32 %v880, %v1062
      %1064 = vmatmul.bf16.gmra.mxu0 %v488
      %v1065 = vpop.f32.mrf.mxu0
      %v1066 = vadd.f32 %v883, %v1065
      %v1067 = vpop.f32.mrf.mxu0
      %v1068 = vadd.f32 %v885, %v1067
      %1069 = vmatmul.bf16.gmra.mxu0 %v491
      %v1070 = vpop.f32.mrf.mxu0
      %v1071 = vadd.f32 %v888, %v1070
      %v1072 = vpop.f32.mrf.mxu0
      %v1073 = vadd.f32 %v890, %v1072
      %1074 = vmatmul.bf16.gmra.mxu0 %v494
      %v1075 = vpop.f32.mrf.mxu0
      %v1076 = vadd.f32 %v893, %v1075
      %v1077 = vpop.f32.mrf.mxu0
      %v1078 = vadd.f32 %v895, %v1077
      %1079 = vmatmul.bf16.gmra.mxu0 %v497
      %v1080 = vpop.f32.mrf.mxu0
      %v1081 = vadd.f32 %v898, %v1080
      %v1082 = vpop.f32.mrf.mxu0
      %v1083 = vadd.f32 %v900, %v1082
      %1084 = vmatmul.bf16.gmra.mxu0 %v500
      %v1085 = vpop.f32.mrf.mxu0
      %v1086 = vadd.f32 %v903, %v1085
      %v1087 = vpop.f32.mrf.mxu0
      %v1088 = vadd.f32 %v905, %v1087
      %1089 = vmatmul.bf16.gmra.mxu0 %v503
      %v1090 = vpop.f32.mrf.mxu0
      %v1091 = vadd.f32 %v908, %v1090
      %v1092 = vpop.f32.mrf.mxu0
      %v1093 = vadd.f32 %v910, %v1092
      %1094 = vmatmul.bf16.gmra.mxu0 %v506
      %v1095 = vpop.f32.mrf.mxu0
      %v1096 = vadd.f32 %v913, %v1095
      %v1097 = vpop.f32.mrf.mxu0
      %v1098 = vadd.f32 %v915, %v1097
      %1099 = vmatmul.bf16.gmra.mxu0 %v509
      %v1100 = vpop.f32.mrf.mxu0
      %v1101 = vadd.f32 %v918, %v1100
      %v1102 = vpop.f32.mrf.mxu0
      %v1103 = vadd.f32 %v920, %v1102
      %1104 = vmatmul.bf16.gmra.mxu0 %v512
      %v1105 = vpop.f32.mrf.mxu0
      %v1106 = vadd.f32 %v923, %v1105
      %v1107 = vpop.f32.mrf.mxu0
      %v1108 = vadd.f32 %v925, %v1107
      %1109 = vmatmul.bf16.gmra.mxu0 %v515
      %v1110 = vpop.f32.mrf.mxu0
      %v1111 = vadd.f32 %v928, %v1110
      %v1112 = vpop.f32.mrf.mxu0
      %v1113 = vadd.f32 %v930, %v1112
      %1114 = vmatmul.bf16.gmra.mxu0 %v518
      %v1115 = vpop.f32.mrf.mxu0
      %v1116 = vadd.f32 %v933, %v1115
      %v1117 = vpop.f32.mrf.mxu0
      %v1118 = vadd.f32 %v935, %v1117
      %1119 = vmatmul.bf16.gmra.mxu0 %v521
      %v1120 = vpop.f32.mrf.mxu0
      %v1121 = vadd.f32 %v938, %v1120
      %v1122 = vpop.f32.mrf.mxu0
      %v1123 = vadd.f32 %v940, %v1122
      %1124 = vmatmul.bf16.gmra.mxu0 %v524
      %v1125 = vpop.f32.mrf.mxu0
      %v1126 = vadd.f32 %v943, %v1125
      %v1127 = vpop.f32.mrf.mxu0
      %v1128 = vadd.f32 %v945, %v1127
      %1129 = vmatmul.bf16.gmra.mxu0 %v527
      %v1130 = vpop.f32.mrf.mxu0
      %v1131 = vadd.f32 %v948, %v1130
      %v1132 = vpop.f32.mrf.mxu0
      %v1133 = vadd.f32 %v950, %v1132
      %1134 = vmatmul.bf16.gmra.mxu0 %v530
      %v1135 = vpop.f32.mrf.mxu0
      %v1136 = vadd.f32 %v953, %v1135
      %v1137 = vpop.f32.mrf.mxu0
      %v1138 = vadd.f32 %v955, %v1137
      %1139 = vmatmul.bf16.gmra.mxu0 %v533
      %v1140 = vpop.f32.mrf.mxu0
      %v1141 = vadd.f32 %v958, %v1140
      %v1142 = vpop.f32.mrf.mxu0
      %v1143 = vadd.f32 %v960, %v1142
      %1144 = vmatmul.bf16.gmra.mxu0 %v536
      %v1145 = vpop.f32.mrf.mxu0
      %v1146 = vadd.f32 %v963, %v1145
      %v1147 = vpop.f32.mrf.mxu0
      %v1148 = vadd.f32 %v965, %v1147
      %1149 = vmatmul.bf16.gmra.mxu0 %v539
      %v1150 = vpop.f32.mrf.mxu0
      %v1151 = vadd.f32 %v968, %v1150
      %v1152 = vpop.f32.mrf.mxu0
      %v1153 = vadd.f32 %v970, %v1152
      %1154 = vmatmul.bf16.gmra.mxu0 %v542
      %v1155 = vpop.f32.mrf.mxu0
      %v1156 = vadd.f32 %v973, %v1155
      %v1157 = vpop.f32.mrf.mxu0
      %1158 = vdwg.mxu0
      %1159 = vmatpush.bf16.msra.mxu0 0
      %1160 = vmatpush.bf16.msra.mxu0 0
      %1161 = vmatpush.bf16.msra.mxu0 0
      %1162 = vmatpush.bf16.msra.mxu0 0
      %1163 = vmatpush.bf16.msra.mxu0 0
      %1164 = vmatpush.bf16.msra.mxu0 0
      %1165 = vmatpush.bf16.msra.mxu0 0
      %1166 = vmatpush.bf16.msra.mxu0 %v791
      %1167 = vmatmul.bf16.gmra.mxu0 %v685
      %v1168 = vpop.f32.mrf.mxu0
      %v1169 = vadd.f32 %v986, %v1168
      %v1170 = vpop.f32.mrf.mxu0
      %v1171 = vadd.f32 %v988, %v1170
      %1172 = vmatmul.bf16.gmra.mxu0 %v688
      %v1173 = vpop.f32.mrf.mxu0
      %v1174 = vadd.f32 %v991, %v1173
      %v1175 = vpop.f32.mrf.mxu0
      %v1176 = vadd.f32 %v993, %v1175
      %1177 = vmatmul.bf16.gmra.mxu0 %v691
      %v1178 = vpop.f32.mrf.mxu0
      %v1179 = vadd.f32 %v996, %v1178
      %v1180 = vpop.f32.mrf.mxu0
      %v1181 = vadd.f32 %v998, %v1180
      %1182 = vmatmul.bf16.gmra.mxu0 %v694
      %v1183 = vpop.f32.mrf.mxu0
      %v1184 = vadd.f32 %v1001, %v1183
      %v1185 = vpop.f32.mrf.mxu0
      %v1186 = vadd.f32 %v1003, %v1185
      %1187 = vmatmul.bf16.gmra.mxu0 %v697
      %v1188 = vpop.f32.mrf.mxu0
      %v1189 = vadd.f32 %v1006, %v1188
      %v1190 = vpop.f32.mrf.mxu0
      %v1191 = vadd.f32 %v1008, %v1190
      %1192 = vmatmul.bf16.gmra.mxu0 %v700
      %v1193 = vpop.f32.mrf.mxu0
      %v1194 = vadd.f32 %v1011, %v1193
      %v1195 = vpop.f32.mrf.mxu0
      %v1196 = vadd.f32 %v1013, %v1195
      %1197 = vmatmul.bf16.gmra.mxu0 %v703
      %v1198 = vpop.f32.mrf.mxu0
      %v1199 = vadd.f32 %v1016, %v1198
      %v1200 = vpop.f32.mrf.mxu0
      %v1201 = vadd.f32 %v1018, %v1200
      %1202 = vmatmul.bf16.gmra.mxu0 %v706
      %v1203 = vpop.f32.mrf.mxu0
      %v1204 = vadd.f32 %v1021, %v1203
      %v1205 = vpop.f32.mrf.mxu0
      %v1206 = vadd.f32 %v1023, %v1205
      %1207 = vmatmul.bf16.gmra.mxu0 %v709
      %v1208 = vpop.f32.mrf.mxu0
      %v1209 = vadd.f32 %v1026, %v1208
      %v1210 = vpop.f32.mrf.mxu0
      %v1211 = vadd.f32 %v1028, %v1210
      %1212 = vmatmul.bf16.gmra.mxu0 %v712
      %v1213 = vpop.f32.mrf.mxu0
      %v1214 = vadd.f32 %v1031, %v1213
      %v1215 = vpop.f32.mrf.mxu0
      %v1216 = vadd.f32 %v1033, %v1215
      %1217 = vmatmul.bf16.gmra.mxu0 %v715
      %v1218 = vpop.f32.mrf.mxu0
      %v1219 = vadd.f32 %v1036, %v1218
      %v1220 = vpop.f32.mrf.mxu0
      %v1221 = vadd.f32 %v1038, %v1220
      %1222 = vmatmul.bf16.gmra.mxu0 %v718
      %v1223 = vpop.f32.mrf.mxu0
      %v1224 = vadd.f32 %v1041, %v1223
      %v1225 = vpop.f32.mrf.mxu0
      %v1226 = vadd.f32 %v1043, %v1225
      %1227 = vmatmul.bf16.gmra.mxu0 %v721
      %v1228 = vpop.f32.mrf.mxu0
      %v1229 = vadd.f32 %v1046, %v1228
      %v1230 = vpop.f32.mrf.mxu0
      %v1231 = vadd.f32 %v1048, %v1230
      %1232 = vmatmul.bf16.gmra.mxu0 %v724
      %v1233 = vpop.f32.mrf.mxu0
      %v1234 = vadd.f32 %v1051, %v1233
      %v1235 = vpop.f32.mrf.mxu0
      %v1236 = vadd.f32 %v1053, %v1235
      %1237 = vmatmul.bf16.gmra.mxu0 %v727
      %v1238 = vpop.f32.mrf.mxu0
      %v1239 = vadd.f32 %v1056, %v1238
      %v1240 = vpop.f32.mrf.mxu0
      %v1241 = vadd.f32 %v1058, %v1240
      %1242 = vmatmul.bf16.gmra.mxu0 %v730
      %v1243 = vpop.f32.mrf.mxu0
      %v1244 = vadd.f32 %v1061, %v1243
      %v1245 = vpop.f32.mrf.mxu0
      %v1246 = vadd.f32 %v1063, %v1245
      %1247 = vmatmul.bf16.gmra.mxu0 %v733
      %v1248 = vpop.f32.mrf.mxu0
      %v1249 = vadd.f32 %v1066, %v1248
      %v1250 = vpop.f32.mrf.mxu0
      %v1251 = vadd.f32 %v1068, %v1250
      %1252 = vmatmul.bf16.gmra.mxu0 %v736
      %v1253 = vpop.f32.mrf.mxu0
      %v1254 = vadd.f32 %v1071, %v1253
      %v1255 = vpop.f32.mrf.mxu0
      %v1256 = vadd.f32 %v1073, %v1255
      %1257 = vmatmul.bf16.gmra.mxu0 %v739
      %v1258 = vpop.f32.mrf.mxu0
      %v1259 = vadd.f32 %v1076, %v1258
      %v1260 = vpop.f32.mrf.mxu0
      %v1261 = vadd.f32 %v1078, %v1260
      %1262 = vmatmul.bf16.gmra.mxu0 %v742
      %v1263 = vpop.f32.mrf.mxu0
      %v1264 = vadd.f32 %v1081, %v1263
      %v1265 = vpop.f32.mrf.mxu0
      %v1266 = vadd.f32 %v1083, %v1265
      %1267 = vmatmul.bf16.gmra.mxu0 %v745
      %v1268 = vpop.f32.mrf.mxu0
      %v1269 = vadd.f32 %v1086, %v1268
      %v1270 = vpop.f32.mrf.mxu0
      %v1271 = vadd.f32 %v1088, %v1270
      %1272 = vmatmul.bf16.gmra.mxu0 %v748
      %v1273 = vpop.f32.mrf.mxu0
      %v1274 = vadd.f32 %v1091, %v1273
      %v1275 = vpop.f32.mrf.mxu0
      %v1276 = vadd.f32 %v1093, %v1275
      %1277 = vmatmul.bf16.gmra.mxu0 %v751
      %v1278 = vpop.f32.mrf.mxu0
      %v1279 = vadd.f32 %v1096, %v1278
      %v1280 = vpop.f32.mrf.mxu0
      %v1281 = vadd.f32 %v1098, %v1280
      %1282 = vmatmul.bf16.gmra.mxu0 %v754
      %v1283 = vpop.f32.mrf.mxu0
      %v1284 = vadd.f32 %v1101, %v1283
      %v1285 = vpop.f32.mrf.mxu0
      %v1286 = vadd.f32 %v1103, %v1285
      %1287 = vmatmul.bf16.gmra.mxu0 %v757
      %v1288 = vpop.f32.mrf.mxu0
      %v1289 = vadd.f32 %v1106, %v1288
      %v1290 = vpop.f32.mrf.mxu0
      %v1291 = vadd.f32 %v1108, %v1290
      %1292 = vmatmul.bf16.gmra.mxu0 %v760
      %v1293 = vpop.f32.mrf.mxu0
      %v1294 = vadd.f32 %v1111, %v1293
      %v1295 = vpop.f32.mrf.mxu0
      %v1296 = vadd.f32 %v1113, %v1295
      %1297 = vmatmul.bf16.gmra.mxu0 %v763
      %v1298 = vpop.f32.mrf.mxu0
      %v1299 = vadd.f32 %v1116, %v1298
      %v1300 = vpop.f32.mrf.mxu0
      %v1301 = vadd.f32 %v1118, %v1300
      %1302 = vmatmul.bf16.gmra.mxu0 %v766
      %v1303 = vpop.f32.mrf.mxu0
      %v1304 = vadd.f32 %v1121, %v1303
      %v1305 = vpop.f32.mrf.mxu0
      %v1306 = vadd.f32 %v1123, %v1305
      %1307 = vmatmul.bf16.gmra.mxu0 %v769
      %v1308 = vpop.f32.mrf.mxu0
      %v1309 = vadd.f32 %v1126, %v1308
      %v1310 = vpop.f32.mrf.mxu0
      %v1311 = vadd.f32 %v1128, %v1310
      %1312 = vmatmul.bf16.gmra.mxu0 %v772
      %v1313 = vpop.f32.mrf.mxu0
      %v1314 = vadd.f32 %v1131, %v1313
      %v1315 = vpop.f32.mrf.mxu0
      %v1316 = vadd.f32 %v1133, %v1315
      %1317 = vmatmul.bf16.gmra.mxu0 %v775
      %v1318 = vpop.f32.mrf.mxu0
      %v1319 = vadd.f32 %v1136, %v1318
      %v1320 = vpop.f32.mrf.mxu0
      %v1321 = vadd.f32 %v1138, %v1320
      %1322 = vmatmul.bf16.gmra.mxu0 %v778
      %v1323 = vpop.f32.mrf.mxu0
      %v1324 = vadd.f32 %v1141, %v1323
      %v1325 = vpop.f32.mrf.mxu0
      %v1326 = vadd.f32 %v1143, %v1325
      %1327 = vmatmul.bf16.gmra.mxu0 %v781
      %v1328 = vpop.f32.mrf.mxu0
      %v1329 = vadd.f32 %v1146, %v1328
      %v1330 = vpop.f32.mrf.mxu0
      %v1331 = vadd.f32 %v1148, %v1330
      %1332 = vmatmul.bf16.gmra.mxu0 %v784
      %v1333 = vpop.f32.mrf.mxu0
      %v1334 = vadd.f32 %v1151, %v1333
      %v1335 = vpop.f32.mrf.mxu0
      %v1336 = vadd.f32 %v1153, %v1335
      %1337 = vmatmul.bf16.gmra.mxu0 %v787
      %v1338 = vpop.f32.mrf.mxu0
      %v1339 = vadd.f32 %v1156, %v1338
      %v1340 = vpop.f32.mrf.mxu0
      %1341 = vdwg.mxu0
      %v1342 = vmul.f32 %v1169, 0.01
      %v1343 = vmul.f32 %v1171, 0.01
      %v1344 = vmul.f32 %v1174, 0.01
      %v1345 = vmul.f32 %v1176, 0.01
      %v1346 = vmul.f32 %v1179, 0.01
      %v1347 = vmul.f32 %v1181, 0.01
      %v1348 = vmul.f32 %v1184, 0.01
      %v1349 = vmul.f32 %v1186, 0.01
      %v1350 = vmul.f32 %v1189, 0.01
      %v1351 = vmul.f32 %v1191, 0.01
      %v1352 = vmul.f32 %v1194, 0.01
      %v1353 = vmul.f32 %v1196, 0.01
      %v1354 = vmul.f32 %v1199, 0.01
      %v1355 = vmul.f32 %v1201, 0.01
      %v1356 = vmul.f32 %v1204, 0.01
      %v1357 = vmul.f32 %v1206, 0.01
      %v1358 = vmul.f32 %v1209, 0.01
      %v1359 = vmul.f32 %v1211, 0.01
      %v1360 = vmul.f32 %v1214, 0.01
      %v1361 = vmul.f32 %v1216, 0.01
      %v1362 = vmul.f32 %v1219, 0.01
      %v1363 = vmul.f32 %v1221, 0.01
      %v1364 = vmul.f32 %v1224, 0.01
      %v1365 = vmul.f32 %v1226, 0.01
      %v1366 = vmul.f32 %v1229, 0.01
      %v1367 = vmul.f32 %v1231, 0.01
      %v1368 = vmul.f32 %v1234, 0.01
      %v1369 = vmul.f32 %v1236, 0.01
      %v1370 = vmul.f32 %v1239, 0.01
      %v1371 = vmul.f32 %v1241, 0.01
      %v1372 = vmul.f32 %v1244, 0.01
      %v1373 = vmul.f32 %v1246, 0.01
      %v1374 = vmul.f32 %v1249, 0.01
      %v1375 = vmul.f32 %v1251, 0.01
      %v1376 = vmul.f32 %v1254, 0.01
      %v1377 = vmul.f32 %v1256, 0.01
      %v1378 = vmul.f32 %v1259, 0.01
      %v1379 = vmul.f32 %v1261, 0.01
      %v1380 = vmul.f32 %v1264, 0.01
      %v1381 = vmul.f32 %v1266, 0.01
      %v1382 = vmul.f32 %v1269, 0.01
      %v1383 = vmul.f32 %v1271, 0.01
      %v1384 = vmul.f32 %v1274, 0.01
      %v1385 = vmul.f32 %v1276, 0.01
      %v1386 = vmul.f32 %v1279, 0.01
      %v1387 = vmul.f32 %v1281, 0.01
      %v1388 = vmul.f32 %v1284, 0.01
      %v1389 = vmul.f32 %v1286, 0.01
      %v1390 = vmul.f32 %v1289, 0.01
      %v1391 = vmul.f32 %v1291, 0.01
      %v1392 = vmul.f32 %v1294, 0.01
      %v1393 = vmul.f32 %v1296, 0.01
      %v1394 = vmul.f32 %v1299, 0.01
      %v1395 = vmul.f32 %v1301, 0.01
      %v1396 = vmul.f32 %v1304, 0.01
      %v1397 = vmul.f32 %v1306, 0.01
      %v1398 = vmul.f32 %v1309, 0.01
      %v1399 = vmul.f32 %v1311, 0.01
      %v1400 = vmul.f32 %v1314, 0.01
      %v1401 = vmul.f32 %v1316, 0.01
      %v1402 = vmul.f32 %v1319, 0.01
      %v1403 = vmul.f32 %v1321, 0.01
      %v1404 = vmul.f32 %v1324, 0.01
      %v1405 = vmul.f32 %v1326, 0.01
      %v1406 = vmul.f32 %v1329, 0.01
      %v1407 = vmul.f32 %v1331, 0.01
      %v1408 = vmul.f32 %v1334, 0.01
      %v1409 = vmul.f32 %v1336, 0.01
      %v1410 = vmul.f32 %v1339, 0.01
      %v1411 = vmax.f32 %v1169, %v1342
      %v1412 = vmax.f32 %v1171, %v1343
      %v1413 = vmax.f32 %v1174, %v1344
      %v1414 = vmax.f32 %v1176, %v1345
      %v1415 = vmax.f32 %v1179, %v1346
      %v1416 = vmax.f32 %v1181, %v1347
      %v1417 = vmax.f32 %v1184, %v1348
      %v1418 = vmax.f32 %v1186, %v1349
      %v1419 = vmax.f32 %v1189, %v1350
      %v1420 = vmax.f32 %v1191, %v1351
      %v1421 = vmax.f32 %v1194, %v1352
      %v1422 = vmax.f32 %v1196, %v1353
      %v1423 = vmax.f32 %v1199, %v1354
      %v1424 = vmax.f32 %v1201, %v1355
      %v1425 = vmax.f32 %v1204, %v1356
      %v1426 = vmax.f32 %v1206, %v1357
      %v1427 = vmax.f32 %v1209, %v1358
      %v1428 = vmax.f32 %v1211, %v1359
      %v1429 = vmax.f32 %v1214, %v1360
      %v1430 = vmax.f32 %v1216, %v1361
      %v1431 = vmax.f32 %v1219, %v1362
      %v1432 = vmax.f32 %v1221, %v1363
      %v1433 = vmax.f32 %v1224, %v1364
      %v1434 = vmax.f32 %v1226, %v1365
      %v1435 = vmax.f32 %v1229, %v1366
      %v1436 = vmax.f32 %v1231, %v1367
      %v1437 = vmax.f32 %v1234, %v1368
      %v1438 = vmax.f32 %v1236, %v1369
      %v1439 = vmax.f32 %v1239, %v1370
      %v1440 = vmax.f32 %v1241, %v1371
      %v1441 = vmax.f32 %v1244, %v1372
      %v1442 = vmax.f32 %v1246, %v1373
      %v1443 = vmax.f32 %v1249, %v1374
      %v1444 = vmax.f32 %v1251, %v1375
      %v1445 = vmax.f32 %v1254, %v1376
      %v1446 = vmax.f32 %v1256, %v1377
      %v1447 = vmax.f32 %v1259, %v1378
      %v1448 = vmax.f32 %v1261, %v1379
      %v1449 = vmax.f32 %v1264, %v1380
      %v1450 = vmax.f32 %v1266, %v1381
      %v1451 = vmax.f32 %v1269, %v1382
      %v1452 = vmax.f32 %v1271, %v1383
      %v1453 = vmax.f32 %v1274, %v1384
      %v1454 = vmax.f32 %v1276, %v1385
      %v1455 = vmax.f32 %v1279, %v1386
      %v1456 = vmax.f32 %v1281, %v1387
      %v1457 = vmax.f32 %v1284, %v1388
      %v1458 = vmax.f32 %v1286, %v1389
      %v1459 = vmax.f32 %v1289, %v1390
      %v1460 = vmax.f32 %v1291, %v1391
      %v1461 = vmax.f32 %v1294, %v1392
      %v1462 = vmax.f32 %v1296, %v1393
      %v1463 = vmax.f32 %v1299, %v1394
      %v1464 = vmax.f32 %v1301, %v1395
      %v1465 = vmax.f32 %v1304, %v1396
      %v1466 = vmax.f32 %v1306, %v1397
      %v1467 = vmax.f32 %v1309, %v1398
      %v1468 = vmax.f32 %v1311, %v1399
      %v1469 = vmax.f32 %v1314, %v1400
      %v1470 = vmax.f32 %v1316, %v1401
      %v1471 = vmax.f32 %v1319, %v1402
      %v1472 = vmax.f32 %v1321, %v1403
      %v1473 = vmax.f32 %v1324, %v1404
      %v1474 = vmax.f32 %v1326, %v1405
      %v1475 = vmax.f32 %v1329, %v1406
      %v1476 = vmax.f32 %v1331, %v1407
      %v1477 = vmax.f32 %v1334, %v1408
      %v1478 = vmax.f32 %v1336, %v1409
      %v1479 = vmax.f32 %v1339, %v1410
      %v1480 = vpack.c.bf16 %v1412, %v1411
      %v1481 = vpack.c.bf16 %v1414, %v1413
      %v1482 = vpack.c.bf16 %v1416, %v1415
      %v1483 = vpack.c.bf16 %v1418, %v1417
      %v1484 = vpack.c.bf16 %v1420, %v1419
      %v1485 = vpack.c.bf16 %v1422, %v1421
      %v1486 = vpack.c.bf16 %v1424, %v1423
      %v1487 = vpack.c.bf16 %v1426, %v1425
      %v1488 = vpack.c.bf16 %v1428, %v1427
      %v1489 = vpack.c.bf16 %v1430, %v1429
      %v1490 = vpack.c.bf16 %v1432, %v1431
      %v1491 = vpack.c.bf16 %v1434, %v1433
      %v1492 = vpack.c.bf16 %v1436, %v1435
      %v1493 = vpack.c.bf16 %v1438, %v1437
      %v1494 = vpack.c.bf16 %v1440, %v1439
      %v1495 = vpack.c.bf16 %v1442, %v1441
      %v1496 = vpack.c.bf16 %v1444, %v1443
      %v1497 = vpack.c.bf16 %v1446, %v1445
      %v1498 = vpack.c.bf16 %v1448, %v1447
      %v1499 = vpack.c.bf16 %v1450, %v1449
      %v1500 = vpack.c.bf16 %v1452, %v1451
      %v1501 = vpack.c.bf16 %v1454, %v1453
      %v1502 = vpack.c.bf16 %v1456, %v1455
      %v1503 = vpack.c.bf16 %v1458, %v1457
      %v1504 = vpack.c.bf16 %v1460, %v1459
      %v1505 = vpack.c.bf16 %v1462, %v1461
      %v1506 = vpack.c.bf16 %v1464, %v1463
      %v1507 = vpack.c.bf16 %v1466, %v1465
      %v1508 = vpack.c.bf16 %v1468, %v1467
      %v1509 = vpack.c.bf16 %v1470, %v1469
      %v1510 = vpack.c.bf16 %v1472, %v1471
      %v1511 = vpack.c.bf16 %v1474, %v1473
      %v1512 = vpack.c.bf16 %v1476, %v1475
      %v1513 = vpack.c.bf16 %v1478, %v1477
      %v1514 = vpack.c.bf16 %v1479, %v1479
      %v1515 = vld [vmem:[%s3] sm:$0xf]
      %v1516 = vld [vmem:[%s3 + $0x4] sm:$0xf]
      %v1517 = vld [vmem:[%s3 + $0x8] sm:$0xf]
      %v1518 = vld [vmem:[%s3 + $0xc] sm:$0xf]
      %v1519 = vld [vmem:[%s3 + $0x10] sm:$0xf]
      %v1520 = vld [vmem:[%s3 + $0x14] sm:$0xf]
      %v1521 = vld [vmem:[%s3 + $0x18] sm:$0xf]
      %v1522 = vld [vmem:[%s3 + $0x1c] sm:$0xf]
      %v1523 = vld [vmem:[%s3 + $0x20] sm:$0xf]
      %v1524 = vld [vmem:[%s3 + $0x24] sm:$0xf]
      %v1525 = vld [vmem:[%s3 + $0x28] sm:$0xf]
      %v1526 = vld [vmem:[%s3 + $0x2c] sm:$0xf]
      %v1527 = vld [vmem:[%s3 + $0x30] sm:$0xf]
      %v1528 = vld [vmem:[%s3 + $0x34] sm:$0xf]
      %v1529 = vld [vmem:[%s3 + $0x38] sm:$0xf]
      %v1530 = vld [vmem:[%s3 + $0x3c] sm:$0xf]
      %v1531 = vld [vmem:[%s4] sm:$0x1]
      %v1533 = vperm.slane %v1531, 0
      %v1551 = vunpack.c.l.b16 %v1515
      %v1552 = vunpack.c.l.b16 %v1516
      %v1553 = vunpack.c.l.b16 %v1517
      %v1554 = vunpack.c.l.b16 %v1518
      %v1555 = vunpack.c.l.b16 %v1519
      %v1556 = vunpack.c.l.b16 %v1520
      %v1557 = vunpack.c.l.b16 %v1521
      %v1558 = vunpack.c.l.b16 %v1522
      %v1559 = vunpack.c.l.b16 %v1523
      %v1560 = vunpack.c.l.b16 %v1524
      %v1561 = vunpack.c.l.b16 %v1525
      %v1562 = vunpack.c.l.b16 %v1526
      %v1563 = vunpack.c.l.b16 %v1527
      %v1564 = vunpack.c.l.b16 %v1528
      %v1565 = vunpack.c.l.b16 %v1529
      %v1566 = vunpack.c.l.b16 %v1530
      %v1567 = vpack.c.b16 %v1552, %v1551
      %v1568 = vpack.c.b16 %v1554, %v1553
      %v1569 = vpack.c.b16 %v1556, %v1555
      %v1570 = vpack.c.b16 %v1558, %v1557
      %v1571 = vpack.c.b16 %v1560, %v1559
      %v1572 = vpack.c.b16 %v1562, %v1561
      %v1573 = vpack.c.b16 %v1564, %v1563
      %v1574 = vpack.c.b16 %v1566, %v1565
      %1583 = vmatpush.bf16.msra.mxu0 %v1574
      %1584 = vmatpush.bf16.msra.mxu0 %v1573
      %1585 = vmatpush.bf16.msra.mxu0 %v1572
      %1586 = vmatpush.bf16.msra.mxu0 %v1571
      %1587 = vmatpush.bf16.msra.mxu0 %v1570
      %1588 = vmatpush.bf16.msra.mxu0 %v1569
      %1589 = vmatpush.bf16.msra.mxu0 %v1568
      %1590 = vmatpush.bf16.msra.mxu0 %v1567
      %1591 = vmatmul.bf16.gmra.mxu0 %v1480
      %v1592 = vpop.f32.mrf.mxu0
      %v1593 = vadd.f32 %v1533, %v1592
      %v1594 = vpop.f32.mrf.mxu0
      %v1595 = vadd.f32 %v1533, %v1594
      %1596 = vmatmul.bf16.gmra.mxu0 %v1481
      %v1597 = vpop.f32.mrf.mxu0
      %v1598 = vadd.f32 %v1533, %v1597
      %v1599 = vpop.f32.mrf.mxu0
      %v1600 = vadd.f32 %v1533, %v1599
      %1601 = vmatmul.bf16.gmra.mxu0 %v1482
      %v1602 = vpop.f32.mrf.mxu0
      %v1603 = vadd.f32 %v1533, %v1602
      %v1604 = vpop.f32.mrf.mxu0
      %v1605 = vadd.f32 %v1533, %v1604
      %1606 = vmatmul.bf16.gmra.mxu0 %v1483
      %v1607 = vpop.f32.mrf.mxu0
      %v1608 = vadd.f32 %v1533, %v1607
      %v1609 = vpop.f32.mrf.mxu0
      %v1610 = vadd.f32 %v1533, %v1609
      %1611 = vmatmul.bf16.gmra.mxu0 %v1484
      %v1612 = vpop.f32.mrf.mxu0
      %v1613 = vadd.f32 %v1533, %v1612
      %v1614 = vpop.f32.mrf.mxu0
      %v1615 = vadd.f32 %v1533, %v1614
      %1616 = vmatmul.bf16.gmra.mxu0 %v1485
      %v1617 = vpop.f32.mrf.mxu0
      %v1618 = vadd.f32 %v1533, %v1617
      %v1619 = vpop.f32.mrf.mxu0
      %v1620 = vadd.f32 %v1533, %v1619
      %1621 = vmatmul.bf16.gmra.mxu0 %v1486
      %v1622 = vpop.f32.mrf.mxu0
      %v1623 = vadd.f32 %v1533, %v1622
      %v1624 = vpop.f32.mrf.mxu0
      %v1625 = vadd.f32 %v1533, %v1624
      %1626 = vmatmul.bf16.gmra.mxu0 %v1487
      %v1627 = vpop.f32.mrf.mxu0
      %v1628 = vadd.f32 %v1533, %v1627
      %v1629 = vpop.f32.mrf.mxu0
      %v1630 = vadd.f32 %v1533, %v1629
      %1631 = vmatmul.bf16.gmra.mxu0 %v1488
      %v1632 = vpop.f32.mrf.mxu0
      %v1633 = vadd.f32 %v1533, %v1632
      %v1634 = vpop.f32.mrf.mxu0
      %v1635 = vadd.f32 %v1533, %v1634
      %1636 = vmatmul.bf16.gmra.mxu0 %v1489
      %v1637 = vpop.f32.mrf.mxu0
      %v1638 = vadd.f32 %v1533, %v1637
      %v1639 = vpop.f32.mrf.mxu0
      %v1640 = vadd.f32 %v1533, %v1639
      %1641 = vmatmul.bf16.gmra.mxu0 %v1490
      %v1642 = vpop.f32.mrf.mxu0
      %v1643 = vadd.f32 %v1533, %v1642
      %v1644 = vpop.f32.mrf.mxu0
      %v1645 = vadd.f32 %v1533, %v1644
      %1646 = vmatmul.bf16.gmra.mxu0 %v1491
      %v1647 = vpop.f32.mrf.mxu0
      %v1648 = vadd.f32 %v1533, %v1647
      %v1649 = vpop.f32.mrf.mxu0
      %v1650 = vadd.f32 %v1533, %v1649
      %1651 = vmatmul.bf16.gmra.mxu0 %v1492
      %v1652 = vpop.f32.mrf.mxu0
      %v1653 = vadd.f32 %v1533, %v1652
      %v1654 = vpop.f32.mrf.mxu0
      %v1655 = vadd.f32 %v1533, %v1654
      %1656 = vmatmul.bf16.gmra.mxu0 %v1493
      %v1657 = vpop.f32.mrf.mxu0
      %v1658 = vadd.f32 %v1533, %v1657
      %v1659 = vpop.f32.mrf.mxu0
      %v1660 = vadd.f32 %v1533, %v1659
      %1661 = vmatmul.bf16.gmra.mxu0 %v1494
      %v1662 = vpop.f32.mrf.mxu0
      %v1663 = vadd.f32 %v1533, %v1662
      %v1664 = vpop.f32.mrf.mxu0
      %v1665 = vadd.f32 %v1533, %v1664
      %1666 = vmatmul.bf16.gmra.mxu0 %v1495
      %v1667 = vpop.f32.mrf.mxu0
      %v1668 = vadd.f32 %v1533, %v1667
      %v1669 = vpop.f32.mrf.mxu0
      %v1670 = vadd.f32 %v1533, %v1669
      %1671 = vmatmul.bf16.gmra.mxu0 %v1496
      %v1672 = vpop.f32.mrf.mxu0
      %v1673 = vadd.f32 %v1533, %v1672
      %v1674 = vpop.f32.mrf.mxu0
      %v1675 = vadd.f32 %v1533, %v1674
      %1676 = vmatmul.bf16.gmra.mxu0 %v1497
      %v1677 = vpop.f32.mrf.mxu0
      %v1678 = vadd.f32 %v1533, %v1677
      %v1679 = vpop.f32.mrf.mxu0
      %v1680 = vadd.f32 %v1533, %v1679
      %1681 = vmatmul.bf16.gmra.mxu0 %v1498
      %v1682 = vpop.f32.mrf.mxu0
      %v1683 = vadd.f32 %v1533, %v1682
      %v1684 = vpop.f32.mrf.mxu0
      %v1685 = vadd.f32 %v1533, %v1684
      %1686 = vmatmul.bf16.gmra.mxu0 %v1499
      %v1687 = vpop.f32.mrf.mxu0
      %v1688 = vadd.f32 %v1533, %v1687
      %v1689 = vpop.f32.mrf.mxu0
      %v1690 = vadd.f32 %v1533, %v1689
      %1691 = vmatmul.bf16.gmra.mxu0 %v1500
      %v1692 = vpop.f32.mrf.mxu0
      %v1693 = vadd.f32 %v1533, %v1692
      %v1694 = vpop.f32.mrf.mxu0
      %v1695 = vadd.f32 %v1533, %v1694
      %1696 = vmatmul.bf16.gmra.mxu0 %v1501
      %v1697 = vpop.f32.mrf.mxu0
      %v1698 = vadd.f32 %v1533, %v1697
      %v1699 = vpop.f32.mrf.mxu0
      %v1700 = vadd.f32 %v1533, %v1699
      %1701 = vmatmul.bf16.gmra.mxu0 %v1502
      %v1702 = vpop.f32.mrf.mxu0
      %v1703 = vadd.f32 %v1533, %v1702
      %v1704 = vpop.f32.mrf.mxu0
      %v1705 = vadd.f32 %v1533, %v1704
      %1706 = vmatmul.bf16.gmra.mxu0 %v1503
      %v1707 = vpop.f32.mrf.mxu0
      %v1708 = vadd.f32 %v1533, %v1707
      %v1709 = vpop.f32.mrf.mxu0
      %v1710 = vadd.f32 %v1533, %v1709
      %1711 = vmatmul.bf16.gmra.mxu0 %v1504
      %v1712 = vpop.f32.mrf.mxu0
      %v1713 = vadd.f32 %v1533, %v1712
      %v1714 = vpop.f32.mrf.mxu0
      %v1715 = vadd.f32 %v1533, %v1714
      %1716 = vmatmul.bf16.gmra.mxu0 %v1505
      %v1717 = vpop.f32.mrf.mxu0
      %v1718 = vadd.f32 %v1533, %v1717
      %v1719 = vpop.f32.mrf.mxu0
      %v1720 = vadd.f32 %v1533, %v1719
      %1721 = vmatmul.bf16.gmra.mxu0 %v1506
      %v1722 = vpop.f32.mrf.mxu0
      %v1723 = vadd.f32 %v1533, %v1722
      %v1724 = vpop.f32.mrf.mxu0
      %v1725 = vadd.f32 %v1533, %v1724
      %1726 = vmatmul.bf16.gmra.mxu0 %v1507
      %v1727 = vpop.f32.mrf.mxu0
      %v1728 = vadd.f32 %v1533, %v1727
      %v1729 = vpop.f32.mrf.mxu0
      %v1730 = vadd.f32 %v1533, %v1729
      %1731 = vmatmul.bf16.gmra.mxu0 %v1508
      %v1732 = vpop.f32.mrf.mxu0
      %v1733 = vadd.f32 %v1533, %v1732
      %v1734 = vpop.f32.mrf.mxu0
      %v1735 = vadd.f32 %v1533, %v1734
      %1736 = vmatmul.bf16.gmra.mxu0 %v1509
      %v1737 = vpop.f32.mrf.mxu0
      %v1738 = vadd.f32 %v1533, %v1737
      %v1739 = vpop.f32.mrf.mxu0
      %v1740 = vadd.f32 %v1533, %v1739
      %1741 = vmatmul.bf16.gmra.mxu0 %v1510
      %v1742 = vpop.f32.mrf.mxu0
      %v1743 = vadd.f32 %v1533, %v1742
      %v1744 = vpop.f32.mrf.mxu0
      %v1745 = vadd.f32 %v1533, %v1744
      %1746 = vmatmul.bf16.gmra.mxu0 %v1511
      %v1747 = vpop.f32.mrf.mxu0
      %v1748 = vadd.f32 %v1533, %v1747
      %v1749 = vpop.f32.mrf.mxu0
      %v1750 = vadd.f32 %v1533, %v1749
      %1751 = vmatmul.bf16.gmra.mxu0 %v1512
      %v1752 = vpop.f32.mrf.mxu0
      %v1753 = vadd.f32 %v1533, %v1752
      %v1754 = vpop.f32.mrf.mxu0
      %v1755 = vadd.f32 %v1533, %v1754
      %1756 = vmatmul.bf16.gmra.mxu0 %v1513
      %v1757 = vpop.f32.mrf.mxu0
      %v1758 = vadd.f32 %v1533, %v1757
      %v1759 = vpop.f32.mrf.mxu0
      %v1760 = vadd.f32 %v1533, %v1759
      %1761 = vmatmul.bf16.gmra.mxu0 %v1514
      %v1762 = vpop.f32.mrf.mxu0
      %v1763 = vadd.f32 %v1533, %v1762
      %v1764 = vpop.f32.mrf.mxu0
      %1765 = vdwg.mxu0
      %v1766 = vmul.f32 %v1593, 0.01
      %v1767 = vmul.f32 %v1595, 0.01
      %v1768 = vmul.f32 %v1598, 0.01
      %v1769 = vmul.f32 %v1600, 0.01
      %v1770 = vmul.f32 %v1603, 0.01
      %v1771 = vmul.f32 %v1605, 0.01
      %v1772 = vmul.f32 %v1608, 0.01
      %v1773 = vmul.f32 %v1610, 0.01
      %v1774 = vmul.f32 %v1613, 0.01
      %v1775 = vmul.f32 %v1615, 0.01
      %v1776 = vmul.f32 %v1618, 0.01
      %v1777 = vmul.f32 %v1620, 0.01
      %v1778 = vmul.f32 %v1623, 0.01
      %v1779 = vmul.f32 %v1625, 0.01
      %v1780 = vmul.f32 %v1628, 0.01
      %v1781 = vmul.f32 %v1630, 0.01
      %v1782 = vmul.f32 %v1633, 0.01
      %v1783 = vmul.f32 %v1635, 0.01
      %v1784 = vmul.f32 %v1638, 0.01
      %v1785 = vmul.f32 %v1640, 0.01
      %v1786 = vmul.f32 %v1643, 0.01
      %v1787 = vmul.f32 %v1645, 0.01
      %v1788 = vmul.f32 %v1648, 0.01
      %v1789 = vmul.f32 %v1650, 0.01
      %v1790 = vmul.f32 %v1653, 0.01
      %v1791 = vmul.f32 %v1655, 0.01
      %v1792 = vmul.f32 %v1658, 0.01
      %v1793 = vmul.f32 %v1660, 0.01
      %v1794 = vmul.f32 %v1663, 0.01
      %v1795 = vmul.f32 %v1665, 0.01
      %v1796 = vmul.f32 %v1668, 0.01
      %v1797 = vmul.f32 %v1670, 0.01
      %v1798 = vmul.f32 %v1673, 0.01
      %v1799 = vmul.f32 %v1675, 0.01
      %v1800 = vmul.f32 %v1678, 0.01
      %v1801 = vmul.f32 %v1680, 0.01
      %v1802 = vmul.f32 %v1683, 0.01
      %v1803 = vmul.f32 %v1685, 0.01
      %v1804 = vmul.f32 %v1688, 0.01
      %v1805 = vmul.f32 %v1690, 0.01
      %v1806 = vmul.f32 %v1693, 0.01
      %v1807 = vmul.f32 %v1695, 0.01
      %v1808 = vmul.f32 %v1698, 0.01
      %v1809 = vmul.f32 %v1700, 0.01
      %v1810 = vmul.f32 %v1703, 0.01
      %v1811 = vmul.f32 %v1705, 0.01
      %v1812 = vmul.f32 %v1708, 0.01
      %v1813 = vmul.f32 %v1710, 0.01
      %v1814 = vmul.f32 %v1713, 0.01
      %v1815 = vmul.f32 %v1715, 0.01
      %v1816 = vmul.f32 %v1718, 0.01
      %v1817 = vmul.f32 %v1720, 0.01
      %v1818 = vmul.f32 %v1723, 0.01
      %v1819 = vmul.f32 %v1725, 0.01
      %v1820 = vmul.f32 %v1728, 0.01
      %v1821 = vmul.f32 %v1730, 0.01
      %v1822 = vmul.f32 %v1733, 0.01
      %v1823 = vmul.f32 %v1735, 0.01
      %v1824 = vmul.f32 %v1738, 0.01
      %v1825 = vmul.f32 %v1740, 0.01
      %v1826 = vmul.f32 %v1743, 0.01
      %v1827 = vmul.f32 %v1745, 0.01
      %v1828 = vmul.f32 %v1748, 0.01
      %v1829 = vmul.f32 %v1750, 0.01
      %v1830 = vmul.f32 %v1753, 0.01
      %v1831 = vmul.f32 %v1755, 0.01
      %v1832 = vmul.f32 %v1758, 0.01
      %v1833 = vmul.f32 %v1760, 0.01
      %v1834 = vmul.f32 %v1763, 0.01
      %v1835 = vmax.f32 %v1593, %v1766
      %v1836 = vmax.f32 %v1595, %v1767
      %v1837 = vmax.f32 %v1598, %v1768
      %v1838 = vmax.f32 %v1600, %v1769
      %v1839 = vmax.f32 %v1603, %v1770
      %v1840 = vmax.f32 %v1605, %v1771
      %v1841 = vmax.f32 %v1608, %v1772
      %v1842 = vmax.f32 %v1610, %v1773
      %v1843 = vmax.f32 %v1613, %v1774
      %v1844 = vmax.f32 %v1615, %v1775
      %v1845 = vmax.f32 %v1618, %v1776
      %v1846 = vmax.f32 %v1620, %v1777
      %v1847 = vmax.f32 %v1623, %v1778
      %v1848 = vmax.f32 %v1625, %v1779
      %v1849 = vmax.f32 %v1628, %v1780
      %v1850 = vmax.f32 %v1630, %v1781
      %v1851 = vmax.f32 %v1633, %v1782
      %v1852 = vmax.f32 %v1635, %v1783
      %v1853 = vmax.f32 %v1638, %v1784
      %v1854 = vmax.f32 %v1640, %v1785
      %v1855 = vmax.f32 %v1643, %v1786
      %v1856 = vmax.f32 %v1645, %v1787
      %v1857 = vmax.f32 %v1648, %v1788
      %v1858 = vmax.f32 %v1650, %v1789
      %v1859 = vmax.f32 %v1653, %v1790
      %v1860 = vmax.f32 %v1655, %v1791
      %v1861 = vmax.f32 %v1658, %v1792
      %v1862 = vmax.f32 %v1660, %v1793
      %v1863 = vmax.f32 %v1663, %v1794
      %v1864 = vmax.f32 %v1665, %v1795
      %v1865 = vmax.f32 %v1668, %v1796
      %v1866 = vmax.f32 %v1670, %v1797
      %v1867 = vmax.f32 %v1673, %v1798
      %v1868 = vmax.f32 %v1675, %v1799
      %v1869 = vmax.f32 %v1678, %v1800
      %v1870 = vmax.f32 %v1680, %v1801
      %v1871 = vmax.f32 %v1683, %v1802
      %v1872 = vmax.f32 %v1685, %v1803
      %v1873 = vmax.f32 %v1688, %v1804
      %v1874 = vmax.f32 %v1690, %v1805
      %v1875 = vmax.f32 %v1693, %v1806
      %v1876 = vmax.f32 %v1695, %v1807
      %v1877 = vmax.f32 %v1698, %v1808
      %v1878 = vmax.f32 %v1700, %v1809
      %v1879 = vmax.f32 %v1703, %v1810
      %v1880 = vmax.f32 %v1705, %v1811
      %v1881 = vmax.f32 %v1708, %v1812
      %v1882 = vmax.f32 %v1710, %v1813
      %v1883 = vmax.f32 %v1713, %v1814
      %v1884 = vmax.f32 %v1715, %v1815
      %v1885 = vmax.f32 %v1718, %v1816
      %v1886 = vmax.f32 %v1720, %v1817
      %v1887 = vmax.f32 %v1723, %v1818
      %v1888 = vmax.f32 %v1725, %v1819
      %v1889 = vmax.f32 %v1728, %v1820
      %v1890 = vmax.f32 %v1730, %v1821
      %v1891 = vmax.f32 %v1733, %v1822
      %v1892 = vmax.f32 %v1735, %v1823
      %v1893 = vmax.f32 %v1738, %v1824
      %v1894 = vmax.f32 %v1740, %v1825
      %v1895 = vmax.f32 %v1743, %v1826
      %v1896 = vmax.f32 %v1745, %v1827
      %v1897 = vmax.f32 %v1748, %v1828
      %v1898 = vmax.f32 %v1750, %v1829
      %v1899 = vmax.f32 %v1753, %v1830
      %v1900 = vmax.f32 %v1755, %v1831
      %v1901 = vmax.f32 %v1758, %v1832
      %v1902 = vmax.f32 %v1760, %v1833
      %v1903 = vmax.f32 %v1763, %v1834
      %vm1904 = vcmask 490496
      %1905 = vst.msk [vmem:[%s229] sm:$0xff] %vm1904, %v1835
      %1906 = vst.msk [vmem:[%s229 + $0x8] sm:$0xff] %vm1904, %v1836
      %1907 = vst.msk [vmem:[%s229 + $0x10] sm:$0xff] %vm1904, %v1837
      %1908 = vst.msk [vmem:[%s229 + $0x18] sm:$0xff] %vm1904, %v1838
      %1909 = vst.msk [vmem:[%s229 + $0x20] sm:$0xff] %vm1904, %v1839
      %1910 = vst.msk [vmem:[%s229 + $0x28] sm:$0xff] %vm1904, %v1840
      %1911 = vst.msk [vmem:[%s229 + $0x30] sm:$0xff] %vm1904, %v1841
      %1912 = vst.msk [vmem:[%s229 + $0x38] sm:$0xff] %vm1904, %v1842
      %1913 = vst.msk [vmem:[%s229 + $0x40] sm:$0xff] %vm1904, %v1843
      %1914 = vst.msk [vmem:[%s229 + $0x48] sm:$0xff] %vm1904, %v1844
      %1915 = vst.msk [vmem:[%s229 + $0x50] sm:$0xff] %vm1904, %v1845
      %1916 = vst.msk [vmem:[%s229 + $0x58] sm:$0xff] %vm1904, %v1846
      %1917 = vst.msk [vmem:[%s229 + $0x60] sm:$0xff] %vm1904, %v1847
      %1918 = vst.msk [vmem:[%s229 + $0x68] sm:$0xff] %vm1904, %v1848
      %1919 = vst.msk [vmem:[%s229 + $0x70] sm:$0xff] %vm1904, %v1849
      %1920 = vst.msk [vmem:[%s229 + $0x78] sm:$0xff] %vm1904, %v1850
      %1921 = vst.msk [vmem:[%s229 + $0x80] sm:$0xff] %vm1904, %v1851
      %1922 = vst.msk [vmem:[%s229 + $0x88] sm:$0xff] %vm1904, %v1852
      %1923 = vst.msk [vmem:[%s229 + $0x90] sm:$0xff] %vm1904, %v1853
      %1924 = vst.msk [vmem:[%s229 + $0x98] sm:$0xff] %vm1904, %v1854
      %1925 = vst.msk [vmem:[%s229 + $0xa0] sm:$0xff] %vm1904, %v1855
      %1926 = vst.msk [vmem:[%s229 + $0xa8] sm:$0xff] %vm1904, %v1856
      %1927 = vst.msk [vmem:[%s229 + $0xb0] sm:$0xff] %vm1904, %v1857
      %1928 = vst.msk [vmem:[%s229 + $0xb8] sm:$0xff] %vm1904, %v1858
      %1929 = vst.msk [vmem:[%s229 + $0xc0] sm:$0xff] %vm1904, %v1859
      %1930 = vst.msk [vmem:[%s229 + $0xc8] sm:$0xff] %vm1904, %v1860
      %1931 = vst.msk [vmem:[%s229 + $0xd0] sm:$0xff] %vm1904, %v1861
      %1932 = vst.msk [vmem:[%s229 + $0xd8] sm:$0xff] %vm1904, %v1862
      %1933 = vst.msk [vmem:[%s229 + $0xe0] sm:$0xff] %vm1904, %v1863
      %1934 = vst.msk [vmem:[%s229 + $0xe8] sm:$0xff] %vm1904, %v1864
      %1935 = vst.msk [vmem:[%s229 + $0xf0] sm:$0xff] %vm1904, %v1865
      %1936 = vst.msk [vmem:[%s229 + $0xf8] sm:$0xff] %vm1904, %v1866
      %1937 = vst.msk [vmem:[%s229 + $0x100] sm:$0xff] %vm1904, %v1867
      %1938 = vst.msk [vmem:[%s229 + $0x108] sm:$0xff] %vm1904, %v1868
      %1939 = vst.msk [vmem:[%s229 + $0x110] sm:$0xff] %vm1904, %v1869
      %1940 = vst.msk [vmem:[%s229 + $0x118] sm:$0xff] %vm1904, %v1870
      %1941 = vst.msk [vmem:[%s229 + $0x120] sm:$0xff] %vm1904, %v1871
      %1942 = vst.msk [vmem:[%s229 + $0x128] sm:$0xff] %vm1904, %v1872
      %1943 = vst.msk [vmem:[%s229 + $0x130] sm:$0xff] %vm1904, %v1873
      %1944 = vst.msk [vmem:[%s229 + $0x138] sm:$0xff] %vm1904, %v1874
      %1945 = vst.msk [vmem:[%s229 + $0x140] sm:$0xff] %vm1904, %v1875
      %1946 = vst.msk [vmem:[%s229 + $0x148] sm:$0xff] %vm1904, %v1876
      %1947 = vst.msk [vmem:[%s229 + $0x150] sm:$0xff] %vm1904, %v1877
      %1948 = vst.msk [vmem:[%s229 + $0x158] sm:$0xff] %vm1904, %v1878
      %1949 = vst.msk [vmem:[%s229 + $0x160] sm:$0xff] %vm1904, %v1879
      %1950 = vst.msk [vmem:[%s229 + $0x168] sm:$0xff] %vm1904, %v1880
      %1951 = vst.msk [vmem:[%s229 + $0x170] sm:$0xff] %vm1904, %v1881
      %1952 = vst.msk [vmem:[%s229 + $0x178] sm:$0xff] %vm1904, %v1882
      %1953 = vst.msk [vmem:[%s229 + $0x180] sm:$0xff] %vm1904, %v1883
      %1954 = vst.msk [vmem:[%s229 + $0x188] sm:$0xff] %vm1904, %v1884
      %1955 = vst.msk [vmem:[%s229 + $0x190] sm:$0xff] %vm1904, %v1885
      %1956 = vst.msk [vmem:[%s229 + $0x198] sm:$0xff] %vm1904, %v1886
      %1957 = vst.msk [vmem:[%s229 + $0x1a0] sm:$0xff] %vm1904, %v1887
      %1958 = vst.msk [vmem:[%s229 + $0x1a8] sm:$0xff] %vm1904, %v1888
      %1959 = vst.msk [vmem:[%s229 + $0x1b0] sm:$0xff] %vm1904, %v1889
      %1960 = vst.msk [vmem:[%s229 + $0x1b8] sm:$0xff] %vm1904, %v1890
      %1961 = vst.msk [vmem:[%s229 + $0x1c0] sm:$0xff] %vm1904, %v1891
      %1962 = vst.msk [vmem:[%s229 + $0x1c8] sm:$0xff] %vm1904, %v1892
      %1963 = vst.msk [vmem:[%s229 + $0x1d0] sm:$0xff] %vm1904, %v1893
      %1964 = vst.msk [vmem:[%s229 + $0x1d8] sm:$0xff] %vm1904, %v1894
      %1965 = vst.msk [vmem:[%s229 + $0x1e0] sm:$0xff] %vm1904, %v1895
      %1966 = vst.msk [vmem:[%s229 + $0x1e8] sm:$0xff] %vm1904, %v1896
      %1967 = vst.msk [vmem:[%s229 + $0x1f0] sm:$0xff] %vm1904, %v1897
      %1968 = vst.msk [vmem:[%s229 + $0x1f8] sm:$0xff] %vm1904, %v1898
      %1969 = vst.msk [vmem:[%s229 + $0x200] sm:$0xff] %vm1904, %v1899
      %1970 = vst.msk [vmem:[%s229 + $0x208] sm:$0xff] %vm1904, %v1900
      %1971 = vst.msk [vmem:[%s229 + $0x210] sm:$0xff] %vm1904, %v1901
      %1972 = vst.msk [vmem:[%s229 + $0x218] sm:$0xff] %vm1904, %v1902
      %1973 = vst.msk [vmem:[%s229 + $0x220] sm:$0xff] %vm1904, %v1903
      %s1974 = smul.u32 69, %s16
      %p1975 = scmp.lt.s32.totalorder %s1974, 137
      %s1976 = scalar_select %p1975, %s1974, 137
      %s1977 = smul.addr %s1976, 8
      %s1978 = scalar_lea.vmem %s5, %s1977
      // Predicated region
      $region41: #{tpu_custom_call.1} parent=39 // pred_check
        %p1979 = pneg %p144
      $region42: #{tpu_custom_call.1} parent=39 // pred_check_branch
        %1981 = sbr.rel (%p1979) target = $region44
      $region43: #{tpu_custom_call.1} parent=39 // pred_region
        %s1982 = smul.u32 69, %s16
      $region44: #{tpu_custom_call.1} parent=39 // pred_fallthru
        _
    $region40: #{tpu_custom_call.1} parent=5 // pred_fallthru
      _
    %p1983 = scmp.le.s32.totalorder 2, %s11
    // Predicated region
    $region45: #{tpu_custom_call.1} parent=5 // pred_check
      %p1984 = pneg %p1983
    $region46: #{tpu_custom_call.1} parent=5 // pred_check_branch
      %1986 = sbr.rel (%p1984) target = $region48
    $region47: #{tpu_custom_call.1} parent=5 // pred_region
      %s1987 = ssub.s32 %s11, 2
      // Predicated region
      $region49: #{tpu_custom_call.1} parent=47 // pred_check
        %p1988 = pneg %p150
      $region50: #{tpu_custom_call.1} parent=47 // pred_check_branch
        %1990 = sbr.rel (%p1988) target = $region52
      $region51: #{tpu_custom_call.1} parent=47 // pred_region
        %s1991 = smul.u32 69, %s17
        %p1992 = scmp.lt.s32.totalorder %s1991, 137
        %s1993 = scalar_select %p1992, %s1991, 137
        %s1994 = smul.addr %s1993, 8
        %s1995 = scalar_lea.vmem %s5, %s1994
      $region52: #{tpu_custom_call.1} parent=47 // pred_fallthru
        _
    $region48: #{tpu_custom_call.1} parent=5 // pred_fallthru
      _
  $region6: #{tpu_custom_call.1} parent=0 // loop_footer
    %s15 = sadd.s32 1, %s11
  $region7: #{tpu_custom_call.1} parent=0 // loop_footer_branch
    %10 = sbr.rel target = $region3
  $region8: #{tpu_custom_call.1} parent=0 // loop_exit
    _

</llo_original>
